<compile_context>
chip_gen: v6e
topology: v6e:2x2x1
jax: 0.10.0
libtpu: 0.0.40
codegen_flags: <defaults>
</compile_context>

<pallas_src>
import math
import re

import jax
import jax.numpy as jnp
from jax.experimental import pallas as pl
from jax.experimental.pallas import tpu as pltpu

_INV_SQRT2 = 1.0 / math.sqrt(2.0)
_LRELU_SLOPE = 0.2
_IN_EPS = 1e-5


def _ceil(a, b):
    return -(-a // b)


def _round_up(a, b):
    return _ceil(a, b) * b


def _tpu_generation():
    try:
        kind = jax.devices()[0].device_kind.lower()
        m = re.search(r"v(\d+)", kind)
        if m:
            return int(m.group(1))
    except Exception:
        pass
    return 6


_TPU_GEN = _tpu_generation()


# ----------------------------------------------------------------------------
# Pallas tiled matmul kernels (bf16 MXU operands, f32 accumulation)
# ----------------------------------------------------------------------------
def _mm_bias_kernel(a_ref, b_ref, bias_ref, o_ref, acc_ref):
    @pl.when(pl.program_id(2) == 0)
    def _():
        acc_ref[...] = jnp.zeros_like(acc_ref)

    acc_ref[...] += jnp.dot(a_ref[...], b_ref[...],
                            preferred_element_type=jnp.float32)

    @pl.when(pl.program_id(2) == pl.num_programs(2) - 1)
    def _():
        o_ref[...] = (acc_ref[...] + bias_ref[...]).astype(o_ref.dtype)


def _mm_bias_res_kernel(a_ref, b_ref, bias_ref, r_ref, o_ref, acc_ref):
    # epilogue fuses the ResBlk tail:  (conv2(x) + shortcut) / sqrt(2)
    @pl.when(pl.program_id(2) == 0)
    def _():
        acc_ref[...] = jnp.zeros_like(acc_ref)

    acc_ref[...] += jnp.dot(a_ref[...], b_ref[...],
                            preferred_element_type=jnp.float32)

    @pl.when(pl.program_id(2) == pl.num_programs(2) - 1)
    def _():
        o_ref[...] = ((acc_ref[...] + bias_ref[...] + r_ref[...])
                      * _INV_SQRT2).astype(o_ref.dtype)


def _pack_matmul_weight(wmat, bias):
    """Pre-pack a (K, N) f32 weight matrix into padded bf16 matmul layout."""
    K, N = wmat.shape
    ks = _ceil(K, 2048)                       # number of K grid steps
    TK = _round_up(_ceil(K, ks), 128)         # K tile, multiple of 128
    Kp = TK * ks
    Np = _round_up(N, 128)
    w_p = jnp.pad(wmat, ((0, Kp - K), (0, Np - N))).astype(jnp.bfloat16)
    if bias is None:
        bias = jnp.zeros((N,), jnp.float32)
    b_p = jnp.pad(bias.astype(jnp.float32), (0, Np - N)).reshape(1, Np)
    return {"w": w_p, "b": b_p, "n": int(N), "tk": int(TK)}


def matmul_bias(a, packed, residual=None):
    """out = a @ W + bias (optionally  (out + residual) / sqrt(2) ).

    a        : (M, K) float32 activations / im2col patches
    packed   : dict from _pack_matmul_weight (bf16 weight already in (Kp, Np))
    residual : optional (M, n_out) float32, fused into the epilogue
    """
    w_p, b_p, n_out, TK = packed["w"], packed["b"], packed["n"], packed["tk"]
    M, K = a.shape
    Kp, Np = w_p.shape

    # Adaptive tiling: never pad tiny M up to 128 (feedback item 8);
    # 256-wide N tiles only where the MXU is 2x256 wide (v6e/v7x, item 2/3/10).
    TM = 128 if M >= 128 else _round_up(max(M, 8), 8)
    Mp = _round_up(M, TM)
    TN = 256 if (_TPU_GEN >= 6 and Np % 256 == 0) else 128

    if Mp != M or Kp != K:
        a = jnp.pad(a, ((0, Mp - M), (0, Kp - K)))
    a = a.astype(jnp.bfloat16)   # bf16 MXU operands, f32 accumulation

    inputs = [a, w_p, b_p]
    in_specs = [
        pl.BlockSpec((TM, TK), lambda i, j, k: (i, k)),
        pl.BlockSpec((TK, TN), lambda i, j, k: (k, j)),
        pl.BlockSpec((1, TN), lambda i, j, k: (0, j)),
    ]
    if residual is not None:
        r = residual.astype(jnp.float32)
        if Mp != M or Np != n_out:
            r = jnp.pad(r, ((0, Mp - M), (0, Np - n_out)))
        inputs.append(r)
        in_specs.append(pl.BlockSpec((TM, TN), lambda i, j, k: (i, j)))
        kernel = _mm_bias_res_kernel
    else:
        kernel = _mm_bias_kernel

    out = pl.pallas_call(
        kernel,
        out_shape=jax.ShapeDtypeStruct((Mp, Np), jnp.float32),
        grid_spec=pltpu.PrefetchScalarGridSpec(
            num_scalar_prefetch=0,
            grid=(Mp // TM, Np // TN, Kp // TK),
            in_specs=in_specs,
            out_specs=pl.BlockSpec((TM, TN), lambda i, j, k: (i, j)),
            scratch_shapes=[pltpu.VMEM((TM, TN), jnp.float32)],
        ),
        compiler_params=pltpu.CompilerParams(
            dimension_semantics=("parallel", "parallel", "arbitrary"),
            vmem_limit_bytes=32 * 1024 * 1024,
        ),
    )(*inputs)

    if Mp != M or Np != n_out:
        out = out[:M, :n_out]
    return out


# ----------------------------------------------------------------------------
# Fused InstanceNorm2d(affine) + LeakyReLU(0.2) Pallas kernel (per-sample)
# ----------------------------------------------------------------------------
def _inorm_lrelu_kernel(x_ref, g_ref, b_ref, o_ref):
    x = x_ref[...]                                   # (1, HW, C) f32
    mean = jnp.mean(x, axis=1, keepdims=True)
    xc = x - mean
    var = jnp.mean(xc * xc, axis=1, keepdims=True)
    y = xc * jax.lax.rsqrt(var + _IN_EPS) * g_ref[...] + b_ref[...]
    o_ref[...] = jnp.where(y >= 0.0, y, _LRELU_SLOPE * y)


def _lrelu_kernel(x_ref, o_ref):
    x = x_ref[...]
    o_ref[...] = jnp.where(x >= 0.0, x, _LRELU_SLOPE * x)


def instnorm_lrelu(x, gamma, beta):
    """x NHWC -> InstanceNorm2d(affine=True) then LeakyReLU(0.2)."""
    B, H, W, C = x.shape
    xr = x.reshape(B, H * W, C).astype(jnp.float32)
    out = pl.pallas_call(
        _inorm_lrelu_kernel,
        out_shape=jax.ShapeDtypeStruct((B, H * W, C), jnp.float32),
        grid_spec=pltpu.PrefetchScalarGridSpec(
            num_scalar_prefetch=0,
            grid=(B,),
            in_specs=[
                pl.BlockSpec((1, H * W, C), lambda b: (b, 0, 0)),
                pl.BlockSpec((1, 1, C), lambda b: (0, 0, 0)),
                pl.BlockSpec((1, 1, C), lambda b: (0, 0, 0)),
            ],
            out_specs=pl.BlockSpec((1, H * W, C), lambda b: (b, 0, 0)),
        ),
        compiler_params=pltpu.CompilerParams(
            dimension_semantics=("parallel",)),
    )(xr, gamma, beta)
    return out.reshape(B, H, W, C)


def leaky_relu(x):
    B, H, W, C = x.shape
    xr = x.reshape(B, H * W, C).astype(jnp.float32)
    out = pl.pallas_call(
        _lrelu_kernel,
        out_shape=jax.ShapeDtypeStruct((B, H * W, C), jnp.float32),
        grid_spec=pltpu.PrefetchScalarGridSpec(
            num_scalar_prefetch=0,
            grid=(B,),
            in_specs=[pl.BlockSpec((1, H * W, C), lambda b: (b, 0, 0))],
            out_specs=pl.BlockSpec((1, H * W, C), lambda b: (b, 0, 0)),
        ),
        compiler_params=pltpu.CompilerParams(
            dimension_semantics=("parallel",)),
    )(xr)
    return out.reshape(B, H, W, C)


# ----------------------------------------------------------------------------
# Conv wrappers (im2col + Pallas matmul) and pooling glue
# ----------------------------------------------------------------------------
def _im2col_3x3(x):
    """3x3 / stride 1 / pad 1 patches: (B,H,W,C) -> (B*H*W, 9*C), (kh,kw,C) order.
    TODO(synk): fuse into the matmul A BlockSpec/index_map (tap axes as extra
    reduction grid dims) to avoid materializing the patches array in HBM."""
    B, H, W, C = x.shape
    xp = jnp.pad(x, ((0, 0), (1, 1), (1, 1), (0, 0)))
    cols = [xp[:, di:di + H, dj:dj + W, :] for di in range(3) for dj in range(3)]
    return jnp.concatenate(cols, axis=-1).reshape(B * H * W, 9 * C)


def conv3x3(x, packed, residual=None):
    B, H, W, _ = x.shape
    patches = _im2col_3x3(x)
    res = None
    if residual is not None:
        res = residual.reshape(B * H * W, residual.shape[-1])
    y = matmul_bias(patches, packed, residual=res)
    return y.reshape(B, H, W, packed["n"])


def conv1x1(x, packed):
    B, H, W, C = x.shape
    y = matmul_bias(x.reshape(B * H * W, C), packed)
    return y.reshape(B, H, W, packed["n"])


def avg_pool2x2(x):
    B, H, W, C = x.shape
    return x.reshape(B, H // 2, 2, W // 2, 2, C).mean(axis=(2, 4))


# ----------------------------------------------------------------------------
# Parameter construction (mirrors PyTorch defaults) + packing
# ----------------------------------------------------------------------------
def _conv_init(key, in_c, out_c, k, bias=True):
    kw, kb = jax.random.split(key)
    fan_in = in_c * k * k
    bound = 1.0 / math.sqrt(fan_in)
    w = jax.random.uniform(kw, (out_c, in_c, k, k), jnp.float32, -bound, bound)
    b = (jax.random.uniform(kb, (out_c,), jnp.float32, -bound, bound)
         if bias else None)
    return w, b


def _pack_conv(w, b):
    Cout, Cin, kh, kw = w.shape
    wmat = jnp.transpose(w, (2, 3, 1, 0)).reshape(kh * kw * Cin, Cout)
    return _pack_matmul_weight(wmat, b)


class ResBlkPallas:
    """Pallas implementation of ResBlk.forward (LeakyReLU(0.2) activation)."""

    def __init__(self, key, dim_in, dim_out, normalize=False, downsample=False):
        self.normalize = normalize
        self.downsample = downsample
        self.learned_sc = dim_in != dim_out
        k1, k2, k3 = jax.random.split(key, 3)
        w1, b1 = _conv_init(k1, dim_in, dim_in, 3)
        w2, b2 = _conv_init(k2, dim_in, dim_out, 3)
        self.conv1 = _pack_conv(w1, b1)
        self.conv2 = _pack_conv(w2, b2)
        if self.learned_sc:
            w_sc, _ = _conv_init(k3, dim_in, dim_out, 1, bias=False)
            self.conv1x1 = _pack_conv(w_sc, None)
        if normalize:
            # InstanceNorm2d(affine=True) init: weight = 1, bias = 0
            self.norm1 = (jnp.ones((1, 1, dim_in), jnp.float32),
                          jnp.zeros((1, 1, dim_in), jnp.float32))
            self.norm2 = (jnp.ones((1, 1, dim_in), jnp.float32),
                          jnp.zeros((1, 1, dim_in), jnp.float32))

    def _shortcut(self, x):
        if self.learned_sc:
            x = conv1x1(x, self.conv1x1)
        if self.downsample:
            x = avg_pool2x2(x)
        return x

    def _residual_pre_conv2(self, x):
        if self.normalize:
            x = instnorm_lrelu(x, *self.norm1)
        else:
            x = leaky_relu(x)
        x = conv3x3(x, self.conv1)
        if self.downsample:
            x = avg_pool2x2(x)
        if self.normalize:
            x = instnorm_lrelu(x, *self.norm2)
        else:
            x = leaky_relu(x)
        return x

    def __call__(self, x_nchw):
        x = jnp.transpose(x_nchw, (0, 2, 3, 1)).astype(jnp.float32)  # NCHW->NHWC
        sc = self._shortcut(x)
        h = self._residual_pre_conv2(x)
        # conv2 with the "( + shortcut ) / sqrt(2)" tail fused into its epilogue
        out = conv3x3(h, self.conv2, residual=sc)
        return jnp.transpose(out, (0, 3, 1, 2))                      # NHWC->NCHW


# ----------------------------------------------------------------------------
if __name__ == "__main__":
    key = jax.random.PRNGKey(0)
    kp, kx = jax.random.split(key)

    B, dim_in, dim_out, H = 2, 64, 128, 16
    blk = ResBlkPallas(kp, dim_in, dim_out, normalize=True, downsample=True)

    x = jax.random.normal(kx, (B, dim_in, H, H), jnp.float32)  # NCHW, like PyTorch

    fwd = jax.jit(lambda inp: blk(inp))
    out = fwd(x)
    jax.block_until_ready(out)

    assert out.shape == (B, dim_out, H // 2, H // 2), out.shape
    assert bool(jnp.all(jnp.isfinite(out)))
    print("KERNEL_OK")
</pallas_src>

<mosaic_0001>
module attributes {stable_mosaic.version = 11 : i64} {
  func.func @_inorm_lrelu_kernel(%arg0: i32, %arg1: memref<1x256x64xf32, #tpu.memory_space<vmem>>, %arg2: memref<1x1x64xf32, #tpu.memory_space<vmem>>, %arg3: memref<1x1x64xf32, #tpu.memory_space<vmem>>, %arg4: memref<1x256x64xf32, #tpu.memory_space<vmem>>) attributes {dimension_semantics = [#tpu.dimension_semantics<parallel>], iteration_bounds = array<i64: 2>, scalar_prefetch = 0 : i64, scratch_operands = 0 : i64, tpu.core_type = #tpu.core_type<tc>, window_params = [{transform_indices = @transform_0, window_bounds = array<i64: 1, 256, 64>}, {pipeline_mode = #tpu.pipeline_mode<synchronous>, transform_indices = @transform_1, window_bounds = array<i64: 1, 1, 64>}, {pipeline_mode = #tpu.pipeline_mode<synchronous>, transform_indices = @transform_2, window_bounds = array<i64: 1, 1, 64>}, {transform_indices = @transform_3, window_bounds = array<i64: 1, 256, 64>}]} {
    %c0 = arith.constant 0 : index
    %c0_0 = arith.constant 0 : index
    %c0_1 = arith.constant 0 : index
    %0 = vector.load %arg1[%c0, %c0_0, %c0_1] : memref<1x256x64xf32, #tpu.memory_space<vmem>>, vector<1x256x64xf32>
    %cst = arith.constant dense<0.000000e+00> : vector<1x64xf32>
    %1 = vector.multi_reduction <add>, %0, %cst [1] : vector<1x256x64xf32> to vector<1x64xf32>
    %2 = vector.shape_cast %1 : vector<1x64xf32> to vector<1x1x64xf32>
    %cst_2 = arith.constant 2.560000e+02 : f32
    %3 = vector.broadcast %cst_2 : f32 to vector<1x1x64xf32>
    %4 = arith.divf %2, %3 : vector<1x1x64xf32>
    %5 = vector.broadcast %4 : vector<1x1x64xf32> to vector<1x256x64xf32>
    %6 = arith.subf %0, %5 : vector<1x256x64xf32>
    %7 = arith.mulf %6, %6 : vector<1x256x64xf32>
    %cst_3 = arith.constant dense<0.000000e+00> : vector<1x64xf32>
    %8 = vector.multi_reduction <add>, %7, %cst_3 [1] : vector<1x256x64xf32> to vector<1x64xf32>
    %9 = vector.shape_cast %8 : vector<1x64xf32> to vector<1x1x64xf32>
    %cst_4 = arith.constant 2.560000e+02 : f32
    %10 = vector.broadcast %cst_4 : f32 to vector<1x1x64xf32>
    %11 = arith.divf %9, %10 : vector<1x1x64xf32>
    %cst_5 = arith.constant 9.99999974E-6 : f32
    %12 = vector.broadcast %cst_5 : f32 to vector<1x1x64xf32>
    %13 = arith.addf %11, %12 : vector<1x1x64xf32>
    %14 = math.rsqrt %13 : vector<1x1x64xf32>
    %15 = vector.broadcast %14 : vector<1x1x64xf32> to vector<1x256x64xf32>
    %16 = arith.mulf %6, %15 : vector<1x256x64xf32>
    %c0_6 = arith.constant 0 : index
    %c0_7 = arith.constant 0 : index
    %c0_8 = arith.constant 0 : index
    %17 = vector.load %arg2[%c0_6, %c0_7, %c0_8] : memref<1x1x64xf32, #tpu.memory_space<vmem>>, vector<1x1x64xf32>
    %18 = vector.broadcast %17 : vector<1x1x64xf32> to vector<1x256x64xf32>
    %19 = arith.mulf %16, %18 : vector<1x256x64xf32>
    %c0_9 = arith.constant 0 : index
    %c0_10 = arith.constant 0 : index
    %c0_11 = arith.constant 0 : index
    %20 = vector.load %arg3[%c0_9, %c0_10, %c0_11] : memref<1x1x64xf32, #tpu.memory_space<vmem>>, vector<1x1x64xf32>
    %21 = vector.broadcast %20 : vector<1x1x64xf32> to vector<1x256x64xf32>
    %22 = arith.addf %19, %21 : vector<1x256x64xf32>
    %cst_12 = arith.constant 0.000000e+00 : f32
    %23 = vector.broadcast %cst_12 : f32 to vector<1x256x64xf32>
    %24 = arith.cmpf oge, %22, %23 : vector<1x256x64xf32>
    %cst_13 = arith.constant 2.000000e-01 : f32
    %25 = vector.broadcast %cst_13 : f32 to vector<1x256x64xf32>
    %26 = arith.mulf %25, %22 : vector<1x256x64xf32>
    %27 = arith.select %24, %22, %26 : vector<1x256x64xi1>, vector<1x256x64xf32>
    %c0_14 = arith.constant 0 : index
    %c0_15 = arith.constant 0 : index
    %c0_16 = arith.constant 0 : index
    %28 = vector.load %arg4[%c0_14, %c0_15, %c0_16] : memref<1x256x64xf32, #tpu.memory_space<vmem>>, vector<1x256x64xf32>
    tpu.vector_store %arg4[%c0_14, %c0_15, %c0_16], %27 {strides = array<i32>} : memref<1x256x64xf32, #tpu.memory_space<vmem>>, vector<1x256x64xf32>,
    return
  }
  func.func @transform_0(%arg0: i32) -> (i32, i32, i32) {
    %c0_i32 = arith.constant 0 : i32
    %c0_i32_0 = arith.constant 0 : i32
    %c0_i32_1 = arith.constant 0 : i32
    return %arg0, %c0_i32, %c0_i32_0 : i32, i32, i32
  }
  func.func @transform_1(%arg0: i32) -> (i32, i32, i32) {
    %c0_i32 = arith.constant 0 : i32
    %c0_i32_0 = arith.constant 0 : i32
    %c0_i32_1 = arith.constant 0 : i32
    %c0_i32_2 = arith.constant 0 : i32
    return %c0_i32, %c0_i32_0, %c0_i32_1 : i32, i32, i32
  }
  func.func @transform_2(%arg0: i32) -> (i32, i32, i32) {
    %c0_i32 = arith.constant 0 : i32
    %c0_i32_0 = arith.constant 0 : i32
    %c0_i32_1 = arith.constant 0 : i32
    %c0_i32_2 = arith.constant 0 : i32
    return %c0_i32, %c0_i32_0, %c0_i32_1 : i32, i32, i32
  }
  func.func @transform_3(%arg0: i32) -> (i32, i32, i32) {
    %c0_i32 = arith.constant 0 : i32
    %c0_i32_0 = arith.constant 0 : i32
    %c0_i32_1 = arith.constant 0 : i32
    return %arg0, %c0_i32, %c0_i32_0 : i32, i32, i32
  }
}

module attributes {stable_mosaic.version = 11 : i64} {
  func.func @_mm_bias_kernel(%arg0: i32, %arg1: i32, %arg2: i32, %arg3: memref<128x640xbf16, #tpu.memory_space<vmem>>, %arg4: memref<640x128xbf16, #tpu.memory_space<vmem>>, %arg5: memref<1x128xf32, #tpu.memory_space<vmem>>, %arg6: memref<128x128xf32, #tpu.memory_space<vmem>>, %arg7: memref<128x128xf32, #tpu.memory_space<vmem>>) attributes {dimension_semantics = [#tpu.dimension_semantics<parallel>, #tpu.dimension_semantics<parallel>, #tpu.dimension_semantics<arbitrary>], iteration_bounds = array<i64: 4, 1, 1>, scalar_prefetch = 0 : i64, scratch_operands = 1 : i64, tpu.core_type = #tpu.core_type<tc>, window_params = [{transform_indices = @transform_0, window_bounds = array<i64: 128, 640>}, {transform_indices = @transform_1, window_bounds = array<i64: 640, 128>}, {transform_indices = @transform_2, window_bounds = array<i64: 1, 128>}, {transform_indices = @transform_3, window_bounds = array<i64: 128, 128>}]} {
    %c0_i32 = arith.constant 0 : i32
    %0 = arith.cmpi eq, %arg2, %c0_i32 : i32
    %1 = arith.extui %0 : i1 to i32
    %c0_i32_0 = arith.constant 0 : i32
    %2 = arith.cmpi ne, %1, %c0_i32_0 : i32
    scf.if %2 {
      %cst_10 = arith.constant 0.000000e+00 : f32
      %12 = vector.broadcast %cst_10 : f32 to vector<128x128xf32>
      %c0_11 = arith.constant 0 : index
      %c0_12 = arith.constant 0 : index
      %13 = vector.load %arg7[%c0_11, %c0_12] : memref<128x128xf32, #tpu.memory_space<vmem>>, vector<128x128xf32>
      tpu.vector_store %arg7[%c0_11, %c0_12], %12 {strides = array<i32>} : memref<128x128xf32, #tpu.memory_space<vmem>>, vector<128x128xf32>,
    } else {
    }
    %c0 = arith.constant 0 : index
    %c0_1 = arith.constant 0 : index
    %3 = vector.load %arg7[%c0, %c0_1] : memref<128x128xf32, #tpu.memory_space<vmem>>, vector<128x128xf32>
    %c0_2 = arith.constant 0 : index
    %c0_3 = arith.constant 0 : index
    %4 = vector.load %arg3[%c0_2, %c0_3] : memref<128x640xbf16, #tpu.memory_space<vmem>>, vector<128x640xbf16>
    %c0_4 = arith.constant 0 : index
    %c0_5 = arith.constant 0 : index
    %5 = vector.load %arg4[%c0_4, %c0_5] : memref<640x128xbf16, #tpu.memory_space<vmem>>, vector<640x128xbf16>
    %cst = arith.constant dense<0.000000e+00> : vector<128x128xf32>
    %6 = tpu.matmul %4, %5, %cst {dimension_numbers = #tpu.dot_dimension_numbers<[1], [0], [0], [1], [0, 0, 1, 1], [], []>} : vector<128x640xbf16>, vector<640x128xbf16>, vector<128x128xf32> -> vector<128x128xf32>
    %7 = arith.addf %3, %6 : vector<128x128xf32>
    %c0_6 = arith.constant 0 : index
    %c0_7 = arith.constant 0 : index
    %8 = vector.load %arg7[%c0_6, %c0_7] : memref<128x128xf32, #tpu.memory_space<vmem>>, vector<128x128xf32>
    tpu.vector_store %arg7[%c0_6, %c0_7], %7 {strides = array<i32>} : memref<128x128xf32, #tpu.memory_space<vmem>>, vector<128x128xf32>,
    %c0_i32_8 = arith.constant 0 : i32
    %9 = arith.cmpi eq, %arg2, %c0_i32_8 : i32
    %10 = arith.extui %9 : i1 to i32
    %c0_i32_9 = arith.constant 0 : i32
    %11 = arith.cmpi ne, %10, %c0_i32_9 : i32
    scf.if %11 {
      %c0_10 = arith.constant 0 : index
      %c0_11 = arith.constant 0 : index
      %12 = vector.load %arg7[%c0_10, %c0_11] : memref<128x128xf32, #tpu.memory_space<vmem>>, vector<128x128xf32>
      %c0_12 = arith.constant 0 : index
      %c0_13 = arith.constant 0 : index
      %13 = vector.load %arg5[%c0_12, %c0_13] : memref<1x128xf32, #tpu.memory_space<vmem>>, vector<1x128xf32>
      %14 = vector.broadcast %13 : vector<1x128xf32> to vector<128x128xf32>
      %15 = arith.addf %12, %14 : vector<128x128xf32>
      %c0_14 = arith.constant 0 : index
      %c0_15 = arith.constant 0 : index
      %16 = vector.load %arg6[%c0_14, %c0_15] : memref<128x128xf32, #tpu.memory_space<vmem>>, vector<128x128xf32>
      tpu.vector_store %arg6[%c0_14, %c0_15], %15 {strides = array<i32>} : memref<128x128xf32, #tpu.memory_space<vmem>>, vector<128x128xf32>,
    } else {
    }
    return
  }
  func.func @transform_0(%arg0: i32, %arg1: i32, %arg2: i32) -> (i32, i32) {
    %c0_i32 = arith.constant 0 : i32
    return %arg0, %arg2 : i32, i32
  }
  func.func @transform_1(%arg0: i32, %arg1: i32, %arg2: i32) -> (i32, i32) {
    %c0_i32 = arith.constant 0 : i32
    return %arg2, %arg1 : i32, i32
  }
  func.func @transform_2(%arg0: i32, %arg1: i32, %arg2: i32) -> (i32, i32) {
    %c0_i32 = arith.constant 0 : i32
    %c0_i32_0 = arith.constant 0 : i32
    return %c0_i32, %arg1 : i32, i32
  }
  func.func @transform_3(%arg0: i32, %arg1: i32, %arg2: i32) -> (i32, i32) {
    %c0_i32 = arith.constant 0 : i32
    return %arg0, %arg1 : i32, i32
  }
}

module attributes {stable_mosaic.version = 11 : i64} {
  func.func @_inorm_lrelu_kernel(%arg0: i32, %arg1: memref<1x64x64xf32, #tpu.memory_space<vmem>>, %arg2: memref<1x1x64xf32, #tpu.memory_space<vmem>>, %arg3: memref<1x1x64xf32, #tpu.memory_space<vmem>>, %arg4: memref<1x64x64xf32, #tpu.memory_space<vmem>>) attributes {dimension_semantics = [#tpu.dimension_semantics<parallel>], iteration_bounds = array<i64: 2>, scalar_prefetch = 0 : i64, scratch_operands = 0 : i64, tpu.core_type = #tpu.core_type<tc>, window_params = [{transform_indices = @transform_0, window_bounds = array<i64: 1, 64, 64>}, {pipeline_mode = #tpu.pipeline_mode<synchronous>, transform_indices = @transform_1, window_bounds = array<i64: 1, 1, 64>}, {pipeline_mode = #tpu.pipeline_mode<synchronous>, transform_indices = @transform_2, window_bounds = array<i64: 1, 1, 64>}, {transform_indices = @transform_3, window_bounds = array<i64: 1, 64, 64>}]} {
    %c0 = arith.constant 0 : index
    %c0_0 = arith.constant 0 : index
    %c0_1 = arith.constant 0 : index
    %0 = vector.load %arg1[%c0, %c0_0, %c0_1] : memref<1x64x64xf32, #tpu.memory_space<vmem>>, vector<1x64x64xf32>
    %cst = arith.constant dense<0.000000e+00> : vector<1x64xf32>
    %1 = vector.multi_reduction <add>, %0, %cst [1] : vector<1x64x64xf32> to vector<1x64xf32>
    %2 = vector.shape_cast %1 : vector<1x64xf32> to vector<1x1x64xf32>
    %cst_2 = arith.constant 6.400000e+01 : f32
    %3 = vector.broadcast %cst_2 : f32 to vector<1x1x64xf32>
    %4 = arith.divf %2, %3 : vector<1x1x64xf32>
    %5 = vector.broadcast %4 : vector<1x1x64xf32> to vector<1x64x64xf32>
    %6 = arith.subf %0, %5 : vector<1x64x64xf32>
    %7 = arith.mulf %6, %6 : vector<1x64x64xf32>
    %cst_3 = arith.constant dense<0.000000e+00> : vector<1x64xf32>
    %8 = vector.multi_reduction <add>, %7, %cst_3 [1] : vector<1x64x64xf32> to vector<1x64xf32>
    %9 = vector.shape_cast %8 : vector<1x64xf32> to vector<1x1x64xf32>
    %cst_4 = arith.constant 6.400000e+01 : f32
    %10 = vector.broadcast %cst_4 : f32 to vector<1x1x64xf32>
    %11 = arith.divf %9, %10 : vector<1x1x64xf32>
    %cst_5 = arith.constant 9.99999974E-6 : f32
    %12 = vector.broadcast %cst_5 : f32 to vector<1x1x64xf32>
    %13 = arith.addf %11, %12 : vector<1x1x64xf32>
    %14 = math.rsqrt %13 : vector<1x1x64xf32>
    %15 = vector.broadcast %14 : vector<1x1x64xf32> to vector<1x64x64xf32>
    %16 = arith.mulf %6, %15 : vector<1x64x64xf32>
    %c0_6 = arith.constant 0 : index
    %c0_7 = arith.constant 0 : index
    %c0_8 = arith.constant 0 : index
    %17 = vector.load %arg2[%c0_6, %c0_7, %c0_8] : memref<1x1x64xf32, #tpu.memory_space<vmem>>, vector<1x1x64xf32>
    %18 = vector.broadcast %17 : vector<1x1x64xf32> to vector<1x64x64xf32>
    %19 = arith.mulf %16, %18 : vector<1x64x64xf32>
    %c0_9 = arith.constant 0 : index
    %c0_10 = arith.constant 0 : index
    %c0_11 = arith.constant 0 : index
    %20 = vector.load %arg3[%c0_9, %c0_10, %c0_11] : memref<1x1x64xf32, #tpu.memory_space<vmem>>, vector<1x1x64xf32>
    %21 = vector.broadcast %20 : vector<1x1x64xf32> to vector<1x64x64xf32>
    %22 = arith.addf %19, %21 : vector<1x64x64xf32>
    %cst_12 = arith.constant 0.000000e+00 : f32
    %23 = vector.broadcast %cst_12 : f32 to vector<1x64x64xf32>
    %24 = arith.cmpf oge, %22, %23 : vector<1x64x64xf32>
    %cst_13 = arith.constant 2.000000e-01 : f32
    %25 = vector.broadcast %cst_13 : f32 to vector<1x64x64xf32>
    %26 = arith.mulf %25, %22 : vector<1x64x64xf32>
    %27 = arith.select %24, %22, %26 : vector<1x64x64xi1>, vector<1x64x64xf32>
    %c0_14 = arith.constant 0 : index
    %c0_15 = arith.constant 0 : index
    %c0_16 = arith.constant 0 : index
    %28 = vector.load %arg4[%c0_14, %c0_15, %c0_16] : memref<1x64x64xf32, #tpu.memory_space<vmem>>, vector<1x64x64xf32>
    tpu.vector_store %arg4[%c0_14, %c0_15, %c0_16], %27 {strides = array<i32>} : memref<1x64x64xf32, #tpu.memory_space<vmem>>, vector<1x64x64xf32>,
    return
  }
  func.func @transform_0(%arg0: i32) -> (i32, i32, i32) {
    %c0_i32 = arith.constant 0 : i32
    %c0_i32_0 = arith.constant 0 : i32
    %c0_i32_1 = arith.constant 0 : i32
    return %arg0, %c0_i32, %c0_i32_0 : i32, i32, i32
  }
  func.func @transform_1(%arg0: i32) -> (i32, i32, i32) {
    %c0_i32 = arith.constant 0 : i32
    %c0_i32_0 = arith.constant 0 : i32
    %c0_i32_1 = arith.constant 0 : i32
    %c0_i32_2 = arith.constant 0 : i32
    return %c0_i32, %c0_i32_0, %c0_i32_1 : i32, i32, i32
  }
  func.func @transform_2(%arg0: i32) -> (i32, i32, i32) {
    %c0_i32 = arith.constant 0 : i32
    %c0_i32_0 = arith.constant 0 : i32
    %c0_i32_1 = arith.constant 0 : i32
    %c0_i32_2 = arith.constant 0 : i32
    return %c0_i32, %c0_i32_0, %c0_i32_1 : i32, i32, i32
  }
  func.func @transform_3(%arg0: i32) -> (i32, i32, i32) {
    %c0_i32 = arith.constant 0 : i32
    %c0_i32_0 = arith.constant 0 : i32
    %c0_i32_1 = arith.constant 0 : i32
    return %arg0, %c0_i32, %c0_i32_0 : i32, i32, i32
  }
}

module attributes {stable_mosaic.version = 11 : i64} {
  func.func @_mm_bias_kernel(%arg0: i32, %arg1: i32, %arg2: i32, %arg3: memref<128x128xbf16, #tpu.memory_space<vmem>>, %arg4: memref<128x128xbf16, #tpu.memory_space<vmem>>, %arg5: memref<1x128xf32, #tpu.memory_space<vmem>>, %arg6: memref<128x128xf32, #tpu.memory_space<vmem>>, %arg7: memref<128x128xf32, #tpu.memory_space<vmem>>) attributes {dimension_semantics = [#tpu.dimension_semantics<parallel>, #tpu.dimension_semantics<parallel>, #tpu.dimension_semantics<arbitrary>], iteration_bounds = array<i64: 4, 1, 1>, scalar_prefetch = 0 : i64, scratch_operands = 1 : i64, tpu.core_type = #tpu.core_type<tc>, window_params = [{transform_indices = @transform_0, window_bounds = array<i64: 128, 128>}, {transform_indices = @transform_1, window_bounds = array<i64: 128, 128>}, {transform_indices = @transform_2, window_bounds = array<i64: 1, 128>}, {transform_indices = @transform_3, window_bounds = array<i64: 128, 128>}]} {
    %c0_i32 = arith.constant 0 : i32
    %0 = arith.cmpi eq, %arg2, %c0_i32 : i32
    %1 = arith.extui %0 : i1 to i32
    %c0_i32_0 = arith.constant 0 : i32
    %2 = arith.cmpi ne, %1, %c0_i32_0 : i32
    scf.if %2 {
      %cst_10 = arith.constant 0.000000e+00 : f32
      %12 = vector.broadcast %cst_10 : f32 to vector<128x128xf32>
      %c0_11 = arith.constant 0 : index
      %c0_12 = arith.constant 0 : index
      %13 = vector.load %arg7[%c0_11, %c0_12] : memref<128x128xf32, #tpu.memory_space<vmem>>, vector<128x128xf32>
      tpu.vector_store %arg7[%c0_11, %c0_12], %12 {strides = array<i32>} : memref<128x128xf32, #tpu.memory_space<vmem>>, vector<128x128xf32>,
    } else {
    }
    %c0 = arith.constant 0 : index
    %c0_1 = arith.constant 0 : index
    %3 = vector.load %arg7[%c0, %c0_1] : memref<128x128xf32, #tpu.memory_space<vmem>>, vector<128x128xf32>
    %c0_2 = arith.constant 0 : index
    %c0_3 = arith.constant 0 : index
    %4 = vector.load %arg3[%c0_2, %c0_3] : memref<128x128xbf16, #tpu.memory_space<vmem>>, vector<128x128xbf16>
    %c0_4 = arith.constant 0 : index
    %c0_5 = arith.constant 0 : index
    %5 = vector.load %arg4[%c0_4, %c0_5] : memref<128x128xbf16, #tpu.memory_space<vmem>>, vector<128x128xbf16>
    %cst = arith.constant dense<0.000000e+00> : vector<128x128xf32>
    %6 = tpu.matmul %4, %5, %cst {dimension_numbers = #tpu.dot_dimension_numbers<[1], [0], [0], [1], [0, 0, 1, 1], [], []>} : vector<128x128xbf16>, vector<128x128xbf16>, vector<128x128xf32> -> vector<128x128xf32>
    %7 = arith.addf %3, %6 : vector<128x128xf32>
    %c0_6 = arith.constant 0 : index
    %c0_7 = arith.constant 0 : index
    %8 = vector.load %arg7[%c0_6, %c0_7] : memref<128x128xf32, #tpu.memory_space<vmem>>, vector<128x128xf32>
    tpu.vector_store %arg7[%c0_6, %c0_7], %7 {strides = array<i32>} : memref<128x128xf32, #tpu.memory_space<vmem>>, vector<128x128xf32>,
    %c0_i32_8 = arith.constant 0 : i32
    %9 = arith.cmpi eq, %arg2, %c0_i32_8 : i32
    %10 = arith.extui %9 : i1 to i32
    %c0_i32_9 = arith.constant 0 : i32
    %11 = arith.cmpi ne, %10, %c0_i32_9 : i32
    scf.if %11 {
      %c0_10 = arith.constant 0 : index
      %c0_11 = arith.constant 0 : index
      %12 = vector.load %arg7[%c0_10, %c0_11] : memref<128x128xf32, #tpu.memory_space<vmem>>, vector<128x128xf32>
      %c0_12 = arith.constant 0 : index
      %c0_13 = arith.constant 0 : index
      %13 = vector.load %arg5[%c0_12, %c0_13] : memref<1x128xf32, #tpu.memory_space<vmem>>, vector<1x128xf32>
      %14 = vector.broadcast %13 : vector<1x128xf32> to vector<128x128xf32>
      %15 = arith.addf %12, %14 : vector<128x128xf32>
      %c0_14 = arith.constant 0 : index
      %c0_15 = arith.constant 0 : index
      %16 = vector.load %arg6[%c0_14, %c0_15] : memref<128x128xf32, #tpu.memory_space<vmem>>, vector<128x128xf32>
      tpu.vector_store %arg6[%c0_14, %c0_15], %15 {strides = array<i32>} : memref<128x128xf32, #tpu.memory_space<vmem>>, vector<128x128xf32>,
    } else {
    }
    return
  }
  func.func @transform_0(%arg0: i32, %arg1: i32, %arg2: i32) -> (i32, i32) {
    %c0_i32 = arith.constant 0 : i32
    return %arg0, %arg2 : i32, i32
  }
  func.func @transform_1(%arg0: i32, %arg1: i32, %arg2: i32) -> (i32, i32) {
    %c0_i32 = arith.constant 0 : i32
    return %arg2, %arg1 : i32, i32
  }
  func.func @transform_2(%arg0: i32, %arg1: i32, %arg2: i32) -> (i32, i32) {
    %c0_i32 = arith.constant 0 : i32
    %c0_i32_0 = arith.constant 0 : i32
    return %c0_i32, %arg1 : i32, i32
  }
  func.func @transform_3(%arg0: i32, %arg1: i32, %arg2: i32) -> (i32, i32) {
    %c0_i32 = arith.constant 0 : i32
    return %arg0, %arg1 : i32, i32
  }
}

module attributes {stable_mosaic.version = 11 : i64} {
  func.func @_mm_bias_res_kernel(%arg0: i32, %arg1: i32, %arg2: i32, %arg3: memref<128x640xbf16, #tpu.memory_space<vmem>>, %arg4: memref<640x128xbf16, #tpu.memory_space<vmem>>, %arg5: memref<1x128xf32, #tpu.memory_space<vmem>>, %arg6: memref<128x128xf32, #tpu.memory_space<vmem>>, %arg7: memref<128x128xf32, #tpu.memory_space<vmem>>, %arg8: memref<128x128xf32, #tpu.memory_space<vmem>>) attributes {dimension_semantics = [#tpu.dimension_semantics<parallel>, #tpu.dimension_semantics<parallel>, #tpu.dimension_semantics<arbitrary>], iteration_bounds = array<i64: 1, 1, 1>, scalar_prefetch = 0 : i64, scratch_operands = 1 : i64, tpu.core_type = #tpu.core_type<tc>, window_params = [{transform_indices = @transform_0, window_bounds = array<i64: 128, 640>}, {transform_indices = @transform_1, window_bounds = array<i64: 640, 128>}, {transform_indices = @transform_2, window_bounds = array<i64: 1, 128>}, {transform_indices = @transform_3, window_bounds = array<i64: 128, 128>}, {transform_indices = @transform_4, window_bounds = array<i64: 128, 128>}]} {
    %c0_i32 = arith.constant 0 : i32
    %0 = arith.cmpi eq, %arg2, %c0_i32 : i32
    %1 = arith.extui %0 : i1 to i32
    %c0_i32_0 = arith.constant 0 : i32
    %2 = arith.cmpi ne, %1, %c0_i32_0 : i32
    scf.if %2 {
      %cst_10 = arith.constant 0.000000e+00 : f32
      %12 = vector.broadcast %cst_10 : f32 to vector<128x128xf32>
      %c0_11 = arith.constant 0 : index
      %c0_12 = arith.constant 0 : index
      %13 = vector.load %arg8[%c0_11, %c0_12] : memref<128x128xf32, #tpu.memory_space<vmem>>, vector<128x128xf32>
      tpu.vector_store %arg8[%c0_11, %c0_12], %12 {strides = array<i32>} : memref<128x128xf32, #tpu.memory_space<vmem>>, vector<128x128xf32>,
    } else {
    }
    %c0 = arith.constant 0 : index
    %c0_1 = arith.constant 0 : index
    %3 = vector.load %arg8[%c0, %c0_1] : memref<128x128xf32, #tpu.memory_space<vmem>>, vector<128x128xf32>
    %c0_2 = arith.constant 0 : index
    %c0_3 = arith.constant 0 : index
    %4 = vector.load %arg3[%c0_2, %c0_3] : memref<128x640xbf16, #tpu.memory_space<vmem>>, vector<128x640xbf16>
    %c0_4 = arith.constant 0 : index
    %c0_5 = arith.constant 0 : index
    %5 = vector.load %arg4[%c0_4, %c0_5] : memref<640x128xbf16, #tpu.memory_space<vmem>>, vector<640x128xbf16>
    %cst = arith.constant dense<0.000000e+00> : vector<128x128xf32>
    %6 = tpu.matmul %4, %5, %cst {dimension_numbers = #tpu.dot_dimension_numbers<[1], [0], [0], [1], [0, 0, 1, 1], [], []>} : vector<128x640xbf16>, vector<640x128xbf16>, vector<128x128xf32> -> vector<128x128xf32>
    %7 = arith.addf %3, %6 : vector<128x128xf32>
    %c0_6 = arith.constant 0 : index
    %c0_7 = arith.constant 0 : index
    %8 = vector.load %arg8[%c0_6, %c0_7] : memref<128x128xf32, #tpu.memory_space<vmem>>, vector<128x128xf32>
    tpu.vector_store %arg8[%c0_6, %c0_7], %7 {strides = array<i32>} : memref<128x128xf32, #tpu.memory_space<vmem>>, vector<128x128xf32>,
    %c0_i32_8 = arith.constant 0 : i32
    %9 = arith.cmpi eq, %arg2, %c0_i32_8 : i32
    %10 = arith.extui %9 : i1 to i32
    %c0_i32_9 = arith.constant 0 : i32
    %11 = arith.cmpi ne, %10, %c0_i32_9 : i32
    scf.if %11 {
      %c0_10 = arith.constant 0 : index
      %c0_11 = arith.constant 0 : index
      %12 = vector.load %arg8[%c0_10, %c0_11] : memref<128x128xf32, #tpu.memory_space<vmem>>, vector<128x128xf32>
      %c0_12 = arith.constant 0 : index
      %c0_13 = arith.constant 0 : index
      %13 = vector.load %arg5[%c0_12, %c0_13] : memref<1x128xf32, #tpu.memory_space<vmem>>, vector<1x128xf32>
      %14 = vector.broadcast %13 : vector<1x128xf32> to vector<128x128xf32>
      %15 = arith.addf %12, %14 : vector<128x128xf32>
      %c0_14 = arith.constant 0 : index
      %c0_15 = arith.constant 0 : index
      %16 = vector.load %arg6[%c0_14, %c0_15] : memref<128x128xf32, #tpu.memory_space<vmem>>, vector<128x128xf32>
      %17 = arith.addf %15, %16 : vector<128x128xf32>
      %cst_16 = arith.constant 0.707106769 : f32
      %18 = vector.broadcast %cst_16 : f32 to vector<128x128xf32>
      %19 = arith.mulf %17, %18 : vector<128x128xf32>
      %c0_17 = arith.constant 0 : index
      %c0_18 = arith.constant 0 : index
      %20 = vector.load %arg7[%c0_17, %c0_18] : memref<128x128xf32, #tpu.memory_space<vmem>>, vector<128x128xf32>
      tpu.vector_store %arg7[%c0_17, %c0_18], %19 {strides = array<i32>} : memref<128x128xf32, #tpu.memory_space<vmem>>, vector<128x128xf32>,
    } else {
    }
    return
  }
  func.func @transform_0(%arg0: i32, %arg1: i32, %arg2: i32) -> (i32, i32) {
    %c0_i32 = arith.constant 0 : i32
    return %arg0, %arg2 : i32, i32
  }
  func.func @transform_1(%arg0: i32, %arg1: i32, %arg2: i32) -> (i32, i32) {
    %c0_i32 = arith.constant 0 : i32
    return %arg2, %arg1 : i32, i32
  }
  func.func @transform_2(%arg0: i32, %arg1: i32, %arg2: i32) -> (i32, i32) {
    %c0_i32 = arith.constant 0 : i32
    %c0_i32_0 = arith.constant 0 : i32
    return %c0_i32, %arg1 : i32, i32
  }
  func.func @transform_3(%arg0: i32, %arg1: i32, %arg2: i32) -> (i32, i32) {
    %c0_i32 = arith.constant 0 : i32
    return %arg0, %arg1 : i32, i32
  }
  func.func @transform_4(%arg0: i32, %arg1: i32, %arg2: i32) -> (i32, i32) {
    %c0_i32 = arith.constant 0 : i32
    return %arg0, %arg1 : i32, i32
  }
}

</mosaic_0001>

<llo_original>
// kernel: _lambda_.6
$region0: #{_lambda_.6}
  #allocation0 [shape = 'u32[]', space=smem, size = 0x4, offset = 0x4, fixed_abs, tag = 'smem constant byte address 0x4 - core index']
  #allocation1 [shape = 'u32[144,128]{1,0:T(1,128)}', space=vmem, size = 0x12000, scoped, tag = 'internal scratch']
  %s0 = inlined_call_operand.hbm [shape: f32[2,256,64], index: 0, kind: input, shape index: {}]
  %s1 = inlined_call_operand.vmem [shape: f32[1,1,64], index: 1, kind: input, shape index: {}]
  %s2 = inlined_call_operand.vmem [shape: f32[1,1,64], index: 2, kind: input, shape index: {}]
  %s3 = inlined_call_operand.vmem [shape: f32[2,256,64], index: 3, kind: output, shape index: {}]
  %s4 = sld [smem:[#allocation0]]
  $region49: #{_lambda_.6} parent=0
    _
  %s6 = ssub.s32 1, %s4
  %s7 = scalar_select 0, %s6, %s4
  $region1: #{_lambda_.6} parent=0
    #allocation2 [shape = 'u8[262144]{0}', space=vmem, size = 0x40000, scoped, tag = 'input window, operand 0']
    #allocation3 [shape = 's32[2]{0}', space=sflag, size = 0x8, scoped, tag = 'scoped memory for _lambda_.6']
    %8 = vsyncpa [#allocation3], 0
    %s9 = scalar_lea.sflag [#allocation3], 1
    %10 = vsyncpa %s9, 0
    loop: start=0, step=1, limit=4
    $region2: #{_lambda_.6} parent=1 // loop_pre_header
      _
    $region3: #{_lambda_.6} parent=1 // loop_header
      %s12 = sphi 0, %s16
      %p13 = scmp.ge.s32.totalorder %s12, 4
      %s22 = sphi 0, %s24
      %s25 = sphi 0, %s22
      %s26 = sphi 0, %s25
      %s42 = sphi 0, %s26
      %s46 = sphi 0, %s46
      %s48 = sphi 0, %s46
      %s49 = sphi 0, %s48
      %s63 = sphi 0, %s49
      %s67 = sphi 0, %s67
      %s69 = sphi 0, %s67
      %s70 = sphi 0, %s69
      %s84 = sphi 0, %s70
      %s90 = sphi 0, %s92
      %s93 = sphi 0, %s90
      %s94 = sphi 0, %s93
      %s110 = sphi 0, %s94
    $region4: #{_lambda_.6} parent=1 // loop_header_branch
      %15 = sbr.rel (%p13) target = $region8
    $region5: #{_lambda_.6} parent=1 // loop_body
      %s17 = ssub.s32 %s12, 1
      %s18 = ssub.s32 %s12, 2
      %s19 = sadd.s32 %s12, 1
      %s20 = ssub.s32 %s12, %s19
      %p21 = scmp.eq.s32.totalorder %s20, 0
      %s23 = sadd.s32 %s22, 1
      %s24 = scalar_select %p21, %s22, %s23
      %p27 = pneg %p21
      %p28 = scmp.eq.s32.totalorder %s12, 1
      %p29 = por %p27, %p28
      %p30 = scmp.ne.s32.totalorder %s22, %s25
      %p31 = scmp.eq.s32.totalorder %s12, 0
      %p32 = por %p30, %p31
      %p33 = scmp.ne.s32.totalorder %s22, %s25
      %p34 = scmp.eq.s32.totalorder %s17, 1
      %p35 = por %p33, %p34
      %p36 = scmp.ne.s32.totalorder %s25, %s26
      %p37 = scmp.eq.s32.totalorder %s17, 0
      %p38 = por %p36, %p37
      %p39 = scmp.ne.s32.totalorder %s25, %s26
      %p40 = scmp.eq.s32.totalorder %s18, 1
      %p41 = por %p39, %p40
      %p43 = scmp.ne.s32.totalorder %s26, %s42
      %p44 = scmp.eq.s32.totalorder %s18, 0
      %p45 = por %p43, %p44
      %s47 = sadd.s32 %s46, 1
      %p50 = scmp.eq.s32.totalorder %s12, 1
      %p51 = scmp.ne.s32.totalorder %s46, %s48
      %p52 = scmp.eq.s32.totalorder %s12, 0
      %p53 = por %p51, %p52
      %p54 = scmp.ne.s32.totalorder %s46, %s48
      %p55 = scmp.eq.s32.totalorder %s17, 1
      %p56 = por %p54, %p55
      %p57 = scmp.ne.s32.totalorder %s48, %s49
      %p58 = scmp.eq.s32.totalorder %s17, 0
      %p59 = por %p57, %p58
      %p60 = scmp.ne.s32.totalorder %s48, %s49
      %p61 = scmp.eq.s32.totalorder %s18, 1
      %p62 = por %p60, %p61
      %p64 = scmp.ne.s32.totalorder %s49, %s63
      %p65 = scmp.eq.s32.totalorder %s18, 0
      %p66 = por %p64, %p65
      %s68 = sadd.s32 %s67, 1
      %p71 = scmp.eq.s32.totalorder %s12, 1
      %p72 = scmp.ne.s32.totalorder %s67, %s69
      %p73 = scmp.eq.s32.totalorder %s12, 0
      %p74 = por %p72, %p73
      %p75 = scmp.ne.s32.totalorder %s67, %s69
      %p76 = scmp.eq.s32.totalorder %s17, 1
      %p77 = por %p75, %p76
      %p78 = scmp.ne.s32.totalorder %s69, %s70
      %p79 = scmp.eq.s32.totalorder %s17, 0
      %p80 = por %p78, %p79
      %p81 = scmp.ne.s32.totalorder %s69, %s70
      %p82 = scmp.eq.s32.totalorder %s18, 1
      %p83 = por %p81, %p82
      %p85 = scmp.ne.s32.totalorder %s70, %s84
      %p86 = scmp.eq.s32.totalorder %s18, 0
      %p87 = por %p85, %p86
      %s88 = ssub.s32 %s12, %s19
      %p89 = scmp.eq.s32.totalorder %s88, 0
      %s91 = sadd.s32 %s90, 1
      %s92 = scalar_select %p89, %s90, %s91
      %p95 = pneg %p89
      %p96 = scmp.eq.s32.totalorder %s12, 1
      %p97 = por %p95, %p96
      %p98 = scmp.ne.s32.totalorder %s90, %s93
      %p99 = scmp.eq.s32.totalorder %s12, 0
      %p100 = por %p98, %p99
      %p101 = scmp.ne.s32.totalorder %s90, %s93
      %p102 = scmp.eq.s32.totalorder %s17, 1
      %p103 = por %p101, %p102
      %p104 = scmp.ne.s32.totalorder %s93, %s94
      %p105 = scmp.eq.s32.totalorder %s17, 0
      %p106 = por %p104, %p105
      %p107 = scmp.ne.s32.totalorder %s93, %s94
      %p108 = scmp.eq.s32.totalorder %s18, 1
      %p109 = por %p107, %p108
      %p111 = scmp.ne.s32.totalorder %s94, %s110
      %p112 = scmp.eq.s32.totalorder %s18, 0
      %p113 = por %p111, %p112
      %p114 = scmp.le.s32.totalorder 1, %s12
      %p115 = scmp.lt.s32.totalorder %s12, 3
      %p116 = pnand %p114, %p115
      %p117 = pneg %p116
      // Predicated region
      $region9: #{_lambda_.6} parent=5 // pred_check
        _
      $region10: #{_lambda_.6} parent=5 // pred_check_branch
        %119 = sbr.rel (%p116) target = $region12
      $region11: #{_lambda_.6} parent=5 // pred_region
        %s120 = ssub.s32 %s12, 1
        // Predicated region
        $region13: #{_lambda_.6} parent=11 // pred_check
          %p121 = pneg %p59
        $region14: #{_lambda_.6} parent=11 // pred_check_branch
          %123 = sbr.rel (%p121) target = $region16
        $region15: #{_lambda_.6} parent=11 // pred_region
          _
        $region16: #{_lambda_.6} parent=11 // pred_fallthru
          _
        // Predicated region
        $region17: #{_lambda_.6} parent=11 // pred_check
          %p124 = pneg %p80
        $region18: #{_lambda_.6} parent=11 // pred_check_branch
          %126 = sbr.rel (%p124) target = $region20
        $region19: #{_lambda_.6} parent=11 // pred_region
          _
        $region20: #{_lambda_.6} parent=11 // pred_fallthru
          _
      $region12: #{_lambda_.6} parent=5 // pred_fallthru
        _
      %p127 = scmp.lt.s32.totalorder %s12, 2
      // Predicated region
      $region21: #{_lambda_.6} parent=5 // pred_check
        %p128 = pneg %p127
      $region22: #{_lambda_.6} parent=5 // pred_check_branch
        %130 = sbr.rel (%p128) target = $region24
      $region23: #{_lambda_.6} parent=5 // pred_region
        // Predicated region
        $region25: #{_lambda_.6} parent=23 // pred_check
          %p131 = pneg %p32
        $region26: #{_lambda_.6} parent=23 // pred_check_branch
          %133 = sbr.rel (%p131) target = $region28
        $region27: #{_lambda_.6} parent=23 // pred_region
          %s134 = sand.u32 %s22, 1
          %s135 = scalar_lea.sflag [#allocation3], %s134
          %s136 = sand.u32 %s22, 1
          %s137 = smul.addr %s136, 256
          %s138 = scalar_lea.vmem [#allocation2], %s137
          %s140 = ssub.s32 4096, 4096
          %141 = vsyncadd %s135, %s140
          %s142 = smul.addr %s12, 32
          %s143 = smul.addr %s142, 128
          %s144 = scalar_lea.hbm %s0, %s143
          %s145 = sshll.u32 %s138, 4
          %s146 = int_to_ptr.vmem [resolvable:$true] %s145
          %151 = dma.hbm_to_vmem [thread:$0]  %s144, 4096, %s146, %s135, 128, 128, 8
        $region28: #{_lambda_.6} parent=23 // pred_fallthru
          _
      $region24: #{_lambda_.6} parent=5 // pred_fallthru
        _
      %p152 = scmp.le.s32.totalorder 1, %s12
      %p153 = scmp.lt.s32.totalorder %s12, 3
      %p154 = pnand %p152, %p153
      %p155 = pneg %p154
      // Predicated region
      $region29: #{_lambda_.6} parent=5 // pred_check
        _
      $region30: #{_lambda_.6} parent=5 // pred_check_branch
        %157 = sbr.rel (%p154) target = $region32
      $region31: #{_lambda_.6} parent=5 // pred_region
        %s158 = ssub.s32 %s12, 1
        %s159 = sand.u32 %s25, 1
        %s160 = scalar_lea.sflag [#allocation3], %s159
        %s161 = sand.u32 %s25, 1
        %s162 = smul.addr %s161, 256
        %s163 = scalar_lea.vmem [#allocation2], %s162
        // Predicated region
        $region33: #{_lambda_.6} parent=31 // pred_check
          %p164 = pneg %p38
        $region34: #{_lambda_.6} parent=31 // pred_check_branch
          %166 = sbr.rel (%p164) target = $region36
        $region35: #{_lambda_.6} parent=31 // pred_region
          %167 = dma.done %s160, 4096
        $region36: #{_lambda_.6} parent=31 // pred_fallthru
          _
        %s168 = sand.u32 %s25, 1
        %s169 = scalar_lea.sflag [#allocation3], %s168
        %s170 = sand.u32 %s25, 1
        %s171 = smul.addr %s170, 256
        %s172 = scalar_lea.vmem [#allocation2], %s171
        %p173 = pneg %p38
        %p174 = pneg %p35
        %p175 = pneg %p59
        %p176 = pneg %p56
        %p177 = pneg %p80
        %p178 = pneg %p77
        %p179 = pneg %p106
        %p180 = pneg %p103
        %p181 = scmp.lt.s32.totalorder %s17, 1
        %s182 = scalar_select %p181, %s17, 1
        %s183 = smul.addr %s182, 32
        %s184 = smul.addr %s183, 8
        %s185 = scalar_lea.vmem %s3, %s184
        %p186 = scmp.lt.s32.totalorder %s17, 1
        %s187 = scalar_select %p186, %s17, 1
        %s188 = smul.addr %s187, 32
        %s189 = smul.addr %s188, 8
        %s190 = scalar_lea.vmem %s3, %s189
        %v191 = vld [vmem:[%s163] sm:$0xff]
        %v192 = vld [vmem:[%s163 + $0x8] sm:$0xff]
        %v193 = vld [vmem:[%s163 + $0x10] sm:$0xff]
        %v194 = vld [vmem:[%s163 + $0x18] sm:$0xff]
        %v195 = vld [vmem:[%s163 + $0x20] sm:$0xff]
        %v196 = vld [vmem:[%s163 + $0x28] sm:$0xff]
        %v197 = vld [vmem:[%s163 + $0x30] sm:$0xff]
        %v198 = vld [vmem:[%s163 + $0x38] sm:$0xff]
        %v199 = vld [vmem:[%s163 + $0x40] sm:$0xff]
        %v200 = vld [vmem:[%s163 + $0x48] sm:$0xff]
        %v201 = vld [vmem:[%s163 + $0x50] sm:$0xff]
        %v202 = vld [vmem:[%s163 + $0x58] sm:$0xff]
        %v203 = vld [vmem:[%s163 + $0x60] sm:$0xff]
        %v204 = vld [vmem:[%s163 + $0x68] sm:$0xff]
        %v205 = vld [vmem:[%s163 + $0x70] sm:$0xff]
        %v206 = vld [vmem:[%s163 + $0x78] sm:$0xff]
        %v207 = vld [vmem:[%s163 + $0x80] sm:$0xff]
        %v208 = vld [vmem:[%s163 + $0x88] sm:$0xff]
        %v209 = vld [vmem:[%s163 + $0x90] sm:$0xff]
        %v210 = vld [vmem:[%s163 + $0x98] sm:$0xff]
        %v211 = vld [vmem:[%s163 + $0xa0] sm:$0xff]
        %v212 = vld [vmem:[%s163 + $0xa8] sm:$0xff]
        %v213 = vld [vmem:[%s163 + $0xb0] sm:$0xff]
        %v214 = vld [vmem:[%s163 + $0xb8] sm:$0xff]
        %v215 = vld [vmem:[%s163 + $0xc0] sm:$0xff]
        %v216 = vld [vmem:[%s163 + $0xc8] sm:$0xff]
        %v217 = vld [vmem:[%s163 + $0xd0] sm:$0xff]
        %v218 = vld [vmem:[%s163 + $0xd8] sm:$0xff]
        %v219 = vld [vmem:[%s163 + $0xe0] sm:$0xff]
        %v220 = vld [vmem:[%s163 + $0xe8] sm:$0xff]
        %v221 = vld [vmem:[%s163 + $0xf0] sm:$0xff]
        %v222 = vld [vmem:[%s163 + $0xf8] sm:$0xff]
        %vm223 = vcmask 523264
        %v224 = vsel %vm223, %v191, 0.0
        %v225 = vsel %vm223, %v192, 0.0
        %v226 = vadd.f32 %v224, %v225
        %v227 = vsel %vm223, %v193, 0.0
        %v228 = vadd.f32 %v226, %v227
        %v229 = vsel %vm223, %v194, 0.0
        %v230 = vadd.f32 %v228, %v229
        %v231 = vsel %vm223, %v195, 0.0
        %v232 = vadd.f32 %v230, %v231
        %v233 = vsel %vm223, %v196, 0.0
        %v234 = vadd.f32 %v232, %v233
        %v235 = vsel %vm223, %v197, 0.0
        %v236 = vadd.f32 %v234, %v235
        %v237 = vsel %vm223, %v198, 0.0
        %v238 = vadd.f32 %v236, %v237
        %v239 = vsel %vm223, %v199, 0.0
        %v240 = vadd.f32 %v238, %v239
        %v241 = vsel %vm223, %v200, 0.0
        %v242 = vadd.f32 %v240, %v241
        %v243 = vsel %vm223, %v201, 0.0
        %v244 = vadd.f32 %v242, %v243
        %v245 = vsel %vm223, %v202, 0.0
        %v246 = vadd.f32 %v244, %v245
        %v247 = vsel %vm223, %v203, 0.0
        %v248 = vadd.f32 %v246, %v247
        %v249 = vsel %vm223, %v204, 0.0
        %v250 = vadd.f32 %v248, %v249
        %v251 = vsel %vm223, %v205, 0.0
        %v252 = vadd.f32 %v250, %v251
        %v253 = vsel %vm223, %v206, 0.0
        %v254 = vadd.f32 %v252, %v253
        %v255 = vsel %vm223, %v207, 0.0
        %v256 = vadd.f32 %v254, %v255
        %v257 = vsel %vm223, %v208, 0.0
        %v258 = vadd.f32 %v256, %v257
        %v259 = vsel %vm223, %v209, 0.0
        %v260 = vadd.f32 %v258, %v259
        %v261 = vsel %vm223, %v210, 0.0
        %v262 = vadd.f32 %v260, %v261
        %v263 = vsel %vm223, %v211, 0.0
        %v264 = vadd.f32 %v262, %v263
        %v265 = vsel %vm223, %v212, 0.0
        %v266 = vadd.f32 %v264, %v265
        %v267 = vsel %vm223, %v213, 0.0
        %v268 = vadd.f32 %v266, %v267
        %v269 = vsel %vm223, %v214, 0.0
        %v270 = vadd.f32 %v268, %v269
        %v271 = vsel %vm223, %v215, 0.0
        %v272 = vadd.f32 %v270, %v271
        %v273 = vsel %vm223, %v216, 0.0
        %v274 = vadd.f32 %v272, %v273
        %v275 = vsel %vm223, %v217, 0.0
        %v276 = vadd.f32 %v274, %v275
        %v277 = vsel %vm223, %v218, 0.0
        %v278 = vadd.f32 %v276, %v277
        %v279 = vsel %vm223, %v219, 0.0
        %v280 = vadd.f32 %v278, %v279
        %v281 = vsel %vm223, %v220, 0.0
        %v282 = vadd.f32 %v280, %v281
        %v283 = vsel %vm223, %v221, 0.0
        %v284 = vadd.f32 %v282, %v283
        %v285 = vsel %vm223, %v222, 0.0
        %v286 = vadd.f32 %v284, %v285
        %v287 = vrot.slane %v286, 4
        %v288 = vadd.f32 %v286, %v287
        %v289 = vrot.slane %v288, 2
        %v290 = vadd.f32 %v288, %v289
        %v291 = vrot.slane %v290, 1
        %v292 = vadd.f32 %v290, %v291
        %v293 = vrcp.pop 256.0
        %v294 = vmul.f32 %v292, %v293
        %v295 = vsub.f32 %v191, %v294
        %v296 = vsub.f32 %v192, %v294
        %v297 = vsub.f32 %v193, %v294
        %v298 = vsub.f32 %v194, %v294
        %v299 = vsub.f32 %v195, %v294
        %v300 = vsub.f32 %v196, %v294
        %v301 = vsub.f32 %v197, %v294
        %v302 = vsub.f32 %v198, %v294
        %v303 = vsub.f32 %v199, %v294
        %v304 = vsub.f32 %v200, %v294
        %v305 = vsub.f32 %v201, %v294
        %v306 = vsub.f32 %v202, %v294
        %v307 = vsub.f32 %v203, %v294
        %v308 = vsub.f32 %v204, %v294
        %v309 = vsub.f32 %v205, %v294
        %v310 = vsub.f32 %v206, %v294
        %v311 = vsub.f32 %v207, %v294
        %v312 = vsub.f32 %v208, %v294
        %v313 = vsub.f32 %v209, %v294
        %v314 = vsub.f32 %v210, %v294
        %v315 = vsub.f32 %v211, %v294
        %v316 = vsub.f32 %v212, %v294
        %v317 = vsub.f32 %v213, %v294
        %v318 = vsub.f32 %v214, %v294
        %v319 = vsub.f32 %v215, %v294
        %v320 = vsub.f32 %v216, %v294
        %v321 = vsub.f32 %v217, %v294
        %v322 = vsub.f32 %v218, %v294
        %v323 = vsub.f32 %v219, %v294
        %v324 = vsub.f32 %v220, %v294
        %v325 = vsub.f32 %v221, %v294
        %v326 = vsub.f32 %v222, %v294
        %v327 = vmul.f32 %v295, %v295
        %v328 = vmul.f32 %v296, %v296
        %v329 = vmul.f32 %v297, %v297
        %v330 = vmul.f32 %v298, %v298
        %v331 = vmul.f32 %v299, %v299
        %v332 = vmul.f32 %v300, %v300
        %v333 = vmul.f32 %v301, %v301
        %v334 = vmul.f32 %v302, %v302
        %v335 = vmul.f32 %v303, %v303
        %v336 = vmul.f32 %v304, %v304
        %v337 = vmul.f32 %v305, %v305
        %v338 = vmul.f32 %v306, %v306
        %v339 = vmul.f32 %v307, %v307
        %v340 = vmul.f32 %v308, %v308
        %v341 = vmul.f32 %v309, %v309
        %v342 = vmul.f32 %v310, %v310
        %v343 = vmul.f32 %v311, %v311
        %v344 = vmul.f32 %v312, %v312
        %v345 = vmul.f32 %v313, %v313
        %v346 = vmul.f32 %v314, %v314
        %v347 = vmul.f32 %v315, %v315
        %v348 = vmul.f32 %v316, %v316
        %v349 = vmul.f32 %v317, %v317
        %v350 = vmul.f32 %v318, %v318
        %v351 = vmul.f32 %v319, %v319
        %v352 = vmul.f32 %v320, %v320
        %v353 = vmul.f32 %v321, %v321
        %v354 = vmul.f32 %v322, %v322
        %v355 = vmul.f32 %v323, %v323
        %v356 = vmul.f32 %v324, %v324
        %v357 = vmul.f32 %v325, %v325
        %v358 = vmul.f32 %v326, %v326
        %v359 = vsel %vm223, %v327, 0.0
        %v360 = vsel %vm223, %v328, 0.0
        %v361 = vadd.f32 %v359, %v360
        %v362 = vsel %vm223, %v329, 0.0
        %v363 = vadd.f32 %v361, %v362
        %v364 = vsel %vm223, %v330, 0.0
        %v365 = vadd.f32 %v363, %v364
        %v366 = vsel %vm223, %v331, 0.0
        %v367 = vadd.f32 %v365, %v366
        %v368 = vsel %vm223, %v332, 0.0
        %v369 = vadd.f32 %v367, %v368
        %v370 = vsel %vm223, %v333, 0.0
        %v371 = vadd.f32 %v369, %v370
        %v372 = vsel %vm223, %v334, 0.0
        %v373 = vadd.f32 %v371, %v372
        %v374 = vsel %vm223, %v335, 0.0
        %v375 = vadd.f32 %v373, %v374
        %v376 = vsel %vm223, %v336, 0.0
        %v377 = vadd.f32 %v375, %v376
        %v378 = vsel %vm223, %v337, 0.0
        %v379 = vadd.f32 %v377, %v378
        %v380 = vsel %vm223, %v338, 0.0
        %v381 = vadd.f32 %v379, %v380
        %v382 = vsel %vm223, %v339, 0.0
        %v383 = vadd.f32 %v381, %v382
        %v384 = vsel %vm223, %v340, 0.0
        %v385 = vadd.f32 %v383, %v384
        %v386 = vsel %vm223, %v341, 0.0
        %v387 = vadd.f32 %v385, %v386
        %v388 = vsel %vm223, %v342, 0.0
        %v389 = vadd.f32 %v387, %v388
        %v390 = vsel %vm223, %v343, 0.0
        %v391 = vadd.f32 %v389, %v390
        %v392 = vsel %vm223, %v344, 0.0
        %v393 = vadd.f32 %v391, %v392
        %v394 = vsel %vm223, %v345, 0.0
        %v395 = vadd.f32 %v393, %v394
        %v396 = vsel %vm223, %v346, 0.0
        %v397 = vadd.f32 %v395, %v396
        %v398 = vsel %vm223, %v347, 0.0
        %v399 = vadd.f32 %v397, %v398
        %v400 = vsel %vm223, %v348, 0.0
        %v401 = vadd.f32 %v399, %v400
        %v402 = vsel %vm223, %v349, 0.0
        %v403 = vadd.f32 %v401, %v402
        %v404 = vsel %vm223, %v350, 0.0
        %v405 = vadd.f32 %v403, %v404
        %v406 = vsel %vm223, %v351, 0.0
        %v407 = vadd.f32 %v405, %v406
        %v408 = vsel %vm223, %v352, 0.0
        %v409 = vadd.f32 %v407, %v408
        %v410 = vsel %vm223, %v353, 0.0
        %v411 = vadd.f32 %v409, %v410
        %v412 = vsel %vm223, %v354, 0.0
        %v413 = vadd.f32 %v411, %v412
        %v414 = vsel %vm223, %v355, 0.0
        %v415 = vadd.f32 %v413, %v414
        %v416 = vsel %vm223, %v356, 0.0
        %v417 = vadd.f32 %v415, %v416
        %v418 = vsel %vm223, %v357, 0.0
        %v419 = vadd.f32 %v417, %v418
        %v420 = vsel %vm223, %v358, 0.0
        %v421 = vadd.f32 %v419, %v420
        %v422 = vrot.slane %v421, 4
        %v423 = vadd.f32 %v421, %v422
        %v424 = vrot.slane %v423, 2
        %v425 = vadd.f32 %v423, %v424
        %v426 = vrot.slane %v425, 1
        %v427 = vadd.f32 %v425, %v426
        %v428 = vmul.f32 %v427, %v293
        %v429 = vadd.f32 %v428, 1e-05
        %v430 = vrsqrt.pop %v429
        %v431 = vmul.f32 %v295, %v430
        %v432 = vmul.f32 %v296, %v430
        %v433 = vmul.f32 %v297, %v430
        %v434 = vmul.f32 %v298, %v430
        %v435 = vmul.f32 %v299, %v430
        %v436 = vmul.f32 %v300, %v430
        %v437 = vmul.f32 %v301, %v430
        %v438 = vmul.f32 %v302, %v430
        %v439 = vmul.f32 %v303, %v430
        %v440 = vmul.f32 %v304, %v430
        %v441 = vmul.f32 %v305, %v430
        %v442 = vmul.f32 %v306, %v430
        %v443 = vmul.f32 %v307, %v430
        %v444 = vmul.f32 %v308, %v430
        %v445 = vmul.f32 %v309, %v430
        %v446 = vmul.f32 %v310, %v430
        %v447 = vmul.f32 %v311, %v430
        %v448 = vmul.f32 %v312, %v430
        %v449 = vmul.f32 %v313, %v430
        %v450 = vmul.f32 %v314, %v430
        %v451 = vmul.f32 %v315, %v430
        %v452 = vmul.f32 %v316, %v430
        %v453 = vmul.f32 %v317, %v430
        %v454 = vmul.f32 %v318, %v430
        %v455 = vmul.f32 %v319, %v430
        %v456 = vmul.f32 %v320, %v430
        %v457 = vmul.f32 %v321, %v430
        %v458 = vmul.f32 %v322, %v430
        %v459 = vmul.f32 %v323, %v430
        %v460 = vmul.f32 %v324, %v430
        %v461 = vmul.f32 %v325, %v430
        %v462 = vmul.f32 %v326, %v430
        %v463 = vld [vmem:[%s1] sm:$0x1]
        %v465 = vlaneseq
        %v466 = vshrl.u32 %v465, 7
        %v467 = vsub.s32 0, %v466
        %v468 = vrot.slane %v463, %v467
        %v470 = vmul.f32 %v431, %v468
        %v471 = vmul.f32 %v432, %v468
        %v472 = vmul.f32 %v433, %v468
        %v473 = vmul.f32 %v434, %v468
        %v474 = vmul.f32 %v435, %v468
        %v475 = vmul.f32 %v436, %v468
        %v476 = vmul.f32 %v437, %v468
        %v477 = vmul.f32 %v438, %v468
        %v478 = vmul.f32 %v439, %v468
        %v479 = vmul.f32 %v440, %v468
        %v480 = vmul.f32 %v441, %v468
        %v481 = vmul.f32 %v442, %v468
        %v482 = vmul.f32 %v443, %v468
        %v483 = vmul.f32 %v444, %v468
        %v484 = vmul.f32 %v445, %v468
        %v485 = vmul.f32 %v446, %v468
        %v486 = vmul.f32 %v447, %v468
        %v487 = vmul.f32 %v448, %v468
        %v488 = vmul.f32 %v449, %v468
        %v489 = vmul.f32 %v450, %v468
        %v490 = vmul.f32 %v451, %v468
        %v491 = vmul.f32 %v452, %v468
        %v492 = vmul.f32 %v453, %v468
        %v493 = vmul.f32 %v454, %v468
        %v494 = vmul.f32 %v455, %v468
        %v495 = vmul.f32 %v456, %v468
        %v496 = vmul.f32 %v457, %v468
        %v497 = vmul.f32 %v458, %v468
        %v498 = vmul.f32 %v459, %v468
        %v499 = vmul.f32 %v460, %v468
        %v500 = vmul.f32 %v461, %v468
        %v501 = vmul.f32 %v462, %v468
        %v502 = vld [vmem:[%s2] sm:$0x1]
        %v504 = vlaneseq
        %v505 = vshrl.u32 %v504, 7
        %v506 = vsub.s32 0, %v505
        %v507 = vrot.slane %v502, %v506
        %v509 = vadd.f32 %v470, %v507
        %v510 = vadd.f32 %v471, %v507
        %v511 = vadd.f32 %v472, %v507
        %v512 = vadd.f32 %v473, %v507
        %v513 = vadd.f32 %v474, %v507
        %v514 = vadd.f32 %v475, %v507
        %v515 = vadd.f32 %v476, %v507
        %v516 = vadd.f32 %v477, %v507
        %v517 = vadd.f32 %v478, %v507
        %v518 = vadd.f32 %v479, %v507
        %v519 = vadd.f32 %v480, %v507
        %v520 = vadd.f32 %v481, %v507
        %v521 = vadd.f32 %v482, %v507
        %v522 = vadd.f32 %v483, %v507
        %v523 = vadd.f32 %v484, %v507
        %v524 = vadd.f32 %v485, %v507
        %v525 = vadd.f32 %v486, %v507
        %v526 = vadd.f32 %v487, %v507
        %v527 = vadd.f32 %v488, %v507
        %v528 = vadd.f32 %v489, %v507
        %v529 = vadd.f32 %v490, %v507
        %v530 = vadd.f32 %v491, %v507
        %v531 = vadd.f32 %v492, %v507
        %v532 = vadd.f32 %v493, %v507
        %v533 = vadd.f32 %v494, %v507
        %v534 = vadd.f32 %v495, %v507
        %v535 = vadd.f32 %v496, %v507
        %v536 = vadd.f32 %v497, %v507
        %v537 = vadd.f32 %v498, %v507
        %v538 = vadd.f32 %v499, %v507
        %v539 = vadd.f32 %v500, %v507
        %v540 = vadd.f32 %v501, %v507
        %vm541 = vcmp.ge.f32.partialorder %v509, 0.0
        %vm542 = vcmp.ge.f32.partialorder %v510, 0.0
        %vm543 = vcmp.ge.f32.partialorder %v511, 0.0
        %vm544 = vcmp.ge.f32.partialorder %v512, 0.0
        %vm545 = vcmp.ge.f32.partialorder %v513, 0.0
        %vm546 = vcmp.ge.f32.partialorder %v514, 0.0
        %vm547 = vcmp.ge.f32.partialorder %v515, 0.0
        %vm548 = vcmp.ge.f32.partialorder %v516, 0.0
        %vm549 = vcmp.ge.f32.partialorder %v517, 0.0
        %vm550 = vcmp.ge.f32.partialorder %v518, 0.0
        %vm551 = vcmp.ge.f32.partialorder %v519, 0.0
        %vm552 = vcmp.ge.f32.partialorder %v520, 0.0
        %vm553 = vcmp.ge.f32.partialorder %v521, 0.0
        %vm554 = vcmp.ge.f32.partialorder %v522, 0.0
        %vm555 = vcmp.ge.f32.partialorder %v523, 0.0
        %vm556 = vcmp.ge.f32.partialorder %v524, 0.0
        %vm557 = vcmp.ge.f32.partialorder %v525, 0.0
        %vm558 = vcmp.ge.f32.partialorder %v526, 0.0
        %vm559 = vcmp.ge.f32.partialorder %v527, 0.0
        %vm560 = vcmp.ge.f32.partialorder %v528, 0.0
        %vm561 = vcmp.ge.f32.partialorder %v529, 0.0
        %vm562 = vcmp.ge.f32.partialorder %v530, 0.0
        %vm563 = vcmp.ge.f32.partialorder %v531, 0.0
        %vm564 = vcmp.ge.f32.partialorder %v532, 0.0
        %vm565 = vcmp.ge.f32.partialorder %v533, 0.0
        %vm566 = vcmp.ge.f32.partialorder %v534, 0.0
        %vm567 = vcmp.ge.f32.partialorder %v535, 0.0
        %vm568 = vcmp.ge.f32.partialorder %v536, 0.0
        %vm569 = vcmp.ge.f32.partialorder %v537, 0.0
        %vm570 = vcmp.ge.f32.partialorder %v538, 0.0
        %vm571 = vcmp.ge.f32.partialorder %v539, 0.0
        %vm572 = vcmp.ge.f32.partialorder %v540, 0.0
        %v573 = vmul.f32 %v509, 0.2
        %v574 = vmul.f32 %v510, 0.2
        %v575 = vmul.f32 %v511, 0.2
        %v576 = vmul.f32 %v512, 0.2
        %v577 = vmul.f32 %v513, 0.2
        %v578 = vmul.f32 %v514, 0.2
        %v579 = vmul.f32 %v515, 0.2
        %v580 = vmul.f32 %v516, 0.2
        %v581 = vmul.f32 %v517, 0.2
        %v582 = vmul.f32 %v518, 0.2
        %v583 = vmul.f32 %v519, 0.2
        %v584 = vmul.f32 %v520, 0.2
        %v585 = vmul.f32 %v521, 0.2
        %v586 = vmul.f32 %v522, 0.2
        %v587 = vmul.f32 %v523, 0.2
        %v588 = vmul.f32 %v524, 0.2
        %v589 = vmul.f32 %v525, 0.2
        %v590 = vmul.f32 %v526, 0.2
        %v591 = vmul.f32 %v527, 0.2
        %v592 = vmul.f32 %v528, 0.2
        %v593 = vmul.f32 %v529, 0.2
        %v594 = vmul.f32 %v530, 0.2
        %v595 = vmul.f32 %v531, 0.2
        %v596 = vmul.f32 %v532, 0.2
        %v597 = vmul.f32 %v533, 0.2
        %v598 = vmul.f32 %v534, 0.2
        %v599 = vmul.f32 %v535, 0.2
        %v600 = vmul.f32 %v536, 0.2
        %v601 = vmul.f32 %v537, 0.2
        %v602 = vmul.f32 %v538, 0.2
        %v603 = vmul.f32 %v539, 0.2
        %v604 = vmul.f32 %v540, 0.2
        %v605 = vsel %vm541, %v509, %v573
        %v606 = vsel %vm542, %v510, %v574
        %v607 = vsel %vm543, %v511, %v575
        %v608 = vsel %vm544, %v512, %v576
        %v609 = vsel %vm545, %v513, %v577
        %v610 = vsel %vm546, %v514, %v578
        %v611 = vsel %vm547, %v515, %v579
        %v612 = vsel %vm548, %v516, %v580
        %v613 = vsel %vm549, %v517, %v581
        %v614 = vsel %vm550, %v518, %v582
        %v615 = vsel %vm551, %v519, %v583
        %v616 = vsel %vm552, %v520, %v584
        %v617 = vsel %vm553, %v521, %v585
        %v618 = vsel %vm554, %v522, %v586
        %v619 = vsel %vm555, %v523, %v587
        %v620 = vsel %vm556, %v524, %v588
        %v621 = vsel %vm557, %v525, %v589
        %v622 = vsel %vm558, %v526, %v590
        %v623 = vsel %vm559, %v527, %v591
        %v624 = vsel %vm560, %v528, %v592
        %v625 = vsel %vm561, %v529, %v593
        %v626 = vsel %vm562, %v530, %v594
        %v627 = vsel %vm563, %v531, %v595
        %v628 = vsel %vm564, %v532, %v596
        %v629 = vsel %vm565, %v533, %v597
        %v630 = vsel %vm566, %v534, %v598
        %v631 = vsel %vm567, %v535, %v599
        %v632 = vsel %vm568, %v536, %v600
        %v633 = vsel %vm569, %v537, %v601
        %v634 = vsel %vm570, %v538, %v602
        %v635 = vsel %vm571, %v539, %v603
        %v636 = vsel %vm572, %v540, %v604
        %637 = vst.msk [vmem:[%s190] sm:$0xff] %vm223, %v605
        %638 = vst.msk [vmem:[%s190 + $0x8] sm:$0xff] %vm223, %v606
        %639 = vst.msk [vmem:[%s190 + $0x10] sm:$0xff] %vm223, %v607
        %640 = vst.msk [vmem:[%s190 + $0x18] sm:$0xff] %vm223, %v608
        %641 = vst.msk [vmem:[%s190 + $0x20] sm:$0xff] %vm223, %v609
        %642 = vst.msk [vmem:[%s190 + $0x28] sm:$0xff] %vm223, %v610
        %643 = vst.msk [vmem:[%s190 + $0x30] sm:$0xff] %vm223, %v611
        %644 = vst.msk [vmem:[%s190 + $0x38] sm:$0xff] %vm223, %v612
        %645 = vst.msk [vmem:[%s190 + $0x40] sm:$0xff] %vm223, %v613
        %646 = vst.msk [vmem:[%s190 + $0x48] sm:$0xff] %vm223, %v614
        %647 = vst.msk [vmem:[%s190 + $0x50] sm:$0xff] %vm223, %v615
        %648 = vst.msk [vmem:[%s190 + $0x58] sm:$0xff] %vm223, %v616
        %649 = vst.msk [vmem:[%s190 + $0x60] sm:$0xff] %vm223, %v617
        %650 = vst.msk [vmem:[%s190 + $0x68] sm:$0xff] %vm223, %v618
        %651 = vst.msk [vmem:[%s190 + $0x70] sm:$0xff] %vm223, %v619
        %652 = vst.msk [vmem:[%s190 + $0x78] sm:$0xff] %vm223, %v620
        %653 = vst.msk [vmem:[%s190 + $0x80] sm:$0xff] %vm223, %v621
        %654 = vst.msk [vmem:[%s190 + $0x88] sm:$0xff] %vm223, %v622
        %655 = vst.msk [vmem:[%s190 + $0x90] sm:$0xff] %vm223, %v623
        %656 = vst.msk [vmem:[%s190 + $0x98] sm:$0xff] %vm223, %v624
        %657 = vst.msk [vmem:[%s190 + $0xa0] sm:$0xff] %vm223, %v625
        %658 = vst.msk [vmem:[%s190 + $0xa8] sm:$0xff] %vm223, %v626
        %659 = vst.msk [vmem:[%s190 + $0xb0] sm:$0xff] %vm223, %v627
        %660 = vst.msk [vmem:[%s190 + $0xb8] sm:$0xff] %vm223, %v628
        %661 = vst.msk [vmem:[%s190 + $0xc0] sm:$0xff] %vm223, %v629
        %662 = vst.msk [vmem:[%s190 + $0xc8] sm:$0xff] %vm223, %v630
        %663 = vst.msk [vmem:[%s190 + $0xd0] sm:$0xff] %vm223, %v631
        %664 = vst.msk [vmem:[%s190 + $0xd8] sm:$0xff] %vm223, %v632
        %665 = vst.msk [vmem:[%s190 + $0xe0] sm:$0xff] %vm223, %v633
        %666 = vst.msk [vmem:[%s190 + $0xe8] sm:$0xff] %vm223, %v634
        %667 = vst.msk [vmem:[%s190 + $0xf0] sm:$0xff] %vm223, %v635
        %668 = vst.msk [vmem:[%s190 + $0xf8] sm:$0xff] %vm223, %v636
        %p669 = scmp.lt.s32.totalorder %s17, 1
        %s670 = scalar_select %p669, %s17, 1
        %s671 = smul.addr %s670, 32
        %s672 = smul.addr %s671, 8
        %s673 = scalar_lea.vmem %s3, %s672
        // Predicated region
        $region37: #{_lambda_.6} parent=31 // pred_check
          %p674 = pneg %p103
        $region38: #{_lambda_.6} parent=31 // pred_check_branch
          %676 = sbr.rel (%p674) target = $region40
        $region39: #{_lambda_.6} parent=31 // pred_region
          _
        $region40: #{_lambda_.6} parent=31 // pred_fallthru
          _
      $region32: #{_lambda_.6} parent=5 // pred_fallthru
        _
      %p677 = scmp.le.s32.totalorder 2, %s12
      // Predicated region
      $region41: #{_lambda_.6} parent=5 // pred_check
        %p678 = pneg %p677
      $region42: #{_lambda_.6} parent=5 // pred_check_branch
        %680 = sbr.rel (%p678) target = $region44
      $region43: #{_lambda_.6} parent=5 // pred_region
        %s681 = ssub.s32 %s12, 2
        // Predicated region
        $region45: #{_lambda_.6} parent=43 // pred_check
          %p682 = pneg %p109
        $region46: #{_lambda_.6} parent=43 // pred_check_branch
          %684 = sbr.rel (%p682) target = $region48
        $region47: #{_lambda_.6} parent=43 // pred_region
          %p685 = scmp.lt.s32.totalorder %s18, 1
          %s686 = scalar_select %p685, %s18, 1
          %s687 = smul.addr %s686, 32
          %s688 = smul.addr %s687, 8
          %s689 = scalar_lea.vmem %s3, %s688
        $region48: #{_lambda_.6} parent=43 // pred_fallthru
          _
      $region44: #{_lambda_.6} parent=5 // pred_fallthru
        _
    $region6: #{_lambda_.6} parent=1 // loop_footer
      %s16 = sadd.s32 1, %s12
    $region7: #{_lambda_.6} parent=1 // loop_footer_branch
      %11 = sbr.rel target = $region3
    $region8: #{_lambda_.6} parent=1 // loop_exit
      _
    %690 = vsyncpa [#allocation3], 1
    %s691 = scalar_lea.sflag [#allocation3], 1
    %692 = vsyncpa %s691, 1

// kernel: _lambda_.7
$region0: #{_lambda_.7}
  #allocation0 [shape = 'u32[]', space=smem, size = 0x4, offset = 0x4, fixed_abs, tag = 'smem constant byte address 0x4 - core index']
  #allocation1 [shape = 'u32[144,128]{1,0:T(1,128)}', space=vmem, size = 0x12000, scoped, tag = 'internal scratch']
  #allocation2 [shape = 'f32[128,128]{1,0:T(8,128)}', space=vmem, size = 0x10000, scoped, tag = 'scratch operand']
  %s0 = inlined_call_operand.vmem [shape: bf16[512,640], index: 0, kind: input, shape index: {}]
  %s1 = inlined_call_operand.vmem [shape: bf16[640,128], index: 1, kind: input, shape index: {}]
  %s2 = inlined_call_operand.vmem [shape: f32[1,128], index: 2, kind: input, shape index: {}]
  %s3 = inlined_call_operand.vmem [shape: f32[512,128], index: 3, kind: output, shape index: {}]
  %s4 = sld [smem:[#allocation0]]
  $region53: #{_lambda_.7} parent=0
    _
  %s6 = ssub.s32 1, %s4
  %s7 = scalar_select 0, %s6, %s4
  loop: start=0, step=1, limit=6
  $region2: #{_lambda_.7} parent=0 // loop_pre_header
    _
  $region3: #{_lambda_.7} parent=0 // loop_header
    %s9 = sphi 0, %s13
    %p10 = scmp.ge.s32.totalorder %s9, 6
    %s16 = sphi 0, %s35
    %s17 = sphi 0, %s31
    %s18 = sphi 0, %s27
    %s19 = sphi 0, %s16
    %s20 = sphi 0, %s17
    %s21 = sphi 0, %s18
    %s22 = sphi 0, %s19
    %s23 = sphi 0, %s20
    %s24 = sphi 0, %s21
    %s40 = sphi 0, %s42
    %s43 = sphi 0, %s40
    %s44 = sphi 0, %s43
    %s60 = sphi 0, %s44
    %s68 = sphi 0, %s70
    %s71 = sphi 0, %s68
    %s72 = sphi 0, %s71
    %s88 = sphi 0, %s72
    %s94 = sphi 0, %s96
    %s97 = sphi 0, %s94
    %s98 = sphi 0, %s97
    %s114 = sphi 0, %s98
    %s122 = sphi 0, %s124
    %s125 = sphi 0, %s122
    %s126 = sphi 0, %s125
    %s142 = sphi 0, %s126
  $region4: #{_lambda_.7} parent=0 // loop_header_branch
    %12 = sbr.rel (%p10) target = $region8
  $region5: #{_lambda_.7} parent=0 // loop_body
    %s14 = ssub.s32 %s9, 1
    %s15 = ssub.s32 %s9, 2
    %s25 = sadd.s32 1, %s18
    %p26 = scmp.ge.s32.totalorder %s25, 1
    %s27 = scalar_select %p26, 0, %s25
    %s28 = sadd.s32 1, %s17
    %s29 = scalar_select %p26, %s28, %s17
    %p30 = scmp.ge.s32.totalorder %s29, 1
    %s31 = scalar_select %p30, 0, %s29
    %s32 = sadd.s32 1, %s16
    %s33 = scalar_select %p30, %s32, %s16
    %p34 = scmp.ge.s32.totalorder %s33, 4
    %s35 = scalar_select %p34, 0, %s33
    %s36 = ssub.s32 %s16, %s35
    %s37 = ssub.s32 %s18, %s27
    %s38 = sor.u32 %s36, %s37
    %p39 = scmp.eq.s32.totalorder %s38, 0
    %s41 = sadd.s32 %s40, 1
    %s42 = scalar_select %p39, %s40, %s41
    %p45 = pneg %p39
    %p46 = scmp.eq.s32.totalorder %s9, 3
    %p47 = por %p45, %p46
    %p48 = scmp.ne.s32.totalorder %s40, %s43
    %p49 = scmp.eq.s32.totalorder %s9, 0
    %p50 = por %p48, %p49
    %p51 = scmp.ne.s32.totalorder %s40, %s43
    %p52 = scmp.eq.s32.totalorder %s14, 3
    %p53 = por %p51, %p52
    %p54 = scmp.ne.s32.totalorder %s43, %s44
    %p55 = scmp.eq.s32.totalorder %s14, 0
    %p56 = por %p54, %p55
    %p57 = scmp.ne.s32.totalorder %s43, %s44
    %p58 = scmp.eq.s32.totalorder %s15, 3
    %p59 = por %p57, %p58
    %p61 = scmp.ne.s32.totalorder %s44, %s60
    %p62 = scmp.eq.s32.totalorder %s15, 0
    %p63 = por %p61, %p62
    %s64 = ssub.s32 %s18, %s27
    %s65 = ssub.s32 %s17, %s31
    %s66 = sor.u32 %s64, %s65
    %p67 = scmp.eq.s32.totalorder %s66, 0
    %s69 = sadd.s32 %s68, 1
    %s70 = scalar_select %p67, %s68, %s69
    %p73 = pneg %p67
    %p74 = scmp.eq.s32.totalorder %s9, 3
    %p75 = por %p73, %p74
    %p76 = scmp.ne.s32.totalorder %s68, %s71
    %p77 = scmp.eq.s32.totalorder %s9, 0
    %p78 = por %p76, %p77
    %p79 = scmp.ne.s32.totalorder %s68, %s71
    %p80 = scmp.eq.s32.totalorder %s14, 3
    %p81 = por %p79, %p80
    %p82 = scmp.ne.s32.totalorder %s71, %s72
    %p83 = scmp.eq.s32.totalorder %s14, 0
    %p84 = por %p82, %p83
    %p85 = scmp.ne.s32.totalorder %s71, %s72
    %p86 = scmp.eq.s32.totalorder %s15, 3
    %p87 = por %p85, %p86
    %p89 = scmp.ne.s32.totalorder %s72, %s88
    %p90 = scmp.eq.s32.totalorder %s15, 0
    %p91 = por %p89, %p90
    %s92 = ssub.s32 %s17, %s31
    %p93 = scmp.eq.s32.totalorder %s92, 0
    %s95 = sadd.s32 %s94, 1
    %s96 = scalar_select %p93, %s94, %s95
    %p99 = pneg %p93
    %p100 = scmp.eq.s32.totalorder %s9, 3
    %p101 = por %p99, %p100
    %p102 = scmp.ne.s32.totalorder %s94, %s97
    %p103 = scmp.eq.s32.totalorder %s9, 0
    %p104 = por %p102, %p103
    %p105 = scmp.ne.s32.totalorder %s94, %s97
    %p106 = scmp.eq.s32.totalorder %s14, 3
    %p107 = por %p105, %p106
    %p108 = scmp.ne.s32.totalorder %s97, %s98
    %p109 = scmp.eq.s32.totalorder %s14, 0
    %p110 = por %p108, %p109
    %p111 = scmp.ne.s32.totalorder %s97, %s98
    %p112 = scmp.eq.s32.totalorder %s15, 3
    %p113 = por %p111, %p112
    %p115 = scmp.ne.s32.totalorder %s98, %s114
    %p116 = scmp.eq.s32.totalorder %s15, 0
    %p117 = por %p115, %p116
    %s118 = ssub.s32 %s16, %s35
    %s119 = ssub.s32 %s17, %s31
    %s120 = sor.u32 %s118, %s119
    %p121 = scmp.eq.s32.totalorder %s120, 0
    %s123 = sadd.s32 %s122, 1
    %s124 = scalar_select %p121, %s122, %s123
    %p127 = pneg %p121
    %p128 = scmp.eq.s32.totalorder %s9, 3
    %p129 = por %p127, %p128
    %p130 = scmp.ne.s32.totalorder %s122, %s125
    %p131 = scmp.eq.s32.totalorder %s9, 0
    %p132 = por %p130, %p131
    %p133 = scmp.ne.s32.totalorder %s122, %s125
    %p134 = scmp.eq.s32.totalorder %s14, 3
    %p135 = por %p133, %p134
    %p136 = scmp.ne.s32.totalorder %s125, %s126
    %p137 = scmp.eq.s32.totalorder %s14, 0
    %p138 = por %p136, %p137
    %p139 = scmp.ne.s32.totalorder %s125, %s126
    %p140 = scmp.eq.s32.totalorder %s15, 3
    %p141 = por %p139, %p140
    %p143 = scmp.ne.s32.totalorder %s126, %s142
    %p144 = scmp.eq.s32.totalorder %s15, 0
    %p145 = por %p143, %p144
    %p146 = scmp.le.s32.totalorder 1, %s9
    %p147 = scmp.lt.s32.totalorder %s9, 5
    %p148 = pnand %p146, %p147
    %p149 = pneg %p148
    // Predicated region
    $region9: #{_lambda_.7} parent=5 // pred_check
      _
    $region10: #{_lambda_.7} parent=5 // pred_check_branch
      %151 = sbr.rel (%p148) target = $region12
    $region11: #{_lambda_.7} parent=5 // pred_region
      %s152 = ssub.s32 %s9, 1
      // Predicated region
      $region13: #{_lambda_.7} parent=11 // pred_check
        %p153 = pneg %p84
      $region14: #{_lambda_.7} parent=11 // pred_check_branch
        %155 = sbr.rel (%p153) target = $region16
      $region15: #{_lambda_.7} parent=11 // pred_region
        %s156 = smul.u32 80, %s21
        %p157 = scmp.lt.s32.totalorder %s156, 79
        %s158 = scalar_select %p157, %s156, 79
        %p159 = scmp.lt.s32.totalorder %s20, 0
        %s160 = scalar_select %p159, %s20, 0
        %s161 = sadd.s32 %s160, %s158
        %s162 = smul.addr %s161, 4
        %s163 = scalar_lea.vmem %s1, %s162
        %s164 = smul.u32 80, %s21
      $region16: #{_lambda_.7} parent=11 // pred_fallthru
        _
      // Predicated region
      $region17: #{_lambda_.7} parent=11 // pred_check
        %p165 = pneg %p110
      $region18: #{_lambda_.7} parent=11 // pred_check_branch
        %167 = sbr.rel (%p165) target = $region20
      $region19: #{_lambda_.7} parent=11 // pred_region
        %p168 = scmp.lt.s32.totalorder %s20, 0
        %s169 = scalar_select %p168, %s20, 0
        %s170 = scalar_lea.vmem %s2, %s169
      $region20: #{_lambda_.7} parent=11 // pred_fallthru
        _
    $region12: #{_lambda_.7} parent=5 // pred_fallthru
      _
    %p171 = scmp.lt.s32.totalorder %s9, 4
    // Predicated region
    $region21: #{_lambda_.7} parent=5 // pred_check
      %p172 = pneg %p171
    $region22: #{_lambda_.7} parent=5 // pred_check_branch
      %174 = sbr.rel (%p172) target = $region24
    $region23: #{_lambda_.7} parent=5 // pred_region
      // Predicated region
      $region25: #{_lambda_.7} parent=23 // pred_check
        %p175 = pneg %p50
      $region26: #{_lambda_.7} parent=23 // pred_check_branch
        %177 = sbr.rel (%p175) target = $region28
      $region27: #{_lambda_.7} parent=23 // pred_region
        %s178 = smul.u32 16, %s16
        %s179 = smul.u32 5, %s18
        %p180 = scmp.lt.s32.totalorder %s178, 63
        %s181 = scalar_select %p180, %s178, 63
        %p182 = scmp.lt.s32.totalorder %s179, 4
        %s183 = scalar_select %p182, %s179, 4
        %s184 = smul.addr %s181, 5
        %s185 = sadd.s32 %s183, %s184
        %s186 = smul.addr %s185, 4
        %s187 = scalar_lea.vmem %s0, %s186
        %s188 = smul.u32 16, %s16
        %s189 = smul.u32 5, %s18
      $region28: #{_lambda_.7} parent=23 // pred_fallthru
        _
    $region24: #{_lambda_.7} parent=5 // pred_fallthru
      _
    %p190 = scmp.le.s32.totalorder 1, %s9
    %p191 = scmp.lt.s32.totalorder %s9, 5
    %p192 = pnand %p190, %p191
    %p193 = pneg %p192
    // Predicated region
    $region29: #{_lambda_.7} parent=5 // pred_check
      _
    $region30: #{_lambda_.7} parent=5 // pred_check_branch
      %195 = sbr.rel (%p192) target = $region32
    $region31: #{_lambda_.7} parent=5 // pred_region
      %s196 = ssub.s32 %s9, 1
      %s197 = smul.u32 16, %s19
      %s198 = smul.u32 5, %s21
      %p199 = scmp.lt.s32.totalorder %s197, 63
      %s200 = scalar_select %p199, %s197, 63
      %p201 = scmp.lt.s32.totalorder %s198, 4
      %s202 = scalar_select %p201, %s198, 4
      %s203 = smul.addr %s200, 5
      %s204 = sadd.s32 %s202, %s203
      %s205 = smul.addr %s204, 4
      %s206 = scalar_lea.vmem %s0, %s205
      %p207 = pneg %p56
      %p208 = pneg %p53
      %s209 = smul.u32 80, %s21
      %p210 = scmp.lt.s32.totalorder %s209, 79
      %s211 = scalar_select %p210, %s209, 79
      %p212 = scmp.lt.s32.totalorder %s20, 0
      %s213 = scalar_select %p212, %s20, 0
      %s214 = sadd.s32 %s213, %s211
      %s215 = smul.addr %s214, 4
      %s216 = scalar_lea.vmem %s1, %s215
      %p217 = pneg %p84
      %p218 = pneg %p81
      %p219 = scmp.lt.s32.totalorder %s20, 0
      %s220 = scalar_select %p219, %s20, 0
      %s221 = scalar_lea.vmem %s2, %s220
      %p222 = pneg %p110
      %p223 = pneg %p107
      %p224 = pneg %p138
      %p225 = pneg %p135
      %s226 = smul.u32 16, %s19
      %p227 = scmp.lt.s32.totalorder %s226, 63
      %s228 = scalar_select %p227, %s226, 63
      %p229 = scmp.lt.s32.totalorder %s20, 0
      %s230 = scalar_select %p229, %s20, 0
      %s231 = sadd.s32 %s230, %s228
      %s232 = smul.addr %s231, 8
      %s233 = scalar_lea.vmem %s3, %s232
      %s234 = smul.u32 16, %s19
      %s235 = smul.u32 5, %s21
      %p236 = scmp.lt.s32.totalorder %s234, 63
      %s237 = scalar_select %p236, %s234, 63
      %p238 = scmp.lt.s32.totalorder %s235, 4
      %s239 = scalar_select %p238, %s235, 4
      %s240 = smul.addr %s237, 5
      %s241 = sadd.s32 %s239, %s240
      %s242 = smul.addr %s241, 4
      %s243 = scalar_lea.vmem %s0, %s242
      %s244 = smul.u32 16, %s19
      %s245 = smul.u32 5, %s21
      %s246 = smul.u32 80, %s21
      %p247 = scmp.lt.s32.totalorder %s246, 79
      %s248 = scalar_select %p247, %s246, 79
      %p249 = scmp.lt.s32.totalorder %s20, 0
      %s250 = scalar_select %p249, %s20, 0
      %s251 = sadd.s32 %s250, %s248
      %s252 = smul.addr %s251, 4
      %s253 = scalar_lea.vmem %s1, %s252
      %s254 = smul.u32 80, %s21
      %p255 = scmp.lt.s32.totalorder %s20, 0
      %s256 = scalar_select %p255, %s20, 0
      %s257 = scalar_lea.vmem %s2, %s256
      %s258 = smul.u32 16, %s19
      %p259 = scmp.lt.s32.totalorder %s258, 63
      %s260 = scalar_select %p259, %s258, 63
      %p261 = scmp.lt.s32.totalorder %s20, 0
      %s262 = scalar_select %p261, %s20, 0
      %s263 = sadd.s32 %s262, %s260
      %s264 = smul.addr %s263, 8
      %s265 = scalar_lea.vmem %s3, %s264
      %s266 = smul.u32 16, %s19
      %p268 = scmp.eq.s32.totalorder %s21, 0
      // Predicated region
      $region33: #{_lambda_.7} parent=31 // pred_check
        %p269 = pneg %p268
      $region34: #{_lambda_.7} parent=31 // pred_check_branch
        %271 = sbr.rel (%p269) target = $region36
      $region35: #{_lambda_.7} parent=31 // pred_region
        %272 = vst [vmem:[#allocation2] sm:$0xff] 0.0
        %273 = vst [vmem:[#allocation2 + $0x8] sm:$0xff] 0.0
        %274 = vst [vmem:[#allocation2 + $0x10] sm:$0xff] 0.0
        %275 = vst [vmem:[#allocation2 + $0x18] sm:$0xff] 0.0
        %276 = vst [vmem:[#allocation2 + $0x20] sm:$0xff] 0.0
        %277 = vst [vmem:[#allocation2 + $0x28] sm:$0xff] 0.0
        %278 = vst [vmem:[#allocation2 + $0x30] sm:$0xff] 0.0
        %279 = vst [vmem:[#allocation2 + $0x38] sm:$0xff] 0.0
        %280 = vst [vmem:[#allocation2 + $0x40] sm:$0xff] 0.0
        %281 = vst [vmem:[#allocation2 + $0x48] sm:$0xff] 0.0
        %282 = vst [vmem:[#allocation2 + $0x50] sm:$0xff] 0.0
        %283 = vst [vmem:[#allocation2 + $0x58] sm:$0xff] 0.0
        %284 = vst [vmem:[#allocation2 + $0x60] sm:$0xff] 0.0
        %285 = vst [vmem:[#allocation2 + $0x68] sm:$0xff] 0.0
        %286 = vst [vmem:[#allocation2 + $0x70] sm:$0xff] 0.0
        %287 = vst [vmem:[#allocation2 + $0x78] sm:$0xff] 0.0
      $region36: #{_lambda_.7} parent=31 // pred_fallthru
        _
      %v288 = vld [vmem:[#allocation2] sm:$0xff]
      %v289 = vld [vmem:[#allocation2 + $0x8] sm:$0xff]
      %v290 = vld [vmem:[#allocation2 + $0x10] sm:$0xff]
      %v291 = vld [vmem:[#allocation2 + $0x18] sm:$0xff]
      %v292 = vld [vmem:[#allocation2 + $0x20] sm:$0xff]
      %v293 = vld [vmem:[#allocation2 + $0x28] sm:$0xff]
      %v294 = vld [vmem:[#allocation2 + $0x30] sm:$0xff]
      %v295 = vld [vmem:[#allocation2 + $0x38] sm:$0xff]
      %v296 = vld [vmem:[#allocation2 + $0x40] sm:$0xff]
      %v297 = vld [vmem:[#allocation2 + $0x48] sm:$0xff]
      %v298 = vld [vmem:[#allocation2 + $0x50] sm:$0xff]
      %v299 = vld [vmem:[#allocation2 + $0x58] sm:$0xff]
      %v300 = vld [vmem:[#allocation2 + $0x60] sm:$0xff]
      %v301 = vld [vmem:[#allocation2 + $0x68] sm:$0xff]
      %v302 = vld [vmem:[#allocation2 + $0x70] sm:$0xff]
      %v303 = vld [vmem:[#allocation2 + $0x78] sm:$0xff]
      %v304 = vld [vmem:[%s243] sm:$0xff]
      %v305 = vld [vmem:[%s243 + $0x8] sm:$0xff]
      %v306 = vld [vmem:[%s243 + $0x10] sm:$0xf]
      %v307 = vld [vmem:[%s243 + $0x14] sm:$0xff]
      %v308 = vld [vmem:[%s243 + $0x1c] sm:$0xff]
      %v309 = vld [vmem:[%s243 + $0x24] sm:$0xf]
      %v310 = vld [vmem:[%s243 + $0x28] sm:$0xff]
      %v311 = vld [vmem:[%s243 + $0x30] sm:$0xff]
      %v312 = vld [vmem:[%s243 + $0x38] sm:$0xf]
      %v313 = vld [vmem:[%s243 + $0x3c] sm:$0xff]
      %v314 = vld [vmem:[%s243 + $0x44] sm:$0xff]
      %v315 = vld [vmem:[%s243 + $0x4c] sm:$0xf]
      %v316 = vld [vmem:[%s243 + $0x50] sm:$0xff]
      %v317 = vld [vmem:[%s243 + $0x58] sm:$0xff]
      %v318 = vld [vmem:[%s243 + $0x60] sm:$0xf]
      %v319 = vld [vmem:[%s243 + $0x64] sm:$0xff]
      %v320 = vld [vmem:[%s243 + $0x6c] sm:$0xff]
      %v321 = vld [vmem:[%s243 + $0x74] sm:$0xf]
      %v322 = vld [vmem:[%s243 + $0x78] sm:$0xff]
      %v323 = vld [vmem:[%s243 + $0x80] sm:$0xff]
      %v324 = vld [vmem:[%s243 + $0x88] sm:$0xf]
      %v325 = vld [vmem:[%s243 + $0x8c] sm:$0xff]
      %v326 = vld [vmem:[%s243 + $0x94] sm:$0xff]
      %v327 = vld [vmem:[%s243 + $0x9c] sm:$0xf]
      %v328 = vld [vmem:[%s243 + $0xa0] sm:$0xff]
      %v329 = vld [vmem:[%s243 + $0xa8] sm:$0xff]
      %v330 = vld [vmem:[%s243 + $0xb0] sm:$0xf]
      %v331 = vld [vmem:[%s243 + $0xb4] sm:$0xff]
      %v332 = vld [vmem:[%s243 + $0xbc] sm:$0xff]
      %v333 = vld [vmem:[%s243 + $0xc4] sm:$0xf]
      %v334 = vld [vmem:[%s243 + $0xc8] sm:$0xff]
      %v335 = vld [vmem:[%s243 + $0xd0] sm:$0xff]
      %v336 = vld [vmem:[%s243 + $0xd8] sm:$0xf]
      %v337 = vld [vmem:[%s243 + $0xdc] sm:$0xff]
      %v338 = vld [vmem:[%s243 + $0xe4] sm:$0xff]
      %v339 = vld [vmem:[%s243 + $0xec] sm:$0xf]
      %v340 = vld [vmem:[%s243 + $0xf0] sm:$0xff]
      %v341 = vld [vmem:[%s243 + $0xf8] sm:$0xff]
      %v342 = vld [vmem:[%s243 + $0x100] sm:$0xf]
      %v343 = vld [vmem:[%s243 + $0x104] sm:$0xff]
      %v344 = vld [vmem:[%s243 + $0x10c] sm:$0xff]
      %v345 = vld [vmem:[%s243 + $0x114] sm:$0xf]
      %v346 = vld [vmem:[%s243 + $0x118] sm:$0xff]
      %v347 = vld [vmem:[%s243 + $0x120] sm:$0xff]
      %v348 = vld [vmem:[%s243 + $0x128] sm:$0xf]
      %v349 = vld [vmem:[%s243 + $0x12c] sm:$0xff]
      %v350 = vld [vmem:[%s243 + $0x134] sm:$0xff]
      %v351 = vld [vmem:[%s243 + $0x13c] sm:$0xf]
      %v352 = vld [vmem:[%s253] sm:$0xf]
      %v353 = vld [vmem:[%s253 + $0x4] sm:$0xf]
      %v354 = vld [vmem:[%s253 + $0x8] sm:$0xf]
      %v355 = vld [vmem:[%s253 + $0xc] sm:$0xf]
      %v356 = vld [vmem:[%s253 + $0x10] sm:$0xf]
      %v357 = vld [vmem:[%s253 + $0x14] sm:$0xf]
      %v358 = vld [vmem:[%s253 + $0x18] sm:$0xf]
      %v359 = vld [vmem:[%s253 + $0x1c] sm:$0xf]
      %v360 = vld [vmem:[%s253 + $0x20] sm:$0xf]
      %v361 = vld [vmem:[%s253 + $0x24] sm:$0xf]
      %v362 = vld [vmem:[%s253 + $0x28] sm:$0xf]
      %v363 = vld [vmem:[%s253 + $0x2c] sm:$0xf]
      %v364 = vld [vmem:[%s253 + $0x30] sm:$0xf]
      %v365 = vld [vmem:[%s253 + $0x34] sm:$0xf]
      %v366 = vld [vmem:[%s253 + $0x38] sm:$0xf]
      %v367 = vld [vmem:[%s253 + $0x3c] sm:$0xf]
      %v368 = vld [vmem:[%s253 + $0x40] sm:$0xf]
      %v369 = vld [vmem:[%s253 + $0x44] sm:$0xf]
      %v370 = vld [vmem:[%s253 + $0x48] sm:$0xf]
      %v371 = vld [vmem:[%s253 + $0x4c] sm:$0xf]
      %v372 = vld [vmem:[%s253 + $0x50] sm:$0xf]
      %v373 = vld [vmem:[%s253 + $0x54] sm:$0xf]
      %v374 = vld [vmem:[%s253 + $0x58] sm:$0xf]
      %v375 = vld [vmem:[%s253 + $0x5c] sm:$0xf]
      %v376 = vld [vmem:[%s253 + $0x60] sm:$0xf]
      %v377 = vld [vmem:[%s253 + $0x64] sm:$0xf]
      %v378 = vld [vmem:[%s253 + $0x68] sm:$0xf]
      %v379 = vld [vmem:[%s253 + $0x6c] sm:$0xf]
      %v380 = vld [vmem:[%s253 + $0x70] sm:$0xf]
      %v381 = vld [vmem:[%s253 + $0x74] sm:$0xf]
      %v382 = vld [vmem:[%s253 + $0x78] sm:$0xf]
      %v383 = vld [vmem:[%s253 + $0x7c] sm:$0xf]
      %v384 = vld [vmem:[%s253 + $0x80] sm:$0xf]
      %v385 = vld [vmem:[%s253 + $0x84] sm:$0xf]
      %v386 = vld [vmem:[%s253 + $0x88] sm:$0xf]
      %v387 = vld [vmem:[%s253 + $0x8c] sm:$0xf]
      %v388 = vld [vmem:[%s253 + $0x90] sm:$0xf]
      %v389 = vld [vmem:[%s253 + $0x94] sm:$0xf]
      %v390 = vld [vmem:[%s253 + $0x98] sm:$0xf]
      %v391 = vld [vmem:[%s253 + $0x9c] sm:$0xf]
      %v392 = vld [vmem:[%s253 + $0xa0] sm:$0xf]
      %v393 = vld [vmem:[%s253 + $0xa4] sm:$0xf]
      %v394 = vld [vmem:[%s253 + $0xa8] sm:$0xf]
      %v395 = vld [vmem:[%s253 + $0xac] sm:$0xf]
      %v396 = vld [vmem:[%s253 + $0xb0] sm:$0xf]
      %v397 = vld [vmem:[%s253 + $0xb4] sm:$0xf]
      %v398 = vld [vmem:[%s253 + $0xb8] sm:$0xf]
      %v399 = vld [vmem:[%s253 + $0xbc] sm:$0xf]
      %v400 = vld [vmem:[%s253 + $0xc0] sm:$0xf]
      %v401 = vld [vmem:[%s253 + $0xc4] sm:$0xf]
      %v402 = vld [vmem:[%s253 + $0xc8] sm:$0xf]
      %v403 = vld [vmem:[%s253 + $0xcc] sm:$0xf]
      %v404 = vld [vmem:[%s253 + $0xd0] sm:$0xf]
      %v405 = vld [vmem:[%s253 + $0xd4] sm:$0xf]
      %v406 = vld [vmem:[%s253 + $0xd8] sm:$0xf]
      %v407 = vld [vmem:[%s253 + $0xdc] sm:$0xf]
      %v408 = vld [vmem:[%s253 + $0xe0] sm:$0xf]
      %v409 = vld [vmem:[%s253 + $0xe4] sm:$0xf]
      %v410 = vld [vmem:[%s253 + $0xe8] sm:$0xf]
      %v411 = vld [vmem:[%s253 + $0xec] sm:$0xf]
      %v412 = vld [vmem:[%s253 + $0xf0] sm:$0xf]
      %v413 = vld [vmem:[%s253 + $0xf4] sm:$0xf]
      %v414 = vld [vmem:[%s253 + $0xf8] sm:$0xf]
      %v415 = vld [vmem:[%s253 + $0xfc] sm:$0xf]
      %v416 = vld [vmem:[%s253 + $0x100] sm:$0xf]
      %v417 = vld [vmem:[%s253 + $0x104] sm:$0xf]
      %v418 = vld [vmem:[%s253 + $0x108] sm:$0xf]
      %v419 = vld [vmem:[%s253 + $0x10c] sm:$0xf]
      %v420 = vld [vmem:[%s253 + $0x110] sm:$0xf]
      %v421 = vld [vmem:[%s253 + $0x114] sm:$0xf]
      %v422 = vld [vmem:[%s253 + $0x118] sm:$0xf]
      %v423 = vld [vmem:[%s253 + $0x11c] sm:$0xf]
      %v424 = vld [vmem:[%s253 + $0x120] sm:$0xf]
      %v425 = vld [vmem:[%s253 + $0x124] sm:$0xf]
      %v426 = vld [vmem:[%s253 + $0x128] sm:$0xf]
      %v427 = vld [vmem:[%s253 + $0x12c] sm:$0xf]
      %v428 = vld [vmem:[%s253 + $0x130] sm:$0xf]
      %v429 = vld [vmem:[%s253 + $0x134] sm:$0xf]
      %v430 = vld [vmem:[%s253 + $0x138] sm:$0xf]
      %v431 = vld [vmem:[%s253 + $0x13c] sm:$0xf]
      %v480 = vunpack.c.l.b16 %v304
      %v481 = vunpack.c.h.b16 %v304
      %v482 = vunpack.c.l.b16 %v305
      %v483 = vunpack.c.h.b16 %v305
      %v484 = vunpack.c.l.b16 %v306
      %v485 = vunpack.c.l.b16 %v307
      %v486 = vunpack.c.h.b16 %v307
      %v487 = vunpack.c.l.b16 %v308
      %v488 = vunpack.c.h.b16 %v308
      %v489 = vunpack.c.l.b16 %v309
      %v490 = vunpack.c.l.b16 %v310
      %v491 = vunpack.c.h.b16 %v310
      %v492 = vunpack.c.l.b16 %v311
      %v493 = vunpack.c.h.b16 %v311
      %v494 = vunpack.c.l.b16 %v312
      %v495 = vunpack.c.l.b16 %v313
      %v496 = vunpack.c.h.b16 %v313
      %v497 = vunpack.c.l.b16 %v314
      %v498 = vunpack.c.h.b16 %v314
      %v499 = vunpack.c.l.b16 %v315
      %v500 = vunpack.c.l.b16 %v316
      %v501 = vunpack.c.h.b16 %v316
      %v502 = vunpack.c.l.b16 %v317
      %v503 = vunpack.c.h.b16 %v317
      %v504 = vunpack.c.l.b16 %v318
      %v505 = vunpack.c.l.b16 %v319
      %v506 = vunpack.c.h.b16 %v319
      %v507 = vunpack.c.l.b16 %v320
      %v508 = vunpack.c.h.b16 %v320
      %v509 = vunpack.c.l.b16 %v321
      %v510 = vunpack.c.l.b16 %v322
      %v511 = vunpack.c.h.b16 %v322
      %v512 = vunpack.c.l.b16 %v323
      %v513 = vunpack.c.h.b16 %v323
      %v514 = vunpack.c.l.b16 %v324
      %v515 = vunpack.c.l.b16 %v325
      %v516 = vunpack.c.h.b16 %v325
      %v517 = vunpack.c.l.b16 %v326
      %v518 = vunpack.c.h.b16 %v326
      %v519 = vunpack.c.l.b16 %v327
      %v520 = vunpack.c.l.b16 %v328
      %v521 = vunpack.c.h.b16 %v328
      %v522 = vunpack.c.l.b16 %v329
      %v523 = vunpack.c.h.b16 %v329
      %v524 = vunpack.c.l.b16 %v330
      %v525 = vunpack.c.l.b16 %v331
      %v526 = vunpack.c.h.b16 %v331
      %v527 = vunpack.c.l.b16 %v332
      %v528 = vunpack.c.h.b16 %v332
      %v529 = vunpack.c.l.b16 %v333
      %v530 = vunpack.c.l.b16 %v334
      %v531 = vunpack.c.h.b16 %v334
      %v532 = vunpack.c.l.b16 %v335
      %v533 = vunpack.c.h.b16 %v335
      %v534 = vunpack.c.l.b16 %v336
      %v535 = vunpack.c.l.b16 %v337
      %v536 = vunpack.c.h.b16 %v337
      %v537 = vunpack.c.l.b16 %v338
      %v538 = vunpack.c.h.b16 %v338
      %v539 = vunpack.c.l.b16 %v339
      %v540 = vunpack.c.l.b16 %v340
      %v541 = vunpack.c.h.b16 %v340
      %v542 = vunpack.c.l.b16 %v341
      %v543 = vunpack.c.h.b16 %v341
      %v544 = vunpack.c.l.b16 %v342
      %v545 = vunpack.c.l.b16 %v343
      %v546 = vunpack.c.h.b16 %v343
      %v547 = vunpack.c.l.b16 %v344
      %v548 = vunpack.c.h.b16 %v344
      %v549 = vunpack.c.l.b16 %v345
      %v550 = vunpack.c.l.b16 %v346
      %v551 = vunpack.c.h.b16 %v346
      %v552 = vunpack.c.l.b16 %v347
      %v553 = vunpack.c.h.b16 %v347
      %v554 = vunpack.c.l.b16 %v348
      %v555 = vunpack.c.l.b16 %v349
      %v556 = vunpack.c.h.b16 %v349
      %v557 = vunpack.c.l.b16 %v350
      %v558 = vunpack.c.h.b16 %v350
      %v559 = vunpack.c.l.b16 %v351
      %v560 = vpack.c.b16 %v485, %v480
      %v561 = vpack.c.b16 %v486, %v481
      %v562 = vpack.c.b16 %v487, %v482
      %v563 = vpack.c.b16 %v488, %v483
      %v564 = vpack.c.b16 %v489, %v484
      %v565 = vpack.c.b16 %v495, %v490
      %v566 = vpack.c.b16 %v496, %v491
      %v567 = vpack.c.b16 %v497, %v492
      %v568 = vpack.c.b16 %v498, %v493
      %v569 = vpack.c.b16 %v499, %v494
      %v570 = vpack.c.b16 %v505, %v500
      %v571 = vpack.c.b16 %v506, %v501
      %v572 = vpack.c.b16 %v507, %v502
      %v573 = vpack.c.b16 %v508, %v503
      %v574 = vpack.c.b16 %v509, %v504
      %v575 = vpack.c.b16 %v515, %v510
      %v576 = vpack.c.b16 %v516, %v511
      %v577 = vpack.c.b16 %v517, %v512
      %v578 = vpack.c.b16 %v518, %v513
      %v579 = vpack.c.b16 %v519, %v514
      %v580 = vpack.c.b16 %v525, %v520
      %v581 = vpack.c.b16 %v526, %v521
      %v582 = vpack.c.b16 %v527, %v522
      %v583 = vpack.c.b16 %v528, %v523
      %v584 = vpack.c.b16 %v529, %v524
      %v585 = vpack.c.b16 %v535, %v530
      %v586 = vpack.c.b16 %v536, %v531
      %v587 = vpack.c.b16 %v537, %v532
      %v588 = vpack.c.b16 %v538, %v533
      %v589 = vpack.c.b16 %v539, %v534
      %v590 = vpack.c.b16 %v545, %v540
      %v591 = vpack.c.b16 %v546, %v541
      %v592 = vpack.c.b16 %v547, %v542
      %v593 = vpack.c.b16 %v548, %v543
      %v594 = vpack.c.b16 %v549, %v544
      %v595 = vpack.c.b16 %v555, %v550
      %v596 = vpack.c.b16 %v556, %v551
      %v597 = vpack.c.b16 %v557, %v552
      %v598 = vpack.c.b16 %v558, %v553
      %v599 = vpack.c.b16 %v559, %v554
      %v720 = vunpack.c.l.b16 %v352
      %v721 = vunpack.c.l.b16 %v353
      %v722 = vunpack.c.l.b16 %v354
      %v723 = vunpack.c.l.b16 %v355
      %v724 = vunpack.c.l.b16 %v356
      %v725 = vunpack.c.l.b16 %v357
      %v726 = vunpack.c.l.b16 %v358
      %v727 = vunpack.c.l.b16 %v359
      %v728 = vunpack.c.l.b16 %v360
      %v729 = vunpack.c.l.b16 %v361
      %v730 = vunpack.c.l.b16 %v362
      %v731 = vunpack.c.l.b16 %v363
      %v732 = vunpack.c.l.b16 %v364
      %v733 = vunpack.c.l.b16 %v365
      %v734 = vunpack.c.l.b16 %v366
      %v735 = vunpack.c.l.b16 %v367
      %v736 = vunpack.c.l.b16 %v368
      %v737 = vunpack.c.l.b16 %v369
      %v738 = vunpack.c.l.b16 %v370
      %v739 = vunpack.c.l.b16 %v371
      %v740 = vunpack.c.l.b16 %v372
      %v741 = vunpack.c.l.b16 %v373
      %v742 = vunpack.c.l.b16 %v374
      %v743 = vunpack.c.l.b16 %v375
      %v744 = vunpack.c.l.b16 %v376
      %v745 = vunpack.c.l.b16 %v377
      %v746 = vunpack.c.l.b16 %v378
      %v747 = vunpack.c.l.b16 %v379
      %v748 = vunpack.c.l.b16 %v380
      %v749 = vunpack.c.l.b16 %v381
      %v750 = vunpack.c.l.b16 %v382
      %v751 = vunpack.c.l.b16 %v383
      %v752 = vunpack.c.l.b16 %v384
      %v753 = vunpack.c.l.b16 %v385
      %v754 = vunpack.c.l.b16 %v386
      %v755 = vunpack.c.l.b16 %v387
      %v756 = vunpack.c.l.b16 %v388
      %v757 = vunpack.c.l.b16 %v389
      %v758 = vunpack.c.l.b16 %v390
      %v759 = vunpack.c.l.b16 %v391
      %v760 = vunpack.c.l.b16 %v392
      %v761 = vunpack.c.l.b16 %v393
      %v762 = vunpack.c.l.b16 %v394
      %v763 = vunpack.c.l.b16 %v395
      %v764 = vunpack.c.l.b16 %v396
      %v765 = vunpack.c.l.b16 %v397
      %v766 = vunpack.c.l.b16 %v398
      %v767 = vunpack.c.l.b16 %v399
      %v768 = vunpack.c.l.b16 %v400
      %v769 = vunpack.c.l.b16 %v401
      %v770 = vunpack.c.l.b16 %v402
      %v771 = vunpack.c.l.b16 %v403
      %v772 = vunpack.c.l.b16 %v404
      %v773 = vunpack.c.l.b16 %v405
      %v774 = vunpack.c.l.b16 %v406
      %v775 = vunpack.c.l.b16 %v407
      %v776 = vunpack.c.l.b16 %v408
      %v777 = vunpack.c.l.b16 %v409
      %v778 = vunpack.c.l.b16 %v410
      %v779 = vunpack.c.l.b16 %v411
      %v780 = vunpack.c.l.b16 %v412
      %v781 = vunpack.c.l.b16 %v413
      %v782 = vunpack.c.l.b16 %v414
      %v783 = vunpack.c.l.b16 %v415
      %v784 = vunpack.c.l.b16 %v416
      %v785 = vunpack.c.l.b16 %v417
      %v786 = vunpack.c.l.b16 %v418
      %v787 = vunpack.c.l.b16 %v419
      %v788 = vunpack.c.l.b16 %v420
      %v789 = vunpack.c.l.b16 %v421
      %v790 = vunpack.c.l.b16 %v422
      %v791 = vunpack.c.l.b16 %v423
      %v792 = vunpack.c.l.b16 %v424
      %v793 = vunpack.c.l.b16 %v425
      %v794 = vunpack.c.l.b16 %v426
      %v795 = vunpack.c.l.b16 %v427
      %v796 = vunpack.c.l.b16 %v428
      %v797 = vunpack.c.l.b16 %v429
      %v798 = vunpack.c.l.b16 %v430
      %v799 = vunpack.c.l.b16 %v431
      %v800 = vpack.c.b16 %v721, %v720
      %v801 = vpack.c.b16 %v723, %v722
      %v802 = vpack.c.b16 %v725, %v724
      %v803 = vpack.c.b16 %v727, %v726
      %v804 = vpack.c.b16 %v729, %v728
      %v805 = vpack.c.b16 %v731, %v730
      %v806 = vpack.c.b16 %v733, %v732
      %v807 = vpack.c.b16 %v735, %v734
      %v808 = vpack.c.b16 %v737, %v736
      %v809 = vpack.c.b16 %v739, %v738
      %v810 = vpack.c.b16 %v741, %v740
      %v811 = vpack.c.b16 %v743, %v742
      %v812 = vpack.c.b16 %v745, %v744
      %v813 = vpack.c.b16 %v747, %v746
      %v814 = vpack.c.b16 %v749, %v748
      %v815 = vpack.c.b16 %v751, %v750
      %v816 = vpack.c.b16 %v753, %v752
      %v817 = vpack.c.b16 %v755, %v754
      %v818 = vpack.c.b16 %v757, %v756
      %v819 = vpack.c.b16 %v759, %v758
      %v820 = vpack.c.b16 %v761, %v760
      %v821 = vpack.c.b16 %v763, %v762
      %v822 = vpack.c.b16 %v765, %v764
      %v823 = vpack.c.b16 %v767, %v766
      %v824 = vpack.c.b16 %v769, %v768
      %v825 = vpack.c.b16 %v771, %v770
      %v826 = vpack.c.b16 %v773, %v772
      %v827 = vpack.c.b16 %v775, %v774
      %v828 = vpack.c.b16 %v777, %v776
      %v829 = vpack.c.b16 %v779, %v778
      %v830 = vpack.c.b16 %v781, %v780
      %v831 = vpack.c.b16 %v783, %v782
      %v832 = vpack.c.b16 %v785, %v784
      %v833 = vpack.c.b16 %v787, %v786
      %v834 = vpack.c.b16 %v789, %v788
      %v835 = vpack.c.b16 %v791, %v790
      %v836 = vpack.c.b16 %v793, %v792
      %v837 = vpack.c.b16 %v795, %v794
      %v838 = vpack.c.b16 %v797, %v796
      %v839 = vpack.c.b16 %v799, %v798
      %880 = vmatprep.subr.bf16.mxu0 0
      %881 = vmatpush1.bf16.msra.mxu0 %v807
      %882 = vmatprep.subr.bf16.mxu0 0
      %883 = vmatpush1.bf16.msra.mxu0 %v806
      %884 = vmatprep.subr.bf16.mxu0 0
      %885 = vmatpush1.bf16.msra.mxu0 %v805
      %886 = vmatprep.subr.bf16.mxu0 0
      %887 = vmatpush1.bf16.msra.mxu0 %v804
      %888 = vmatprep.subr.bf16.mxu0 0
      %889 = vmatpush1.bf16.msra.mxu0 %v803
      %890 = vmatprep.subr.bf16.mxu0 0
      %891 = vmatpush1.bf16.msra.mxu0 %v802
      %892 = vmatprep.subr.bf16.mxu0 0
      %893 = vmatpush1.bf16.msra.mxu0 %v801
      %894 = vmatprep.subr.bf16.mxu0 0
      %895 = vmatpush1.bf16.msra.mxu0 %v800
      %896 = vmatprep.subr.bf16.mxu0 0
      %897 = vmatpush2.bf16.msra.mxu0 %v815
      %898 = vmatprep.subr.bf16.mxu0 0
      %899 = vmatpush2.bf16.msra.mxu0 %v814
      %900 = vmatprep.subr.bf16.mxu0 0
      %901 = vmatpush2.bf16.msra.mxu0 %v813
      %902 = vmatprep.subr.bf16.mxu0 0
      %903 = vmatpush2.bf16.msra.mxu0 %v812
      %904 = vmatprep.subr.bf16.mxu0 0
      %905 = vmatpush2.bf16.msra.mxu0 %v811
      %906 = vmatprep.subr.bf16.mxu0 0
      %907 = vmatpush2.bf16.msra.mxu0 %v810
      %908 = vmatprep.subr.bf16.mxu0 0
      %909 = vmatpush2.bf16.msra.mxu0 %v809
      %910 = vmatprep.subr.bf16.mxu0 0
      %911 = vmatpush2.bf16.msra.mxu0 %v808
      %912 = vmatprep.mubr.bf16.mxu0 %v561
      %913 = vmatmul.mubr.bf16.gmra.mxu0 %v560
      %v914 = vpop.f32.mrf.mxu0
      %v915 = vadd.f32 0.0, %v914
      %v916 = vpop.f32.mrf.mxu0
      %v917 = vpop.f32.mrf.mxu0
      %v918 = vadd.f32 0.0, %v917
      %v919 = vpop.f32.mrf.mxu0
      %920 = vmatprep.mubr.bf16.mxu0 %v566
      %921 = vmatmul.mubr.bf16.gmra.mxu0 %v565
      %v922 = vpop.f32.mrf.mxu0
      %v923 = vadd.f32 0.0, %v922
      %v924 = vpop.f32.mrf.mxu0
      %v925 = vpop.f32.mrf.mxu0
      %v926 = vadd.f32 0.0, %v925
      %v927 = vpop.f32.mrf.mxu0
      %928 = vmatprep.mubr.bf16.mxu0 %v571
      %929 = vmatmul.mubr.bf16.gmra.mxu0 %v570
      %v930 = vpop.f32.mrf.mxu0
      %v931 = vadd.f32 0.0, %v930
      %v932 = vpop.f32.mrf.mxu0
      %v933 = vpop.f32.mrf.mxu0
      %v934 = vadd.f32 0.0, %v933
      %v935 = vpop.f32.mrf.mxu0
      %936 = vmatprep.mubr.bf16.mxu0 %v576
      %937 = vmatmul.mubr.bf16.gmra.mxu0 %v575
      %v938 = vpop.f32.mrf.mxu0
      %v939 = vadd.f32 0.0, %v938
      %v940 = vpop.f32.mrf.mxu0
      %v941 = vpop.f32.mrf.mxu0
      %v942 = vadd.f32 0.0, %v941
      %v943 = vpop.f32.mrf.mxu0
      %944 = vmatprep.mubr.bf16.mxu0 %v581
      %945 = vmatmul.mubr.bf16.gmra.mxu0 %v580
      %v946 = vpop.f32.mrf.mxu0
      %v947 = vadd.f32 0.0, %v946
      %v948 = vpop.f32.mrf.mxu0
      %v949 = vpop.f32.mrf.mxu0
      %v950 = vadd.f32 0.0, %v949
      %v951 = vpop.f32.mrf.mxu0
      %952 = vmatprep.mubr.bf16.mxu0 %v586
      %953 = vmatmul.mubr.bf16.gmra.mxu0 %v585
      %v954 = vpop.f32.mrf.mxu0
      %v955 = vadd.f32 0.0, %v954
      %v956 = vpop.f32.mrf.mxu0
      %v957 = vpop.f32.mrf.mxu0
      %v958 = vadd.f32 0.0, %v957
      %v959 = vpop.f32.mrf.mxu0
      %960 = vmatprep.mubr.bf16.mxu0 %v591
      %961 = vmatmul.mubr.bf16.gmra.mxu0 %v590
      %v962 = vpop.f32.mrf.mxu0
      %v963 = vadd.f32 0.0, %v962
      %v964 = vpop.f32.mrf.mxu0
      %v965 = vpop.f32.mrf.mxu0
      %v966 = vadd.f32 0.0, %v965
      %v967 = vpop.f32.mrf.mxu0
      %968 = vmatprep.mubr.bf16.mxu0 %v596
      %969 = vmatmul.mubr.bf16.gmra.mxu0 %v595
      %v970 = vpop.f32.mrf.mxu0
      %v971 = vadd.f32 0.0, %v970
      %v972 = vpop.f32.mrf.mxu0
      %v973 = vpop.f32.mrf.mxu0
      %v974 = vadd.f32 0.0, %v973
      %v975 = vpop.f32.mrf.mxu0
      %976 = vdwg.mxu0
      %977 = vmatprep.subr.bf16.mxu0 0
      %978 = vmatpush1.bf16.msra.mxu0 %v823
      %979 = vmatprep.subr.bf16.mxu0 0
      %980 = vmatpush1.bf16.msra.mxu0 %v822
      %981 = vmatprep.subr.bf16.mxu0 0
      %982 = vmatpush1.bf16.msra.mxu0 %v821
      %983 = vmatprep.subr.bf16.mxu0 0
      %984 = vmatpush1.bf16.msra.mxu0 %v820
      %985 = vmatprep.subr.bf16.mxu0 0
      %986 = vmatpush1.bf16.msra.mxu0 %v819
      %987 = vmatprep.subr.bf16.mxu0 0
      %988 = vmatpush1.bf16.msra.mxu0 %v818
      %989 = vmatprep.subr.bf16.mxu0 0
      %990 = vmatpush1.bf16.msra.mxu0 %v817
      %991 = vmatprep.subr.bf16.mxu0 0
      %992 = vmatpush1.bf16.msra.mxu0 %v816
      %993 = vmatprep.subr.bf16.mxu0 0
      %994 = vmatpush2.bf16.msra.mxu0 %v831
      %995 = vmatprep.subr.bf16.mxu0 0
      %996 = vmatpush2.bf16.msra.mxu0 %v830
      %997 = vmatprep.subr.bf16.mxu0 0
      %998 = vmatpush2.bf16.msra.mxu0 %v829
      %999 = vmatprep.subr.bf16.mxu0 0
      %1000 = vmatpush2.bf16.msra.mxu0 %v828
      %1001 = vmatprep.subr.bf16.mxu0 0
      %1002 = vmatpush2.bf16.msra.mxu0 %v827
      %1003 = vmatprep.subr.bf16.mxu0 0
      %1004 = vmatpush2.bf16.msra.mxu0 %v826
      %1005 = vmatprep.subr.bf16.mxu0 0
      %1006 = vmatpush2.bf16.msra.mxu0 %v825
      %1007 = vmatprep.subr.bf16.mxu0 0
      %1008 = vmatpush2.bf16.msra.mxu0 %v824
      %1009 = vmatprep.mubr.bf16.mxu0 %v563
      %1010 = vmatmul.mubr.bf16.gmra.mxu0 %v562
      %v1011 = vpop.f32.mrf.mxu0
      %v1012 = vadd.f32 %v915, %v1011
      %v1013 = vpop.f32.mrf.mxu0
      %v1014 = vpop.f32.mrf.mxu0
      %v1015 = vadd.f32 %v918, %v1014
      %v1016 = vpop.f32.mrf.mxu0
      %1017 = vmatprep.mubr.bf16.mxu0 %v568
      %1018 = vmatmul.mubr.bf16.gmra.mxu0 %v567
      %v1019 = vpop.f32.mrf.mxu0
      %v1020 = vadd.f32 %v923, %v1019
      %v1021 = vpop.f32.mrf.mxu0
      %v1022 = vpop.f32.mrf.mxu0
      %v1023 = vadd.f32 %v926, %v1022
      %v1024 = vpop.f32.mrf.mxu0
      %1025 = vmatprep.mubr.bf16.mxu0 %v573
      %1026 = vmatmul.mubr.bf16.gmra.mxu0 %v572
      %v1027 = vpop.f32.mrf.mxu0
      %v1028 = vadd.f32 %v931, %v1027
      %v1029 = vpop.f32.mrf.mxu0
      %v1030 = vpop.f32.mrf.mxu0
      %v1031 = vadd.f32 %v934, %v1030
      %v1032 = vpop.f32.mrf.mxu0
      %1033 = vmatprep.mubr.bf16.mxu0 %v578
      %1034 = vmatmul.mubr.bf16.gmra.mxu0 %v577
      %v1035 = vpop.f32.mrf.mxu0
      %v1036 = vadd.f32 %v939, %v1035
      %v1037 = vpop.f32.mrf.mxu0
      %v1038 = vpop.f32.mrf.mxu0
      %v1039 = vadd.f32 %v942, %v1038
      %v1040 = vpop.f32.mrf.mxu0
      %1041 = vmatprep.mubr.bf16.mxu0 %v583
      %1042 = vmatmul.mubr.bf16.gmra.mxu0 %v582
      %v1043 = vpop.f32.mrf.mxu0
      %v1044 = vadd.f32 %v947, %v1043
      %v1045 = vpop.f32.mrf.mxu0
      %v1046 = vpop.f32.mrf.mxu0
      %v1047 = vadd.f32 %v950, %v1046
      %v1048 = vpop.f32.mrf.mxu0
      %1049 = vmatprep.mubr.bf16.mxu0 %v588
      %1050 = vmatmul.mubr.bf16.gmra.mxu0 %v587
      %v1051 = vpop.f32.mrf.mxu0
      %v1052 = vadd.f32 %v955, %v1051
      %v1053 = vpop.f32.mrf.mxu0
      %v1054 = vpop.f32.mrf.mxu0
      %v1055 = vadd.f32 %v958, %v1054
      %v1056 = vpop.f32.mrf.mxu0
      %1057 = vmatprep.mubr.bf16.mxu0 %v593
      %1058 = vmatmul.mubr.bf16.gmra.mxu0 %v592
      %v1059 = vpop.f32.mrf.mxu0
      %v1060 = vadd.f32 %v963, %v1059
      %v1061 = vpop.f32.mrf.mxu0
      %v1062 = vpop.f32.mrf.mxu0
      %v1063 = vadd.f32 %v966, %v1062
      %v1064 = vpop.f32.mrf.mxu0
      %1065 = vmatprep.mubr.bf16.mxu0 %v598
      %1066 = vmatmul.mubr.bf16.gmra.mxu0 %v597
      %v1067 = vpop.f32.mrf.mxu0
      %v1068 = vadd.f32 %v971, %v1067
      %v1069 = vpop.f32.mrf.mxu0
      %v1070 = vpop.f32.mrf.mxu0
      %v1071 = vadd.f32 %v974, %v1070
      %v1072 = vpop.f32.mrf.mxu0
      %1073 = vdwg.mxu0
      %1074 = vmatprep.subr.bf16.mxu0 0
      %1075 = vmatpush1.bf16.msra.mxu0 %v839
      %1076 = vmatprep.subr.bf16.mxu0 0
      %1077 = vmatpush1.bf16.msra.mxu0 %v838
      %1078 = vmatprep.subr.bf16.mxu0 0
      %1079 = vmatpush1.bf16.msra.mxu0 %v837
      %1080 = vmatprep.subr.bf16.mxu0 0
      %1081 = vmatpush1.bf16.msra.mxu0 %v836
      %1082 = vmatprep.subr.bf16.mxu0 0
      %1083 = vmatpush1.bf16.msra.mxu0 %v835
      %1084 = vmatprep.subr.bf16.mxu0 0
      %1085 = vmatpush1.bf16.msra.mxu0 %v834
      %1086 = vmatprep.subr.bf16.mxu0 0
      %1087 = vmatpush1.bf16.msra.mxu0 %v833
      %1088 = vmatprep.subr.bf16.mxu0 0
      %1089 = vmatpush1.bf16.msra.mxu0 %v832
      %1090 = vmatprep.subr.bf16.mxu0 0
      %1091 = vmatpush2.bf16.msra.mxu0 0
      %1092 = vmatprep.subr.bf16.mxu0 0
      %1093 = vmatpush2.bf16.msra.mxu0 0
      %1094 = vmatprep.subr.bf16.mxu0 0
      %1095 = vmatpush2.bf16.msra.mxu0 0
      %1096 = vmatprep.subr.bf16.mxu0 0
      %1097 = vmatpush2.bf16.msra.mxu0 0
      %1098 = vmatprep.subr.bf16.mxu0 0
      %1099 = vmatpush2.bf16.msra.mxu0 0
      %1100 = vmatprep.subr.bf16.mxu0 0
      %1101 = vmatpush2.bf16.msra.mxu0 0
      %1102 = vmatprep.subr.bf16.mxu0 0
      %1103 = vmatpush2.bf16.msra.mxu0 0
      %1104 = vmatprep.subr.bf16.mxu0 0
      %1105 = vmatpush2.bf16.msra.mxu0 0
      %1106 = vmatprep.mubr.bf16.mxu0 0
      %1107 = vmatmul.mubr.bf16.gmra.mxu0 %v564
      %v1108 = vpop.f32.mrf.mxu0
      %v1109 = vadd.f32 %v1012, %v1108
      %v1110 = vpop.f32.mrf.mxu0
      %v1111 = vpop.f32.mrf.mxu0
      %v1112 = vadd.f32 %v1015, %v1111
      %v1113 = vpop.f32.mrf.mxu0
      %1114 = vmatprep.mubr.bf16.mxu0 0
      %1115 = vmatmul.mubr.bf16.gmra.mxu0 %v569
      %v1116 = vpop.f32.mrf.mxu0
      %v1117 = vadd.f32 %v1020, %v1116
      %v1118 = vpop.f32.mrf.mxu0
      %v1119 = vpop.f32.mrf.mxu0
      %v1120 = vadd.f32 %v1023, %v1119
      %v1121 = vpop.f32.mrf.mxu0
      %1122 = vmatprep.mubr.bf16.mxu0 0
      %1123 = vmatmul.mubr.bf16.gmra.mxu0 %v574
      %v1124 = vpop.f32.mrf.mxu0
      %v1125 = vadd.f32 %v1028, %v1124
      %v1126 = vpop.f32.mrf.mxu0
      %v1127 = vpop.f32.mrf.mxu0
      %v1128 = vadd.f32 %v1031, %v1127
      %v1129 = vpop.f32.mrf.mxu0
      %1130 = vmatprep.mubr.bf16.mxu0 0
      %1131 = vmatmul.mubr.bf16.gmra.mxu0 %v579
      %v1132 = vpop.f32.mrf.mxu0
      %v1133 = vadd.f32 %v1036, %v1132
      %v1134 = vpop.f32.mrf.mxu0
      %v1135 = vpop.f32.mrf.mxu0
      %v1136 = vadd.f32 %v1039, %v1135
      %v1137 = vpop.f32.mrf.mxu0
      %1138 = vmatprep.mubr.bf16.mxu0 0
      %1139 = vmatmul.mubr.bf16.gmra.mxu0 %v584
      %v1140 = vpop.f32.mrf.mxu0
      %v1141 = vadd.f32 %v1044, %v1140
      %v1142 = vpop.f32.mrf.mxu0
      %v1143 = vpop.f32.mrf.mxu0
      %v1144 = vadd.f32 %v1047, %v1143
      %v1145 = vpop.f32.mrf.mxu0
      %1146 = vmatprep.mubr.bf16.mxu0 0
      %1147 = vmatmul.mubr.bf16.gmra.mxu0 %v589
      %v1148 = vpop.f32.mrf.mxu0
      %v1149 = vadd.f32 %v1052, %v1148
      %v1150 = vpop.f32.mrf.mxu0
      %v1151 = vpop.f32.mrf.mxu0
      %v1152 = vadd.f32 %v1055, %v1151
      %v1153 = vpop.f32.mrf.mxu0
      %1154 = vmatprep.mubr.bf16.mxu0 0
      %1155 = vmatmul.mubr.bf16.gmra.mxu0 %v594
      %v1156 = vpop.f32.mrf.mxu0
      %v1157 = vadd.f32 %v1060, %v1156
      %v1158 = vpop.f32.mrf.mxu0
      %v1159 = vpop.f32.mrf.mxu0
      %v1160 = vadd.f32 %v1063, %v1159
      %v1161 = vpop.f32.mrf.mxu0
      %1162 = vmatprep.mubr.bf16.mxu0 0
      %1163 = vmatmul.mubr.bf16.gmra.mxu0 %v599
      %v1164 = vpop.f32.mrf.mxu0
      %v1165 = vadd.f32 %v1068, %v1164
      %v1166 = vpop.f32.mrf.mxu0
      %v1167 = vpop.f32.mrf.mxu0
      %v1168 = vadd.f32 %v1071, %v1167
      %v1169 = vpop.f32.mrf.mxu0
      %1170 = vdwg.mxu0
      %v1171 = vadd.f32 %v288, %v1109
      %v1172 = vadd.f32 %v289, %v1112
      %v1173 = vadd.f32 %v290, %v1117
      %v1174 = vadd.f32 %v291, %v1120
      %v1175 = vadd.f32 %v292, %v1125
      %v1176 = vadd.f32 %v293, %v1128
      %v1177 = vadd.f32 %v294, %v1133
      %v1178 = vadd.f32 %v295, %v1136
      %v1179 = vadd.f32 %v296, %v1141
      %v1180 = vadd.f32 %v297, %v1144
      %v1181 = vadd.f32 %v298, %v1149
      %v1182 = vadd.f32 %v299, %v1152
      %v1183 = vadd.f32 %v300, %v1157
      %v1184 = vadd.f32 %v301, %v1160
      %v1185 = vadd.f32 %v302, %v1165
      %v1186 = vadd.f32 %v303, %v1168
      %1187 = vst [vmem:[#allocation2] sm:$0xff] %v1171
      %1188 = vst [vmem:[#allocation2 + $0x8] sm:$0xff] %v1172
      %1189 = vst [vmem:[#allocation2 + $0x10] sm:$0xff] %v1173
      %1190 = vst [vmem:[#allocation2 + $0x18] sm:$0xff] %v1174
      %1191 = vst [vmem:[#allocation2 + $0x20] sm:$0xff] %v1175
      %1192 = vst [vmem:[#allocation2 + $0x28] sm:$0xff] %v1176
      %1193 = vst [vmem:[#allocation2 + $0x30] sm:$0xff] %v1177
      %1194 = vst [vmem:[#allocation2 + $0x38] sm:$0xff] %v1178
      %1195 = vst [vmem:[#allocation2 + $0x40] sm:$0xff] %v1179
      %1196 = vst [vmem:[#allocation2 + $0x48] sm:$0xff] %v1180
      %1197 = vst [vmem:[#allocation2 + $0x50] sm:$0xff] %v1181
      %1198 = vst [vmem:[#allocation2 + $0x58] sm:$0xff] %v1182
      %1199 = vst [vmem:[#allocation2 + $0x60] sm:$0xff] %v1183
      %1200 = vst [vmem:[#allocation2 + $0x68] sm:$0xff] %v1184
      %1201 = vst [vmem:[#allocation2 + $0x70] sm:$0xff] %v1185
      %1202 = vst [vmem:[#allocation2 + $0x78] sm:$0xff] %v1186
      // Predicated region
      $region37: #{_lambda_.7} parent=31 // pred_check
        %p1203 = pneg %p268
      $region38: #{_lambda_.7} parent=31 // pred_check_branch
        %1205 = sbr.rel (%p1203) target = $region40
      $region39: #{_lambda_.7} parent=31 // pred_region
        %v1206 = vld [vmem:[#allocation2] sm:$0xff]
        %v1207 = vld [vmem:[#allocation2 + $0x8] sm:$0xff]
        %v1208 = vld [vmem:[#allocation2 + $0x10] sm:$0xff]
        %v1209 = vld [vmem:[#allocation2 + $0x18] sm:$0xff]
        %v1210 = vld [vmem:[#allocation2 + $0x20] sm:$0xff]
        %v1211 = vld [vmem:[#allocation2 + $0x28] sm:$0xff]
        %v1212 = vld [vmem:[#allocation2 + $0x30] sm:$0xff]
        %v1213 = vld [vmem:[#allocation2 + $0x38] sm:$0xff]
        %v1214 = vld [vmem:[#allocation2 + $0x40] sm:$0xff]
        %v1215 = vld [vmem:[#allocation2 + $0x48] sm:$0xff]
        %v1216 = vld [vmem:[#allocation2 + $0x50] sm:$0xff]
        %v1217 = vld [vmem:[#allocation2 + $0x58] sm:$0xff]
        %v1218 = vld [vmem:[#allocation2 + $0x60] sm:$0xff]
        %v1219 = vld [vmem:[#allocation2 + $0x68] sm:$0xff]
        %v1220 = vld [vmem:[#allocation2 + $0x70] sm:$0xff]
        %v1221 = vld [vmem:[#allocation2 + $0x78] sm:$0xff]
        %v1222 = vld [vmem:[%s257] sm:$0x1]
        %v1224 = vlaneseq
        %v1225 = vshrl.u32 %v1224, 7
        %v1226 = vsub.s32 0, %v1225
        %v1227 = vrot.slane %v1222, %v1226
        %v1229 = vadd.f32 %v1206, %v1227
        %v1230 = vadd.f32 %v1207, %v1227
        %v1231 = vadd.f32 %v1208, %v1227
        %v1232 = vadd.f32 %v1209, %v1227
        %v1233 = vadd.f32 %v1210, %v1227
        %v1234 = vadd.f32 %v1211, %v1227
        %v1235 = vadd.f32 %v1212, %v1227
        %v1236 = vadd.f32 %v1213, %v1227
        %v1237 = vadd.f32 %v1214, %v1227
        %v1238 = vadd.f32 %v1215, %v1227
        %v1239 = vadd.f32 %v1216, %v1227
        %v1240 = vadd.f32 %v1217, %v1227
        %v1241 = vadd.f32 %v1218, %v1227
        %v1242 = vadd.f32 %v1219, %v1227
        %v1243 = vadd.f32 %v1220, %v1227
        %v1244 = vadd.f32 %v1221, %v1227
        %1245 = vst [vmem:[%s265] sm:$0xff] %v1229
        %1246 = vst [vmem:[%s265 + $0x8] sm:$0xff] %v1230
        %1247 = vst [vmem:[%s265 + $0x10] sm:$0xff] %v1231
        %1248 = vst [vmem:[%s265 + $0x18] sm:$0xff] %v1232
        %1249 = vst [vmem:[%s265 + $0x20] sm:$0xff] %v1233
        %1250 = vst [vmem:[%s265 + $0x28] sm:$0xff] %v1234
        %1251 = vst [vmem:[%s265 + $0x30] sm:$0xff] %v1235
        %1252 = vst [vmem:[%s265 + $0x38] sm:$0xff] %v1236
        %1253 = vst [vmem:[%s265 + $0x40] sm:$0xff] %v1237
        %1254 = vst [vmem:[%s265 + $0x48] sm:$0xff] %v1238
        %1255 = vst [vmem:[%s265 + $0x50] sm:$0xff] %v1239
        %1256 = vst [vmem:[%s265 + $0x58] sm:$0xff] %v1240
        %1257 = vst [vmem:[%s265 + $0x60] sm:$0xff] %v1241
        %1258 = vst [vmem:[%s265 + $0x68] sm:$0xff] %v1242
        %1259 = vst [vmem:[%s265 + $0x70] sm:$0xff] %v1243
        %1260 = vst [vmem:[%s265 + $0x78] sm:$0xff] %v1244
      $region40: #{_lambda_.7} parent=31 // pred_fallthru
        _
      %s1261 = smul.u32 16, %s19
      %p1262 = scmp.lt.s32.totalorder %s1261, 63
      %s1263 = scalar_select %p1262, %s1261, 63
      %p1264 = scmp.lt.s32.totalorder %s20, 0
      %s1265 = scalar_select %p1264, %s20, 0
      %s1266 = sadd.s32 %s1265, %s1263
      %s1267 = smul.addr %s1266, 8
      %s1268 = scalar_lea.vmem %s3, %s1267
      // Predicated region
      $region41: #{_lambda_.7} parent=31 // pred_check
        %p1269 = pneg %p135
      $region42: #{_lambda_.7} parent=31 // pred_check_branch
        %1271 = sbr.rel (%p1269) target = $region44
      $region43: #{_lambda_.7} parent=31 // pred_region
        %s1272 = smul.u32 16, %s19
      $region44: #{_lambda_.7} parent=31 // pred_fallthru
        _
    $region32: #{_lambda_.7} parent=5 // pred_fallthru
      _
    %p1273 = scmp.le.s32.totalorder 2, %s9
    // Predicated region
    $region45: #{_lambda_.7} parent=5 // pred_check
      %p1274 = pneg %p1273
    $region46: #{_lambda_.7} parent=5 // pred_check_branch
      %1276 = sbr.rel (%p1274) target = $region48
    $region47: #{_lambda_.7} parent=5 // pred_region
      %s1277 = ssub.s32 %s9, 2
      // Predicated region
      $region49: #{_lambda_.7} parent=47 // pred_check
        %p1278 = pneg %p141
      $region50: #{_lambda_.7} parent=47 // pred_check_branch
        %1280 = sbr.rel (%p1278) target = $region52
      $region51: #{_lambda_.7} parent=47 // pred_region
        %s1281 = smul.u32 16, %s22
        %p1282 = scmp.lt.s32.totalorder %s1281, 63
        %s1283 = scalar_select %p1282, %s1281, 63
        %p1284 = scmp.lt.s32.totalorder %s23, 0
        %s1285 = scalar_select %p1284, %s23, 0
        %s1286 = sadd.s32 %s1285, %s1283
        %s1287 = smul.addr %s1286, 8
        %s1288 = scalar_lea.vmem %s3, %s1287
      $region52: #{_lambda_.7} parent=47 // pred_fallthru
        _
    $region48: #{_lambda_.7} parent=5 // pred_fallthru
      _
  $region6: #{_lambda_.7} parent=0 // loop_footer
    %s13 = sadd.s32 1, %s9
  $region7: #{_lambda_.7} parent=0 // loop_footer_branch
    %8 = sbr.rel target = $region3
  $region8: #{_lambda_.7} parent=0 // loop_exit
    _

// kernel: _lambda_.8
$region0: #{_lambda_.8}
  #allocation0 [shape = 'u32[]', space=smem, size = 0x4, offset = 0x4, fixed_abs, tag = 'smem constant byte address 0x4 - core index']
  #allocation1 [shape = 'u32[144,128]{1,0:T(1,128)}', space=vmem, size = 0x12000, scoped, tag = 'internal scratch']
  %s0 = inlined_call_operand.vmem [shape: f32[2,64,64], index: 0, kind: input, shape index: {}]
  %s1 = inlined_call_operand.vmem [shape: f32[1,1,64], index: 1, kind: input, shape index: {}]
  %s2 = inlined_call_operand.vmem [shape: f32[1,1,64], index: 2, kind: input, shape index: {}]
  %s3 = inlined_call_operand.vmem [shape: f32[2,64,64], index: 3, kind: output, shape index: {}]
  %s4 = sld [smem:[#allocation0]]
  $region45: #{_lambda_.8} parent=0
    _
  %s6 = ssub.s32 1, %s4
  %s7 = scalar_select 0, %s6, %s4
  loop: start=0, step=1, limit=4
  $region2: #{_lambda_.8} parent=0 // loop_pre_header
    _
  $region3: #{_lambda_.8} parent=0 // loop_header
    %s9 = sphi 0, %s13
    %p10 = scmp.ge.s32.totalorder %s9, 4
    %s19 = sphi 0, %s21
    %s22 = sphi 0, %s19
    %s23 = sphi 0, %s22
    %s39 = sphi 0, %s23
    %s43 = sphi 0, %s43
    %s45 = sphi 0, %s43
    %s46 = sphi 0, %s45
    %s60 = sphi 0, %s46
    %s64 = sphi 0, %s64
    %s66 = sphi 0, %s64
    %s67 = sphi 0, %s66
    %s81 = sphi 0, %s67
    %s87 = sphi 0, %s89
    %s90 = sphi 0, %s87
    %s91 = sphi 0, %s90
    %s107 = sphi 0, %s91
  $region4: #{_lambda_.8} parent=0 // loop_header_branch
    %12 = sbr.rel (%p10) target = $region8
  $region5: #{_lambda_.8} parent=0 // loop_body
    %s14 = ssub.s32 %s9, 1
    %s15 = ssub.s32 %s9, 2
    %s16 = sadd.s32 %s9, 1
    %s17 = ssub.s32 %s9, %s16
    %p18 = scmp.eq.s32.totalorder %s17, 0
    %s20 = sadd.s32 %s19, 1
    %s21 = scalar_select %p18, %s19, %s20
    %p24 = pneg %p18
    %p25 = scmp.eq.s32.totalorder %s9, 1
    %p26 = por %p24, %p25
    %p27 = scmp.ne.s32.totalorder %s19, %s22
    %p28 = scmp.eq.s32.totalorder %s9, 0
    %p29 = por %p27, %p28
    %p30 = scmp.ne.s32.totalorder %s19, %s22
    %p31 = scmp.eq.s32.totalorder %s14, 1
    %p32 = por %p30, %p31
    %p33 = scmp.ne.s32.totalorder %s22, %s23
    %p34 = scmp.eq.s32.totalorder %s14, 0
    %p35 = por %p33, %p34
    %p36 = scmp.ne.s32.totalorder %s22, %s23
    %p37 = scmp.eq.s32.totalorder %s15, 1
    %p38 = por %p36, %p37
    %p40 = scmp.ne.s32.totalorder %s23, %s39
    %p41 = scmp.eq.s32.totalorder %s15, 0
    %p42 = por %p40, %p41
    %s44 = sadd.s32 %s43, 1
    %p47 = scmp.eq.s32.totalorder %s9, 1
    %p48 = scmp.ne.s32.totalorder %s43, %s45
    %p49 = scmp.eq.s32.totalorder %s9, 0
    %p50 = por %p48, %p49
    %p51 = scmp.ne.s32.totalorder %s43, %s45
    %p52 = scmp.eq.s32.totalorder %s14, 1
    %p53 = por %p51, %p52
    %p54 = scmp.ne.s32.totalorder %s45, %s46
    %p55 = scmp.eq.s32.totalorder %s14, 0
    %p56 = por %p54, %p55
    %p57 = scmp.ne.s32.totalorder %s45, %s46
    %p58 = scmp.eq.s32.totalorder %s15, 1
    %p59 = por %p57, %p58
    %p61 = scmp.ne.s32.totalorder %s46, %s60
    %p62 = scmp.eq.s32.totalorder %s15, 0
    %p63 = por %p61, %p62
    %s65 = sadd.s32 %s64, 1
    %p68 = scmp.eq.s32.totalorder %s9, 1
    %p69 = scmp.ne.s32.totalorder %s64, %s66
    %p70 = scmp.eq.s32.totalorder %s9, 0
    %p71 = por %p69, %p70
    %p72 = scmp.ne.s32.totalorder %s64, %s66
    %p73 = scmp.eq.s32.totalorder %s14, 1
    %p74 = por %p72, %p73
    %p75 = scmp.ne.s32.totalorder %s66, %s67
    %p76 = scmp.eq.s32.totalorder %s14, 0
    %p77 = por %p75, %p76
    %p78 = scmp.ne.s32.totalorder %s66, %s67
    %p79 = scmp.eq.s32.totalorder %s15, 1
    %p80 = por %p78, %p79
    %p82 = scmp.ne.s32.totalorder %s67, %s81
    %p83 = scmp.eq.s32.totalorder %s15, 0
    %p84 = por %p82, %p83
    %s85 = ssub.s32 %s9, %s16
    %p86 = scmp.eq.s32.totalorder %s85, 0
    %s88 = sadd.s32 %s87, 1
    %s89 = scalar_select %p86, %s87, %s88
    %p92 = pneg %p86
    %p93 = scmp.eq.s32.totalorder %s9, 1
    %p94 = por %p92, %p93
    %p95 = scmp.ne.s32.totalorder %s87, %s90
    %p96 = scmp.eq.s32.totalorder %s9, 0
    %p97 = por %p95, %p96
    %p98 = scmp.ne.s32.totalorder %s87, %s90
    %p99 = scmp.eq.s32.totalorder %s14, 1
    %p100 = por %p98, %p99
    %p101 = scmp.ne.s32.totalorder %s90, %s91
    %p102 = scmp.eq.s32.totalorder %s14, 0
    %p103 = por %p101, %p102
    %p104 = scmp.ne.s32.totalorder %s90, %s91
    %p105 = scmp.eq.s32.totalorder %s15, 1
    %p106 = por %p104, %p105
    %p108 = scmp.ne.s32.totalorder %s91, %s107
    %p109 = scmp.eq.s32.totalorder %s15, 0
    %p110 = por %p108, %p109
    %p111 = scmp.le.s32.totalorder 1, %s9
    %p112 = scmp.lt.s32.totalorder %s9, 3
    %p113 = pnand %p111, %p112
    %p114 = pneg %p113
    // Predicated region
    $region9: #{_lambda_.8} parent=5 // pred_check
      _
    $region10: #{_lambda_.8} parent=5 // pred_check_branch
      %116 = sbr.rel (%p113) target = $region12
    $region11: #{_lambda_.8} parent=5 // pred_region
      %s117 = ssub.s32 %s9, 1
      // Predicated region
      $region13: #{_lambda_.8} parent=11 // pred_check
        %p118 = pneg %p56
      $region14: #{_lambda_.8} parent=11 // pred_check_branch
        %120 = sbr.rel (%p118) target = $region16
      $region15: #{_lambda_.8} parent=11 // pred_region
        _
      $region16: #{_lambda_.8} parent=11 // pred_fallthru
        _
      // Predicated region
      $region17: #{_lambda_.8} parent=11 // pred_check
        %p121 = pneg %p77
      $region18: #{_lambda_.8} parent=11 // pred_check_branch
        %123 = sbr.rel (%p121) target = $region20
      $region19: #{_lambda_.8} parent=11 // pred_region
        _
      $region20: #{_lambda_.8} parent=11 // pred_fallthru
        _
    $region12: #{_lambda_.8} parent=5 // pred_fallthru
      _
    %p124 = scmp.lt.s32.totalorder %s9, 2
    // Predicated region
    $region21: #{_lambda_.8} parent=5 // pred_check
      %p125 = pneg %p124
    $region22: #{_lambda_.8} parent=5 // pred_check_branch
      %127 = sbr.rel (%p125) target = $region24
    $region23: #{_lambda_.8} parent=5 // pred_region
      // Predicated region
      $region25: #{_lambda_.8} parent=23 // pred_check
        %p128 = pneg %p29
      $region26: #{_lambda_.8} parent=23 // pred_check_branch
        %130 = sbr.rel (%p128) target = $region28
      $region27: #{_lambda_.8} parent=23 // pred_region
        %p131 = scmp.lt.s32.totalorder %s9, 1
        %s132 = scalar_select %p131, %s9, 1
        %s133 = smul.addr %s132, 8
        %s134 = smul.addr %s133, 8
        %s135 = scalar_lea.vmem %s0, %s134
      $region28: #{_lambda_.8} parent=23 // pred_fallthru
        _
    $region24: #{_lambda_.8} parent=5 // pred_fallthru
      _
    %p136 = scmp.le.s32.totalorder 1, %s9
    %p137 = scmp.lt.s32.totalorder %s9, 3
    %p138 = pnand %p136, %p137
    %p139 = pneg %p138
    // Predicated region
    $region29: #{_lambda_.8} parent=5 // pred_check
      _
    $region30: #{_lambda_.8} parent=5 // pred_check_branch
      %141 = sbr.rel (%p138) target = $region32
    $region31: #{_lambda_.8} parent=5 // pred_region
      %s142 = ssub.s32 %s9, 1
      %p143 = scmp.lt.s32.totalorder %s14, 1
      %s144 = scalar_select %p143, %s14, 1
      %s145 = smul.addr %s144, 8
      %s146 = smul.addr %s145, 8
      %s147 = scalar_lea.vmem %s0, %s146
      %p148 = pneg %p35
      %p149 = pneg %p32
      %p150 = pneg %p56
      %p151 = pneg %p53
      %p152 = pneg %p77
      %p153 = pneg %p74
      %p154 = pneg %p103
      %p155 = pneg %p100
      %p156 = scmp.lt.s32.totalorder %s14, 1
      %s157 = scalar_select %p156, %s14, 1
      %s158 = smul.addr %s157, 8
      %s159 = smul.addr %s158, 8
      %s160 = scalar_lea.vmem %s3, %s159
      %p161 = scmp.lt.s32.totalorder %s14, 1
      %s162 = scalar_select %p161, %s14, 1
      %s163 = smul.addr %s162, 8
      %s164 = smul.addr %s163, 8
      %s165 = scalar_lea.vmem %s0, %s164
      %p166 = scmp.lt.s32.totalorder %s14, 1
      %s167 = scalar_select %p166, %s14, 1
      %s168 = smul.addr %s167, 8
      %s169 = smul.addr %s168, 8
      %s170 = scalar_lea.vmem %s3, %s169
      %v171 = vld [vmem:[%s165] sm:$0xff]
      %v172 = vld [vmem:[%s165 + $0x8] sm:$0xff]
      %v173 = vld [vmem:[%s165 + $0x10] sm:$0xff]
      %v174 = vld [vmem:[%s165 + $0x18] sm:$0xff]
      %v175 = vld [vmem:[%s165 + $0x20] sm:$0xff]
      %v176 = vld [vmem:[%s165 + $0x28] sm:$0xff]
      %v177 = vld [vmem:[%s165 + $0x30] sm:$0xff]
      %v178 = vld [vmem:[%s165 + $0x38] sm:$0xff]
      %vm179 = vcmask 523264
      %v180 = vsel %vm179, %v171, 0.0
      %v181 = vsel %vm179, %v172, 0.0
      %v182 = vadd.f32 %v180, %v181
      %v183 = vsel %vm179, %v173, 0.0
      %v184 = vadd.f32 %v182, %v183
      %v185 = vsel %vm179, %v174, 0.0
      %v186 = vadd.f32 %v184, %v185
      %v187 = vsel %vm179, %v175, 0.0
      %v188 = vadd.f32 %v186, %v187
      %v189 = vsel %vm179, %v176, 0.0
      %v190 = vadd.f32 %v188, %v189
      %v191 = vsel %vm179, %v177, 0.0
      %v192 = vadd.f32 %v190, %v191
      %v193 = vsel %vm179, %v178, 0.0
      %v194 = vadd.f32 %v192, %v193
      %v195 = vrot.slane %v194, 4
      %v196 = vadd.f32 %v194, %v195
      %v197 = vrot.slane %v196, 2
      %v198 = vadd.f32 %v196, %v197
      %v199 = vrot.slane %v198, 1
      %v200 = vadd.f32 %v198, %v199
      %v201 = vrcp.pop 64.0
      %v202 = vmul.f32 %v200, %v201
      %v203 = vsub.f32 %v171, %v202
      %v204 = vsub.f32 %v172, %v202
      %v205 = vsub.f32 %v173, %v202
      %v206 = vsub.f32 %v174, %v202
      %v207 = vsub.f32 %v175, %v202
      %v208 = vsub.f32 %v176, %v202
      %v209 = vsub.f32 %v177, %v202
      %v210 = vsub.f32 %v178, %v202
      %v211 = vmul.f32 %v203, %v203
      %v212 = vmul.f32 %v204, %v204
      %v213 = vmul.f32 %v205, %v205
      %v214 = vmul.f32 %v206, %v206
      %v215 = vmul.f32 %v207, %v207
      %v216 = vmul.f32 %v208, %v208
      %v217 = vmul.f32 %v209, %v209
      %v218 = vmul.f32 %v210, %v210
      %v219 = vsel %vm179, %v211, 0.0
      %v220 = vsel %vm179, %v212, 0.0
      %v221 = vadd.f32 %v219, %v220
      %v222 = vsel %vm179, %v213, 0.0
      %v223 = vadd.f32 %v221, %v222
      %v224 = vsel %vm179, %v214, 0.0
      %v225 = vadd.f32 %v223, %v224
      %v226 = vsel %vm179, %v215, 0.0
      %v227 = vadd.f32 %v225, %v226
      %v228 = vsel %vm179, %v216, 0.0
      %v229 = vadd.f32 %v227, %v228
      %v230 = vsel %vm179, %v217, 0.0
      %v231 = vadd.f32 %v229, %v230
      %v232 = vsel %vm179, %v218, 0.0
      %v233 = vadd.f32 %v231, %v232
      %v234 = vrot.slane %v233, 4
      %v235 = vadd.f32 %v233, %v234
      %v236 = vrot.slane %v235, 2
      %v237 = vadd.f32 %v235, %v236
      %v238 = vrot.slane %v237, 1
      %v239 = vadd.f32 %v237, %v238
      %v240 = vmul.f32 %v239, %v201
      %v241 = vadd.f32 %v240, 1e-05
      %v242 = vrsqrt.pop %v241
      %v243 = vmul.f32 %v203, %v242
      %v244 = vmul.f32 %v204, %v242
      %v245 = vmul.f32 %v205, %v242
      %v246 = vmul.f32 %v206, %v242
      %v247 = vmul.f32 %v207, %v242
      %v248 = vmul.f32 %v208, %v242
      %v249 = vmul.f32 %v209, %v242
      %v250 = vmul.f32 %v210, %v242
      %v251 = vld [vmem:[%s1] sm:$0x1]
      %v253 = vlaneseq
      %v254 = vshrl.u32 %v253, 7
      %v255 = vsub.s32 0, %v254
      %v256 = vrot.slane %v251, %v255
      %v258 = vmul.f32 %v243, %v256
      %v259 = vmul.f32 %v244, %v256
      %v260 = vmul.f32 %v245, %v256
      %v261 = vmul.f32 %v246, %v256
      %v262 = vmul.f32 %v247, %v256
      %v263 = vmul.f32 %v248, %v256
      %v264 = vmul.f32 %v249, %v256
      %v265 = vmul.f32 %v250, %v256
      %v266 = vld [vmem:[%s2] sm:$0x1]
      %v268 = vlaneseq
      %v269 = vshrl.u32 %v268, 7
      %v270 = vsub.s32 0, %v269
      %v271 = vrot.slane %v266, %v270
      %v273 = vadd.f32 %v258, %v271
      %v274 = vadd.f32 %v259, %v271
      %v275 = vadd.f32 %v260, %v271
      %v276 = vadd.f32 %v261, %v271
      %v277 = vadd.f32 %v262, %v271
      %v278 = vadd.f32 %v263, %v271
      %v279 = vadd.f32 %v264, %v271
      %v280 = vadd.f32 %v265, %v271
      %vm281 = vcmp.ge.f32.partialorder %v273, 0.0
      %vm282 = vcmp.ge.f32.partialorder %v274, 0.0
      %vm283 = vcmp.ge.f32.partialorder %v275, 0.0
      %vm284 = vcmp.ge.f32.partialorder %v276, 0.0
      %vm285 = vcmp.ge.f32.partialorder %v277, 0.0
      %vm286 = vcmp.ge.f32.partialorder %v278, 0.0
      %vm287 = vcmp.ge.f32.partialorder %v279, 0.0
      %vm288 = vcmp.ge.f32.partialorder %v280, 0.0
      %v289 = vmul.f32 %v273, 0.2
      %v290 = vmul.f32 %v274, 0.2
      %v291 = vmul.f32 %v275, 0.2
      %v292 = vmul.f32 %v276, 0.2
      %v293 = vmul.f32 %v277, 0.2
      %v294 = vmul.f32 %v278, 0.2
      %v295 = vmul.f32 %v279, 0.2
      %v296 = vmul.f32 %v280, 0.2
      %v297 = vsel %vm281, %v273, %v289
      %v298 = vsel %vm282, %v274, %v290
      %v299 = vsel %vm283, %v275, %v291
      %v300 = vsel %vm284, %v276, %v292
      %v301 = vsel %vm285, %v277, %v293
      %v302 = vsel %vm286, %v278, %v294
      %v303 = vsel %vm287, %v279, %v295
      %v304 = vsel %vm288, %v280, %v296
      %305 = vst.msk [vmem:[%s170] sm:$0xff] %vm179, %v297
      %306 = vst.msk [vmem:[%s170 + $0x8] sm:$0xff] %vm179, %v298
      %307 = vst.msk [vmem:[%s170 + $0x10] sm:$0xff] %vm179, %v299
      %308 = vst.msk [vmem:[%s170 + $0x18] sm:$0xff] %vm179, %v300
      %309 = vst.msk [vmem:[%s170 + $0x20] sm:$0xff] %vm179, %v301
      %310 = vst.msk [vmem:[%s170 + $0x28] sm:$0xff] %vm179, %v302
      %311 = vst.msk [vmem:[%s170 + $0x30] sm:$0xff] %vm179, %v303
      %312 = vst.msk [vmem:[%s170 + $0x38] sm:$0xff] %vm179, %v304
      %p313 = scmp.lt.s32.totalorder %s14, 1
      %s314 = scalar_select %p313, %s14, 1
      %s315 = smul.addr %s314, 8
      %s316 = smul.addr %s315, 8
      %s317 = scalar_lea.vmem %s3, %s316
      // Predicated region
      $region33: #{_lambda_.8} parent=31 // pred_check
        %p318 = pneg %p100
      $region34: #{_lambda_.8} parent=31 // pred_check_branch
        %320 = sbr.rel (%p318) target = $region36
      $region35: #{_lambda_.8} parent=31 // pred_region
        _
      $region36: #{_lambda_.8} parent=31 // pred_fallthru
        _
    $region32: #{_lambda_.8} parent=5 // pred_fallthru
      _
    %p321 = scmp.le.s32.totalorder 2, %s9
    // Predicated region
    $region37: #{_lambda_.8} parent=5 // pred_check
      %p322 = pneg %p321
    $region38: #{_lambda_.8} parent=5 // pred_check_branch
      %324 = sbr.rel (%p322) target = $region40
    $region39: #{_lambda_.8} parent=5 // pred_region
      %s325 = ssub.s32 %s9, 2
      // Predicated region
      $region41: #{_lambda_.8} parent=39 // pred_check
        %p326 = pneg %p106
      $region42: #{_lambda_.8} parent=39 // pred_check_branch
        %328 = sbr.rel (%p326) target = $region44
      $region43: #{_lambda_.8} parent=39 // pred_region
        %p329 = scmp.lt.s32.totalorder %s15, 1
        %s330 = scalar_select %p329, %s15, 1
        %s331 = smul.addr %s330, 8
        %s332 = smul.addr %s331, 8
        %s333 = scalar_lea.vmem %s3, %s332
      $region44: #{_lambda_.8} parent=39 // pred_fallthru
        _
    $region40: #{_lambda_.8} parent=5 // pred_fallthru
      _
  $region6: #{_lambda_.8} parent=0 // loop_footer
    %s13 = sadd.s32 1, %s9
  $region7: #{_lambda_.8} parent=0 // loop_footer_branch
    %8 = sbr.rel target = $region3
  $region8: #{_lambda_.8} parent=0 // loop_exit
    _

// kernel: _lambda_.5
$region0: #{_lambda_.5}
  #allocation0 [shape = 'u32[]', space=smem, size = 0x4, offset = 0x4, fixed_abs, tag = 'smem constant byte address 0x4 - core index']
  #allocation1 [shape = 'u32[144,128]{1,0:T(1,128)}', space=vmem, size = 0x12000, scoped, tag = 'internal scratch']
  #allocation2 [shape = 'f32[128,128]{1,0:T(8,128)}', space=vmem, size = 0x10000, scoped, tag = 'scratch operand']
  %s0 = inlined_call_operand.vmem [shape: bf16[512,128], index: 0, kind: input, shape index: {}]
  %s1 = inlined_call_operand.vmem [shape: bf16[128,128], index: 1, kind: input, shape index: {}]
  %s2 = inlined_call_operand.vmem [shape: f32[1,128], index: 2, kind: input, shape index: {}]
  %s3 = inlined_call_operand.vmem [shape: f32[512,128], index: 3, kind: output, shape index: {}]
  %s4 = sld [smem:[#allocation0]]
  $region53: #{_lambda_.5} parent=0
    _
  %s6 = ssub.s32 1, %s4
  %s7 = scalar_select 0, %s6, %s4
  loop: start=0, step=1, limit=6
  $region2: #{_lambda_.5} parent=0 // loop_pre_header
    _
  $region3: #{_lambda_.5} parent=0 // loop_header
    %s9 = sphi 0, %s13
    %p10 = scmp.ge.s32.totalorder %s9, 6
    %s16 = sphi 0, %s35
    %s17 = sphi 0, %s31
    %s18 = sphi 0, %s27
    %s19 = sphi 0, %s16
    %s20 = sphi 0, %s17
    %s21 = sphi 0, %s18
    %s22 = sphi 0, %s19
    %s23 = sphi 0, %s20
    %s24 = sphi 0, %s21
    %s40 = sphi 0, %s42
    %s43 = sphi 0, %s40
    %s44 = sphi 0, %s43
    %s60 = sphi 0, %s44
    %s68 = sphi 0, %s70
    %s71 = sphi 0, %s68
    %s72 = sphi 0, %s71
    %s88 = sphi 0, %s72
    %s94 = sphi 0, %s96
    %s97 = sphi 0, %s94
    %s98 = sphi 0, %s97
    %s114 = sphi 0, %s98
    %s122 = sphi 0, %s124
    %s125 = sphi 0, %s122
    %s126 = sphi 0, %s125
    %s142 = sphi 0, %s126
  $region4: #{_lambda_.5} parent=0 // loop_header_branch
    %12 = sbr.rel (%p10) target = $region8
  $region5: #{_lambda_.5} parent=0 // loop_body
    %s14 = ssub.s32 %s9, 1
    %s15 = ssub.s32 %s9, 2
    %s25 = sadd.s32 1, %s18
    %p26 = scmp.ge.s32.totalorder %s25, 1
    %s27 = scalar_select %p26, 0, %s25
    %s28 = sadd.s32 1, %s17
    %s29 = scalar_select %p26, %s28, %s17
    %p30 = scmp.ge.s32.totalorder %s29, 1
    %s31 = scalar_select %p30, 0, %s29
    %s32 = sadd.s32 1, %s16
    %s33 = scalar_select %p30, %s32, %s16
    %p34 = scmp.ge.s32.totalorder %s33, 4
    %s35 = scalar_select %p34, 0, %s33
    %s36 = ssub.s32 %s16, %s35
    %s37 = ssub.s32 %s18, %s27
    %s38 = sor.u32 %s36, %s37
    %p39 = scmp.eq.s32.totalorder %s38, 0
    %s41 = sadd.s32 %s40, 1
    %s42 = scalar_select %p39, %s40, %s41
    %p45 = pneg %p39
    %p46 = scmp.eq.s32.totalorder %s9, 3
    %p47 = por %p45, %p46
    %p48 = scmp.ne.s32.totalorder %s40, %s43
    %p49 = scmp.eq.s32.totalorder %s9, 0
    %p50 = por %p48, %p49
    %p51 = scmp.ne.s32.totalorder %s40, %s43
    %p52 = scmp.eq.s32.totalorder %s14, 3
    %p53 = por %p51, %p52
    %p54 = scmp.ne.s32.totalorder %s43, %s44
    %p55 = scmp.eq.s32.totalorder %s14, 0
    %p56 = por %p54, %p55
    %p57 = scmp.ne.s32.totalorder %s43, %s44
    %p58 = scmp.eq.s32.totalorder %s15, 3
    %p59 = por %p57, %p58
    %p61 = scmp.ne.s32.totalorder %s44, %s60
    %p62 = scmp.eq.s32.totalorder %s15, 0
    %p63 = por %p61, %p62
    %s64 = ssub.s32 %s18, %s27
    %s65 = ssub.s32 %s17, %s31
    %s66 = sor.u32 %s64, %s65
    %p67 = scmp.eq.s32.totalorder %s66, 0
    %s69 = sadd.s32 %s68, 1
    %s70 = scalar_select %p67, %s68, %s69
    %p73 = pneg %p67
    %p74 = scmp.eq.s32.totalorder %s9, 3
    %p75 = por %p73, %p74
    %p76 = scmp.ne.s32.totalorder %s68, %s71
    %p77 = scmp.eq.s32.totalorder %s9, 0
    %p78 = por %p76, %p77
    %p79 = scmp.ne.s32.totalorder %s68, %s71
    %p80 = scmp.eq.s32.totalorder %s14, 3
    %p81 = por %p79, %p80
    %p82 = scmp.ne.s32.totalorder %s71, %s72
    %p83 = scmp.eq.s32.totalorder %s14, 0
    %p84 = por %p82, %p83
    %p85 = scmp.ne.s32.totalorder %s71, %s72
    %p86 = scmp.eq.s32.totalorder %s15, 3
    %p87 = por %p85, %p86
    %p89 = scmp.ne.s32.totalorder %s72, %s88
    %p90 = scmp.eq.s32.totalorder %s15, 0
    %p91 = por %p89, %p90
    %s92 = ssub.s32 %s17, %s31
    %p93 = scmp.eq.s32.totalorder %s92, 0
    %s95 = sadd.s32 %s94, 1
    %s96 = scalar_select %p93, %s94, %s95
    %p99 = pneg %p93
    %p100 = scmp.eq.s32.totalorder %s9, 3
    %p101 = por %p99, %p100
    %p102 = scmp.ne.s32.totalorder %s94, %s97
    %p103 = scmp.eq.s32.totalorder %s9, 0
    %p104 = por %p102, %p103
    %p105 = scmp.ne.s32.totalorder %s94, %s97
    %p106 = scmp.eq.s32.totalorder %s14, 3
    %p107 = por %p105, %p106
    %p108 = scmp.ne.s32.totalorder %s97, %s98
    %p109 = scmp.eq.s32.totalorder %s14, 0
    %p110 = por %p108, %p109
    %p111 = scmp.ne.s32.totalorder %s97, %s98
    %p112 = scmp.eq.s32.totalorder %s15, 3
    %p113 = por %p111, %p112
    %p115 = scmp.ne.s32.totalorder %s98, %s114
    %p116 = scmp.eq.s32.totalorder %s15, 0
    %p117 = por %p115, %p116
    %s118 = ssub.s32 %s16, %s35
    %s119 = ssub.s32 %s17, %s31
    %s120 = sor.u32 %s118, %s119
    %p121 = scmp.eq.s32.totalorder %s120, 0
    %s123 = sadd.s32 %s122, 1
    %s124 = scalar_select %p121, %s122, %s123
    %p127 = pneg %p121
    %p128 = scmp.eq.s32.totalorder %s9, 3
    %p129 = por %p127, %p128
    %p130 = scmp.ne.s32.totalorder %s122, %s125
    %p131 = scmp.eq.s32.totalorder %s9, 0
    %p132 = por %p130, %p131
    %p133 = scmp.ne.s32.totalorder %s122, %s125
    %p134 = scmp.eq.s32.totalorder %s14, 3
    %p135 = por %p133, %p134
    %p136 = scmp.ne.s32.totalorder %s125, %s126
    %p137 = scmp.eq.s32.totalorder %s14, 0
    %p138 = por %p136, %p137
    %p139 = scmp.ne.s32.totalorder %s125, %s126
    %p140 = scmp.eq.s32.totalorder %s15, 3
    %p141 = por %p139, %p140
    %p143 = scmp.ne.s32.totalorder %s126, %s142
    %p144 = scmp.eq.s32.totalorder %s15, 0
    %p145 = por %p143, %p144
    %p146 = scmp.le.s32.totalorder 1, %s9
    %p147 = scmp.lt.s32.totalorder %s9, 5
    %p148 = pnand %p146, %p147
    %p149 = pneg %p148
    // Predicated region
    $region9: #{_lambda_.5} parent=5 // pred_check
      _
    $region10: #{_lambda_.5} parent=5 // pred_check_branch
      %151 = sbr.rel (%p148) target = $region12
    $region11: #{_lambda_.5} parent=5 // pred_region
      %s152 = ssub.s32 %s9, 1
      // Predicated region
      $region13: #{_lambda_.5} parent=11 // pred_check
        %p153 = pneg %p84
      $region14: #{_lambda_.5} parent=11 // pred_check_branch
        %155 = sbr.rel (%p153) target = $region16
      $region15: #{_lambda_.5} parent=11 // pred_region
        %s156 = smul.u32 16, %s21
        %p157 = scmp.lt.s32.totalorder %s156, 15
        %s158 = scalar_select %p157, %s156, 15
        %p159 = scmp.lt.s32.totalorder %s20, 0
        %s160 = scalar_select %p159, %s20, 0
        %s161 = sadd.s32 %s160, %s158
        %s162 = smul.addr %s161, 4
        %s163 = scalar_lea.vmem %s1, %s162
        %s164 = smul.u32 16, %s21
      $region16: #{_lambda_.5} parent=11 // pred_fallthru
        _
      // Predicated region
      $region17: #{_lambda_.5} parent=11 // pred_check
        %p165 = pneg %p110
      $region18: #{_lambda_.5} parent=11 // pred_check_branch
        %167 = sbr.rel (%p165) target = $region20
      $region19: #{_lambda_.5} parent=11 // pred_region
        %p168 = scmp.lt.s32.totalorder %s20, 0
        %s169 = scalar_select %p168, %s20, 0
        %s170 = scalar_lea.vmem %s2, %s169
      $region20: #{_lambda_.5} parent=11 // pred_fallthru
        _
    $region12: #{_lambda_.5} parent=5 // pred_fallthru
      _
    %p171 = scmp.lt.s32.totalorder %s9, 4
    // Predicated region
    $region21: #{_lambda_.5} parent=5 // pred_check
      %p172 = pneg %p171
    $region22: #{_lambda_.5} parent=5 // pred_check_branch
      %174 = sbr.rel (%p172) target = $region24
    $region23: #{_lambda_.5} parent=5 // pred_region
      // Predicated region
      $region25: #{_lambda_.5} parent=23 // pred_check
        %p175 = pneg %p50
      $region26: #{_lambda_.5} parent=23 // pred_check_branch
        %177 = sbr.rel (%p175) target = $region28
      $region27: #{_lambda_.5} parent=23 // pred_region
        %s178 = smul.u32 16, %s16
        %p179 = scmp.lt.s32.totalorder %s178, 63
        %s180 = scalar_select %p179, %s178, 63
        %p181 = scmp.lt.s32.totalorder %s18, 0
        %s182 = scalar_select %p181, %s18, 0
        %s183 = sadd.s32 %s182, %s180
        %s184 = smul.addr %s183, 4
        %s185 = scalar_lea.vmem %s0, %s184
        %s186 = smul.u32 16, %s16
      $region28: #{_lambda_.5} parent=23 // pred_fallthru
        _
    $region24: #{_lambda_.5} parent=5 // pred_fallthru
      _
    %p187 = scmp.le.s32.totalorder 1, %s9
    %p188 = scmp.lt.s32.totalorder %s9, 5
    %p189 = pnand %p187, %p188
    %p190 = pneg %p189
    // Predicated region
    $region29: #{_lambda_.5} parent=5 // pred_check
      _
    $region30: #{_lambda_.5} parent=5 // pred_check_branch
      %192 = sbr.rel (%p189) target = $region32
    $region31: #{_lambda_.5} parent=5 // pred_region
      %s193 = ssub.s32 %s9, 1
      %s194 = smul.u32 16, %s19
      %p195 = scmp.lt.s32.totalorder %s194, 63
      %s196 = scalar_select %p195, %s194, 63
      %p197 = scmp.lt.s32.totalorder %s21, 0
      %s198 = scalar_select %p197, %s21, 0
      %s199 = sadd.s32 %s198, %s196
      %s200 = smul.addr %s199, 4
      %s201 = scalar_lea.vmem %s0, %s200
      %p202 = pneg %p56
      %p203 = pneg %p53
      %s204 = smul.u32 16, %s21
      %p205 = scmp.lt.s32.totalorder %s204, 15
      %s206 = scalar_select %p205, %s204, 15
      %p207 = scmp.lt.s32.totalorder %s20, 0
      %s208 = scalar_select %p207, %s20, 0
      %s209 = sadd.s32 %s208, %s206
      %s210 = smul.addr %s209, 4
      %s211 = scalar_lea.vmem %s1, %s210
      %p212 = pneg %p84
      %p213 = pneg %p81
      %p214 = scmp.lt.s32.totalorder %s20, 0
      %s215 = scalar_select %p214, %s20, 0
      %s216 = scalar_lea.vmem %s2, %s215
      %p217 = pneg %p110
      %p218 = pneg %p107
      %p219 = pneg %p138
      %p220 = pneg %p135
      %s221 = smul.u32 16, %s19
      %p222 = scmp.lt.s32.totalorder %s221, 63
      %s223 = scalar_select %p222, %s221, 63
      %p224 = scmp.lt.s32.totalorder %s20, 0
      %s225 = scalar_select %p224, %s20, 0
      %s226 = sadd.s32 %s225, %s223
      %s227 = smul.addr %s226, 8
      %s228 = scalar_lea.vmem %s3, %s227
      %s229 = smul.u32 16, %s19
      %p230 = scmp.lt.s32.totalorder %s229, 63
      %s231 = scalar_select %p230, %s229, 63
      %p232 = scmp.lt.s32.totalorder %s21, 0
      %s233 = scalar_select %p232, %s21, 0
      %s234 = sadd.s32 %s233, %s231
      %s235 = smul.addr %s234, 4
      %s236 = scalar_lea.vmem %s0, %s235
      %s237 = smul.u32 16, %s19
      %s238 = smul.u32 16, %s21
      %p239 = scmp.lt.s32.totalorder %s238, 15
      %s240 = scalar_select %p239, %s238, 15
      %p241 = scmp.lt.s32.totalorder %s20, 0
      %s242 = scalar_select %p241, %s20, 0
      %s243 = sadd.s32 %s242, %s240
      %s244 = smul.addr %s243, 4
      %s245 = scalar_lea.vmem %s1, %s244
      %s246 = smul.u32 16, %s21
      %p247 = scmp.lt.s32.totalorder %s20, 0
      %s248 = scalar_select %p247, %s20, 0
      %s249 = scalar_lea.vmem %s2, %s248
      %s250 = smul.u32 16, %s19
      %p251 = scmp.lt.s32.totalorder %s250, 63
      %s252 = scalar_select %p251, %s250, 63
      %p253 = scmp.lt.s32.totalorder %s20, 0
      %s254 = scalar_select %p253, %s20, 0
      %s255 = sadd.s32 %s254, %s252
      %s256 = smul.addr %s255, 8
      %s257 = scalar_lea.vmem %s3, %s256
      %s258 = smul.u32 16, %s19
      %p260 = scmp.eq.s32.totalorder %s21, 0
      // Predicated region
      $region33: #{_lambda_.5} parent=31 // pred_check
        %p261 = pneg %p260
      $region34: #{_lambda_.5} parent=31 // pred_check_branch
        %263 = sbr.rel (%p261) target = $region36
      $region35: #{_lambda_.5} parent=31 // pred_region
        %264 = vst [vmem:[#allocation2] sm:$0xff] 0.0
        %265 = vst [vmem:[#allocation2 + $0x8] sm:$0xff] 0.0
        %266 = vst [vmem:[#allocation2 + $0x10] sm:$0xff] 0.0
        %267 = vst [vmem:[#allocation2 + $0x18] sm:$0xff] 0.0
        %268 = vst [vmem:[#allocation2 + $0x20] sm:$0xff] 0.0
        %269 = vst [vmem:[#allocation2 + $0x28] sm:$0xff] 0.0
        %270 = vst [vmem:[#allocation2 + $0x30] sm:$0xff] 0.0
        %271 = vst [vmem:[#allocation2 + $0x38] sm:$0xff] 0.0
        %272 = vst [vmem:[#allocation2 + $0x40] sm:$0xff] 0.0
        %273 = vst [vmem:[#allocation2 + $0x48] sm:$0xff] 0.0
        %274 = vst [vmem:[#allocation2 + $0x50] sm:$0xff] 0.0
        %275 = vst [vmem:[#allocation2 + $0x58] sm:$0xff] 0.0
        %276 = vst [vmem:[#allocation2 + $0x60] sm:$0xff] 0.0
        %277 = vst [vmem:[#allocation2 + $0x68] sm:$0xff] 0.0
        %278 = vst [vmem:[#allocation2 + $0x70] sm:$0xff] 0.0
        %279 = vst [vmem:[#allocation2 + $0x78] sm:$0xff] 0.0
      $region36: #{_lambda_.5} parent=31 // pred_fallthru
        _
      %v280 = vld [vmem:[#allocation2] sm:$0xff]
      %v281 = vld [vmem:[#allocation2 + $0x8] sm:$0xff]
      %v282 = vld [vmem:[#allocation2 + $0x10] sm:$0xff]
      %v283 = vld [vmem:[#allocation2 + $0x18] sm:$0xff]
      %v284 = vld [vmem:[#allocation2 + $0x20] sm:$0xff]
      %v285 = vld [vmem:[#allocation2 + $0x28] sm:$0xff]
      %v286 = vld [vmem:[#allocation2 + $0x30] sm:$0xff]
      %v287 = vld [vmem:[#allocation2 + $0x38] sm:$0xff]
      %v288 = vld [vmem:[#allocation2 + $0x40] sm:$0xff]
      %v289 = vld [vmem:[#allocation2 + $0x48] sm:$0xff]
      %v290 = vld [vmem:[#allocation2 + $0x50] sm:$0xff]
      %v291 = vld [vmem:[#allocation2 + $0x58] sm:$0xff]
      %v292 = vld [vmem:[#allocation2 + $0x60] sm:$0xff]
      %v293 = vld [vmem:[#allocation2 + $0x68] sm:$0xff]
      %v294 = vld [vmem:[#allocation2 + $0x70] sm:$0xff]
      %v295 = vld [vmem:[#allocation2 + $0x78] sm:$0xff]
      %v296 = vld [vmem:[%s236] sm:$0xf]
      %v297 = vld [vmem:[%s236 + $0x4] sm:$0xf]
      %v298 = vld [vmem:[%s236 + $0x8] sm:$0xf]
      %v299 = vld [vmem:[%s236 + $0xc] sm:$0xf]
      %v300 = vld [vmem:[%s236 + $0x10] sm:$0xf]
      %v301 = vld [vmem:[%s236 + $0x14] sm:$0xf]
      %v302 = vld [vmem:[%s236 + $0x18] sm:$0xf]
      %v303 = vld [vmem:[%s236 + $0x1c] sm:$0xf]
      %v304 = vld [vmem:[%s236 + $0x20] sm:$0xf]
      %v305 = vld [vmem:[%s236 + $0x24] sm:$0xf]
      %v306 = vld [vmem:[%s236 + $0x28] sm:$0xf]
      %v307 = vld [vmem:[%s236 + $0x2c] sm:$0xf]
      %v308 = vld [vmem:[%s236 + $0x30] sm:$0xf]
      %v309 = vld [vmem:[%s236 + $0x34] sm:$0xf]
      %v310 = vld [vmem:[%s236 + $0x38] sm:$0xf]
      %v311 = vld [vmem:[%s236 + $0x3c] sm:$0xf]
      %v312 = vld [vmem:[%s245] sm:$0xf]
      %v313 = vld [vmem:[%s245 + $0x4] sm:$0xf]
      %v314 = vld [vmem:[%s245 + $0x8] sm:$0xf]
      %v315 = vld [vmem:[%s245 + $0xc] sm:$0xf]
      %v316 = vld [vmem:[%s245 + $0x10] sm:$0xf]
      %v317 = vld [vmem:[%s245 + $0x14] sm:$0xf]
      %v318 = vld [vmem:[%s245 + $0x18] sm:$0xf]
      %v319 = vld [vmem:[%s245 + $0x1c] sm:$0xf]
      %v320 = vld [vmem:[%s245 + $0x20] sm:$0xf]
      %v321 = vld [vmem:[%s245 + $0x24] sm:$0xf]
      %v322 = vld [vmem:[%s245 + $0x28] sm:$0xf]
      %v323 = vld [vmem:[%s245 + $0x2c] sm:$0xf]
      %v324 = vld [vmem:[%s245 + $0x30] sm:$0xf]
      %v325 = vld [vmem:[%s245 + $0x34] sm:$0xf]
      %v326 = vld [vmem:[%s245 + $0x38] sm:$0xf]
      %v327 = vld [vmem:[%s245 + $0x3c] sm:$0xf]
      %v344 = vunpack.c.l.b16 %v296
      %v345 = vunpack.c.l.b16 %v297
      %v346 = vunpack.c.l.b16 %v298
      %v347 = vunpack.c.l.b16 %v299
      %v348 = vunpack.c.l.b16 %v300
      %v349 = vunpack.c.l.b16 %v301
      %v350 = vunpack.c.l.b16 %v302
      %v351 = vunpack.c.l.b16 %v303
      %v352 = vunpack.c.l.b16 %v304
      %v353 = vunpack.c.l.b16 %v305
      %v354 = vunpack.c.l.b16 %v306
      %v355 = vunpack.c.l.b16 %v307
      %v356 = vunpack.c.l.b16 %v308
      %v357 = vunpack.c.l.b16 %v309
      %v358 = vunpack.c.l.b16 %v310
      %v359 = vunpack.c.l.b16 %v311
      %v360 = vpack.c.b16 %v345, %v344
      %v361 = vpack.c.b16 %v347, %v346
      %v362 = vpack.c.b16 %v349, %v348
      %v363 = vpack.c.b16 %v351, %v350
      %v364 = vpack.c.b16 %v353, %v352
      %v365 = vpack.c.b16 %v355, %v354
      %v366 = vpack.c.b16 %v357, %v356
      %v367 = vpack.c.b16 %v359, %v358
      %v392 = vunpack.c.l.b16 %v312
      %v393 = vunpack.c.l.b16 %v313
      %v394 = vunpack.c.l.b16 %v314
      %v395 = vunpack.c.l.b16 %v315
      %v396 = vunpack.c.l.b16 %v316
      %v397 = vunpack.c.l.b16 %v317
      %v398 = vunpack.c.l.b16 %v318
      %v399 = vunpack.c.l.b16 %v319
      %v400 = vunpack.c.l.b16 %v320
      %v401 = vunpack.c.l.b16 %v321
      %v402 = vunpack.c.l.b16 %v322
      %v403 = vunpack.c.l.b16 %v323
      %v404 = vunpack.c.l.b16 %v324
      %v405 = vunpack.c.l.b16 %v325
      %v406 = vunpack.c.l.b16 %v326
      %v407 = vunpack.c.l.b16 %v327
      %v408 = vpack.c.b16 %v393, %v392
      %v409 = vpack.c.b16 %v395, %v394
      %v410 = vpack.c.b16 %v397, %v396
      %v411 = vpack.c.b16 %v399, %v398
      %v412 = vpack.c.b16 %v401, %v400
      %v413 = vpack.c.b16 %v403, %v402
      %v414 = vpack.c.b16 %v405, %v404
      %v415 = vpack.c.b16 %v407, %v406
      %424 = vmatprep.subr.bf16.mxu0 0
      %425 = vmatpush1.bf16.msra.mxu0 %v415
      %426 = vmatprep.subr.bf16.mxu0 0
      %427 = vmatpush1.bf16.msra.mxu0 %v414
      %428 = vmatprep.subr.bf16.mxu0 0
      %429 = vmatpush1.bf16.msra.mxu0 %v413
      %430 = vmatprep.subr.bf16.mxu0 0
      %431 = vmatpush1.bf16.msra.mxu0 %v412
      %432 = vmatprep.subr.bf16.mxu0 0
      %433 = vmatpush1.bf16.msra.mxu0 %v411
      %434 = vmatprep.subr.bf16.mxu0 0
      %435 = vmatpush1.bf16.msra.mxu0 %v410
      %436 = vmatprep.subr.bf16.mxu0 0
      %437 = vmatpush1.bf16.msra.mxu0 %v409
      %438 = vmatprep.subr.bf16.mxu0 0
      %439 = vmatpush1.bf16.msra.mxu0 %v408
      %440 = vmatprep.subr.bf16.mxu0 0
      %441 = vmatpush2.bf16.msra.mxu0 0
      %442 = vmatprep.subr.bf16.mxu0 0
      %443 = vmatpush2.bf16.msra.mxu0 0
      %444 = vmatprep.subr.bf16.mxu0 0
      %445 = vmatpush2.bf16.msra.mxu0 0
      %446 = vmatprep.subr.bf16.mxu0 0
      %447 = vmatpush2.bf16.msra.mxu0 0
      %448 = vmatprep.subr.bf16.mxu0 0
      %449 = vmatpush2.bf16.msra.mxu0 0
      %450 = vmatprep.subr.bf16.mxu0 0
      %451 = vmatpush2.bf16.msra.mxu0 0
      %452 = vmatprep.subr.bf16.mxu0 0
      %453 = vmatpush2.bf16.msra.mxu0 0
      %454 = vmatprep.subr.bf16.mxu0 0
      %455 = vmatpush2.bf16.msra.mxu0 0
      %456 = vmatprep.mubr.bf16.mxu0 0
      %457 = vmatmul.mubr.bf16.gmra.mxu0 %v360
      %v458 = vpop.f32.mrf.mxu0
      %v459 = vadd.f32 0.0, %v458
      %v460 = vpop.f32.mrf.mxu0
      %v461 = vpop.f32.mrf.mxu0
      %v462 = vadd.f32 0.0, %v461
      %v463 = vpop.f32.mrf.mxu0
      %464 = vmatprep.mubr.bf16.mxu0 0
      %465 = vmatmul.mubr.bf16.gmra.mxu0 %v361
      %v466 = vpop.f32.mrf.mxu0
      %v467 = vadd.f32 0.0, %v466
      %v468 = vpop.f32.mrf.mxu0
      %v469 = vpop.f32.mrf.mxu0
      %v470 = vadd.f32 0.0, %v469
      %v471 = vpop.f32.mrf.mxu0
      %472 = vmatprep.mubr.bf16.mxu0 0
      %473 = vmatmul.mubr.bf16.gmra.mxu0 %v362
      %v474 = vpop.f32.mrf.mxu0
      %v475 = vadd.f32 0.0, %v474
      %v476 = vpop.f32.mrf.mxu0
      %v477 = vpop.f32.mrf.mxu0
      %v478 = vadd.f32 0.0, %v477
      %v479 = vpop.f32.mrf.mxu0
      %480 = vmatprep.mubr.bf16.mxu0 0
      %481 = vmatmul.mubr.bf16.gmra.mxu0 %v363
      %v482 = vpop.f32.mrf.mxu0
      %v483 = vadd.f32 0.0, %v482
      %v484 = vpop.f32.mrf.mxu0
      %v485 = vpop.f32.mrf.mxu0
      %v486 = vadd.f32 0.0, %v485
      %v487 = vpop.f32.mrf.mxu0
      %488 = vmatprep.mubr.bf16.mxu0 0
      %489 = vmatmul.mubr.bf16.gmra.mxu0 %v364
      %v490 = vpop.f32.mrf.mxu0
      %v491 = vadd.f32 0.0, %v490
      %v492 = vpop.f32.mrf.mxu0
      %v493 = vpop.f32.mrf.mxu0
      %v494 = vadd.f32 0.0, %v493
      %v495 = vpop.f32.mrf.mxu0
      %496 = vmatprep.mubr.bf16.mxu0 0
      %497 = vmatmul.mubr.bf16.gmra.mxu0 %v365
      %v498 = vpop.f32.mrf.mxu0
      %v499 = vadd.f32 0.0, %v498
      %v500 = vpop.f32.mrf.mxu0
      %v501 = vpop.f32.mrf.mxu0
      %v502 = vadd.f32 0.0, %v501
      %v503 = vpop.f32.mrf.mxu0
      %504 = vmatprep.mubr.bf16.mxu0 0
      %505 = vmatmul.mubr.bf16.gmra.mxu0 %v366
      %v506 = vpop.f32.mrf.mxu0
      %v507 = vadd.f32 0.0, %v506
      %v508 = vpop.f32.mrf.mxu0
      %v509 = vpop.f32.mrf.mxu0
      %v510 = vadd.f32 0.0, %v509
      %v511 = vpop.f32.mrf.mxu0
      %512 = vmatprep.mubr.bf16.mxu0 0
      %513 = vmatmul.mubr.bf16.gmra.mxu0 %v367
      %v514 = vpop.f32.mrf.mxu0
      %v515 = vadd.f32 0.0, %v514
      %v516 = vpop.f32.mrf.mxu0
      %v517 = vpop.f32.mrf.mxu0
      %v518 = vadd.f32 0.0, %v517
      %v519 = vpop.f32.mrf.mxu0
      %520 = vdwg.mxu0
      %v521 = vadd.f32 %v280, %v459
      %v522 = vadd.f32 %v281, %v462
      %v523 = vadd.f32 %v282, %v467
      %v524 = vadd.f32 %v283, %v470
      %v525 = vadd.f32 %v284, %v475
      %v526 = vadd.f32 %v285, %v478
      %v527 = vadd.f32 %v286, %v483
      %v528 = vadd.f32 %v287, %v486
      %v529 = vadd.f32 %v288, %v491
      %v530 = vadd.f32 %v289, %v494
      %v531 = vadd.f32 %v290, %v499
      %v532 = vadd.f32 %v291, %v502
      %v533 = vadd.f32 %v292, %v507
      %v534 = vadd.f32 %v293, %v510
      %v535 = vadd.f32 %v294, %v515
      %v536 = vadd.f32 %v295, %v518
      %537 = vst [vmem:[#allocation2] sm:$0xff] %v521
      %538 = vst [vmem:[#allocation2 + $0x8] sm:$0xff] %v522
      %539 = vst [vmem:[#allocation2 + $0x10] sm:$0xff] %v523
      %540 = vst [vmem:[#allocation2 + $0x18] sm:$0xff] %v524
      %541 = vst [vmem:[#allocation2 + $0x20] sm:$0xff] %v525
      %542 = vst [vmem:[#allocation2 + $0x28] sm:$0xff] %v526
      %543 = vst [vmem:[#allocation2 + $0x30] sm:$0xff] %v527
      %544 = vst [vmem:[#allocation2 + $0x38] sm:$0xff] %v528
      %545 = vst [vmem:[#allocation2 + $0x40] sm:$0xff] %v529
      %546 = vst [vmem:[#allocation2 + $0x48] sm:$0xff] %v530
      %547 = vst [vmem:[#allocation2 + $0x50] sm:$0xff] %v531
      %548 = vst [vmem:[#allocation2 + $0x58] sm:$0xff] %v532
      %549 = vst [vmem:[#allocation2 + $0x60] sm:$0xff] %v533
      %550 = vst [vmem:[#allocation2 + $0x68] sm:$0xff] %v534
      %551 = vst [vmem:[#allocation2 + $0x70] sm:$0xff] %v535
      %552 = vst [vmem:[#allocation2 + $0x78] sm:$0xff] %v536
      // Predicated region
      $region37: #{_lambda_.5} parent=31 // pred_check
        %p553 = pneg %p260
      $region38: #{_lambda_.5} parent=31 // pred_check_branch
        %555 = sbr.rel (%p553) target = $region40
      $region39: #{_lambda_.5} parent=31 // pred_region
        %v556 = vld [vmem:[#allocation2] sm:$0xff]
        %v557 = vld [vmem:[#allocation2 + $0x8] sm:$0xff]
        %v558 = vld [vmem:[#allocation2 + $0x10] sm:$0xff]
        %v559 = vld [vmem:[#allocation2 + $0x18] sm:$0xff]
        %v560 = vld [vmem:[#allocation2 + $0x20] sm:$0xff]
        %v561 = vld [vmem:[#allocation2 + $0x28] sm:$0xff]
        %v562 = vld [vmem:[#allocation2 + $0x30] sm:$0xff]
        %v563 = vld [vmem:[#allocation2 + $0x38] sm:$0xff]
        %v564 = vld [vmem:[#allocation2 + $0x40] sm:$0xff]
        %v565 = vld [vmem:[#allocation2 + $0x48] sm:$0xff]
        %v566 = vld [vmem:[#allocation2 + $0x50] sm:$0xff]
        %v567 = vld [vmem:[#allocation2 + $0x58] sm:$0xff]
        %v568 = vld [vmem:[#allocation2 + $0x60] sm:$0xff]
        %v569 = vld [vmem:[#allocation2 + $0x68] sm:$0xff]
        %v570 = vld [vmem:[#allocation2 + $0x70] sm:$0xff]
        %v571 = vld [vmem:[#allocation2 + $0x78] sm:$0xff]
        %v572 = vld [vmem:[%s249] sm:$0x1]
        %v574 = vlaneseq
        %v575 = vshrl.u32 %v574, 7
        %v576 = vsub.s32 0, %v575
        %v577 = vrot.slane %v572, %v576
        %v579 = vadd.f32 %v556, %v577
        %v580 = vadd.f32 %v557, %v577
        %v581 = vadd.f32 %v558, %v577
        %v582 = vadd.f32 %v559, %v577
        %v583 = vadd.f32 %v560, %v577
        %v584 = vadd.f32 %v561, %v577
        %v585 = vadd.f32 %v562, %v577
        %v586 = vadd.f32 %v563, %v577
        %v587 = vadd.f32 %v564, %v577
        %v588 = vadd.f32 %v565, %v577
        %v589 = vadd.f32 %v566, %v577
        %v590 = vadd.f32 %v567, %v577
        %v591 = vadd.f32 %v568, %v577
        %v592 = vadd.f32 %v569, %v577
        %v593 = vadd.f32 %v570, %v577
        %v594 = vadd.f32 %v571, %v577
        %595 = vst [vmem:[%s257] sm:$0xff] %v579
        %596 = vst [vmem:[%s257 + $0x8] sm:$0xff] %v580
        %597 = vst [vmem:[%s257 + $0x10] sm:$0xff] %v581
        %598 = vst [vmem:[%s257 + $0x18] sm:$0xff] %v582
        %599 = vst [vmem:[%s257 + $0x20] sm:$0xff] %v583
        %600 = vst [vmem:[%s257 + $0x28] sm:$0xff] %v584
        %601 = vst [vmem:[%s257 + $0x30] sm:$0xff] %v585
        %602 = vst [vmem:[%s257 + $0x38] sm:$0xff] %v586
        %603 = vst [vmem:[%s257 + $0x40] sm:$0xff] %v587
        %604 = vst [vmem:[%s257 + $0x48] sm:$0xff] %v588
        %605 = vst [vmem:[%s257 + $0x50] sm:$0xff] %v589
        %606 = vst [vmem:[%s257 + $0x58] sm:$0xff] %v590
        %607 = vst [vmem:[%s257 + $0x60] sm:$0xff] %v591
        %608 = vst [vmem:[%s257 + $0x68] sm:$0xff] %v592
        %609 = vst [vmem:[%s257 + $0x70] sm:$0xff] %v593
        %610 = vst [vmem:[%s257 + $0x78] sm:$0xff] %v594
      $region40: #{_lambda_.5} parent=31 // pred_fallthru
        _
      %s611 = smul.u32 16, %s19
      %p612 = scmp.lt.s32.totalorder %s611, 63
      %s613 = scalar_select %p612, %s611, 63
      %p614 = scmp.lt.s32.totalorder %s20, 0
      %s615 = scalar_select %p614, %s20, 0
      %s616 = sadd.s32 %s615, %s613
      %s617 = smul.addr %s616, 8
      %s618 = scalar_lea.vmem %s3, %s617
      // Predicated region
      $region41: #{_lambda_.5} parent=31 // pred_check
        %p619 = pneg %p135
      $region42: #{_lambda_.5} parent=31 // pred_check_branch
        %621 = sbr.rel (%p619) target = $region44
      $region43: #{_lambda_.5} parent=31 // pred_region
        %s622 = smul.u32 16, %s19
      $region44: #{_lambda_.5} parent=31 // pred_fallthru
        _
    $region32: #{_lambda_.5} parent=5 // pred_fallthru
      _
    %p623 = scmp.le.s32.totalorder 2, %s9
    // Predicated region
    $region45: #{_lambda_.5} parent=5 // pred_check
      %p624 = pneg %p623
    $region46: #{_lambda_.5} parent=5 // pred_check_branch
      %626 = sbr.rel (%p624) target = $region48
    $region47: #{_lambda_.5} parent=5 // pred_region
      %s627 = ssub.s32 %s9, 2
      // Predicated region
      $region49: #{_lambda_.5} parent=47 // pred_check
        %p628 = pneg %p141
      $region50: #{_lambda_.5} parent=47 // pred_check_branch
        %630 = sbr.rel (%p628) target = $region52
      $region51: #{_lambda_.5} parent=47 // pred_region
        %s631 = smul.u32 16, %s22
        %p632 = scmp.lt.s32.totalorder %s631, 63
        %s633 = scalar_select %p632, %s631, 63
        %p634 = scmp.lt.s32.totalorder %s23, 0
        %s635 = scalar_select %p634, %s23, 0
        %s636 = sadd.s32 %s635, %s633
        %s637 = smul.addr %s636, 8
        %s638 = scalar_lea.vmem %s3, %s637
      $region52: #{_lambda_.5} parent=47 // pred_fallthru
        _
    $region48: #{_lambda_.5} parent=5 // pred_fallthru
      _
  $region6: #{_lambda_.5} parent=0 // loop_footer
    %s13 = sadd.s32 1, %s9
  $region7: #{_lambda_.5} parent=0 // loop_footer_branch
    %8 = sbr.rel target = $region3
  $region8: #{_lambda_.5} parent=0 // loop_exit
    _

// kernel: _lambda_.9
$region0: #{_lambda_.9}
  #allocation0 [shape = 'u32[]', space=smem, size = 0x4, offset = 0x4, fixed_abs, tag = 'smem constant byte address 0x4 - core index']
  #allocation1 [shape = 'u32[144,128]{1,0:T(1,128)}', space=vmem, size = 0x12000, scoped, tag = 'internal scratch']
  #allocation2 [shape = 'f32[128,128]{1,0:T(8,128)}', space=vmem, size = 0x10000, scoped, tag = 'scratch operand']
  %s0 = inlined_call_operand.vmem [shape: bf16[128,640], index: 0, kind: input, shape index: {}]
  %s1 = inlined_call_operand.vmem [shape: bf16[640,128], index: 1, kind: input, shape index: {}]
  %s2 = inlined_call_operand.vmem [shape: f32[1,128], index: 2, kind: input, shape index: {}]
  %s3 = inlined_call_operand.vmem [shape: f32[128,128], index: 3, kind: input, shape index: {}]
  %s4 = inlined_call_operand.hbm [shape: f32[128,128], index: 4, kind: output, shape index: {}]
  %s5 = sld [smem:[#allocation0]]
  $region34: #{_lambda_.9} parent=0
    _
  %s7 = ssub.s32 1, %s5
  %s8 = scalar_select 0, %s7, %s5
  $region1: #{_lambda_.9} parent=0
    #allocation3 [shape = 'u8[65536]{0}', space=vmem, size = 0x10000, scoped, tag = 'output window, operand 0, single buffered']
    #allocation4 [shape = 's32[1]{0}', space=sflag, size = 0x4, scoped, tag = 'scoped memory for _lambda_.9']
    %9 = vsyncpa [#allocation4], 0
    // Predicated region
    $region2: #{_lambda_.9} parent=1 // pred_check
      _
    $region3: #{_lambda_.9} parent=1 // pred_check_branch
      %11 = sbr.rel (0) target = $region5
    $region4: #{_lambda_.9} parent=1 // pred_region
      _
    $region5: #{_lambda_.9} parent=1 // pred_fallthru
      _
    // Predicated region
    $region6: #{_lambda_.9} parent=1 // pred_check
      _
    $region7: #{_lambda_.9} parent=1 // pred_check_branch
      %13 = sbr.rel (0) target = $region9
    $region8: #{_lambda_.9} parent=1 // pred_region
      _
    $region9: #{_lambda_.9} parent=1 // pred_fallthru
      _
    // Predicated region
    $region10: #{_lambda_.9} parent=1 // pred_check
      _
    $region11: #{_lambda_.9} parent=1 // pred_check_branch
      %15 = sbr.rel (0) target = $region13
    $region12: #{_lambda_.9} parent=1 // pred_region
      _
    $region13: #{_lambda_.9} parent=1 // pred_fallthru
      _
    // Predicated region
    $region14: #{_lambda_.9} parent=1 // pred_check
      _
    $region15: #{_lambda_.9} parent=1 // pred_check_branch
      %17 = sbr.rel (0) target = $region17
    $region16: #{_lambda_.9} parent=1 // pred_region
      _
    $region17: #{_lambda_.9} parent=1 // pred_fallthru
      _
    %p19 = scmp.eq.s32.totalorder 0, 0
    // Predicated region
    $region18: #{_lambda_.9} parent=1 // pred_check
      %p20 = pneg %p19
    $region19: #{_lambda_.9} parent=1 // pred_check_branch
      %22 = sbr.rel (%p20) target = $region21
    $region20: #{_lambda_.9} parent=1 // pred_region
      %23 = vst [vmem:[#allocation2] sm:$0xff] 0.0
      %24 = vst [vmem:[#allocation2 + $0x8] sm:$0xff] 0.0
      %25 = vst [vmem:[#allocation2 + $0x10] sm:$0xff] 0.0
      %26 = vst [vmem:[#allocation2 + $0x18] sm:$0xff] 0.0
      %27 = vst [vmem:[#allocation2 + $0x20] sm:$0xff] 0.0
      %28 = vst [vmem:[#allocation2 + $0x28] sm:$0xff] 0.0
      %29 = vst [vmem:[#allocation2 + $0x30] sm:$0xff] 0.0
      %30 = vst [vmem:[#allocation2 + $0x38] sm:$0xff] 0.0
      %31 = vst [vmem:[#allocation2 + $0x40] sm:$0xff] 0.0
      %32 = vst [vmem:[#allocation2 + $0x48] sm:$0xff] 0.0
      %33 = vst [vmem:[#allocation2 + $0x50] sm:$0xff] 0.0
      %34 = vst [vmem:[#allocation2 + $0x58] sm:$0xff] 0.0
      %35 = vst [vmem:[#allocation2 + $0x60] sm:$0xff] 0.0
      %36 = vst [vmem:[#allocation2 + $0x68] sm:$0xff] 0.0
      %37 = vst [vmem:[#allocation2 + $0x70] sm:$0xff] 0.0
      %38 = vst [vmem:[#allocation2 + $0x78] sm:$0xff] 0.0
    $region21: #{_lambda_.9} parent=1 // pred_fallthru
      _
    %v39 = vld [vmem:[#allocation2] sm:$0xff]
    %v40 = vld [vmem:[#allocation2 + $0x8] sm:$0xff]
    %v41 = vld [vmem:[#allocation2 + $0x10] sm:$0xff]
    %v42 = vld [vmem:[#allocation2 + $0x18] sm:$0xff]
    %v43 = vld [vmem:[#allocation2 + $0x20] sm:$0xff]
    %v44 = vld [vmem:[#allocation2 + $0x28] sm:$0xff]
    %v45 = vld [vmem:[#allocation2 + $0x30] sm:$0xff]
    %v46 = vld [vmem:[#allocation2 + $0x38] sm:$0xff]
    %v47 = vld [vmem:[#allocation2 + $0x40] sm:$0xff]
    %v48 = vld [vmem:[#allocation2 + $0x48] sm:$0xff]
    %v49 = vld [vmem:[#allocation2 + $0x50] sm:$0xff]
    %v50 = vld [vmem:[#allocation2 + $0x58] sm:$0xff]
    %v51 = vld [vmem:[#allocation2 + $0x60] sm:$0xff]
    %v52 = vld [vmem:[#allocation2 + $0x68] sm:$0xff]
    %v53 = vld [vmem:[#allocation2 + $0x70] sm:$0xff]
    %v54 = vld [vmem:[#allocation2 + $0x78] sm:$0xff]
    %v55 = vld [vmem:[%s0] sm:$0xff]
    %v56 = vld [vmem:[%s0 + $0x8] sm:$0xff]
    %v57 = vld [vmem:[%s0 + $0x10] sm:$0xf]
    %v58 = vld [vmem:[%s0 + $0x14] sm:$0xff]
    %v59 = vld [vmem:[%s0 + $0x1c] sm:$0xff]
    %v60 = vld [vmem:[%s0 + $0x24] sm:$0xf]
    %v61 = vld [vmem:[%s0 + $0x28] sm:$0xff]
    %v62 = vld [vmem:[%s0 + $0x30] sm:$0xff]
    %v63 = vld [vmem:[%s0 + $0x38] sm:$0xf]
    %v64 = vld [vmem:[%s0 + $0x3c] sm:$0xff]
    %v65 = vld [vmem:[%s0 + $0x44] sm:$0xff]
    %v66 = vld [vmem:[%s0 + $0x4c] sm:$0xf]
    %v67 = vld [vmem:[%s0 + $0x50] sm:$0xff]
    %v68 = vld [vmem:[%s0 + $0x58] sm:$0xff]
    %v69 = vld [vmem:[%s0 + $0x60] sm:$0xf]
    %v70 = vld [vmem:[%s0 + $0x64] sm:$0xff]
    %v71 = vld [vmem:[%s0 + $0x6c] sm:$0xff]
    %v72 = vld [vmem:[%s0 + $0x74] sm:$0xf]
    %v73 = vld [vmem:[%s0 + $0x78] sm:$0xff]
    %v74 = vld [vmem:[%s0 + $0x80] sm:$0xff]
    %v75 = vld [vmem:[%s0 + $0x88] sm:$0xf]
    %v76 = vld [vmem:[%s0 + $0x8c] sm:$0xff]
    %v77 = vld [vmem:[%s0 + $0x94] sm:$0xff]
    %v78 = vld [vmem:[%s0 + $0x9c] sm:$0xf]
    %v79 = vld [vmem:[%s0 + $0xa0] sm:$0xff]
    %v80 = vld [vmem:[%s0 + $0xa8] sm:$0xff]
    %v81 = vld [vmem:[%s0 + $0xb0] sm:$0xf]
    %v82 = vld [vmem:[%s0 + $0xb4] sm:$0xff]
    %v83 = vld [vmem:[%s0 + $0xbc] sm:$0xff]
    %v84 = vld [vmem:[%s0 + $0xc4] sm:$0xf]
    %v85 = vld [vmem:[%s0 + $0xc8] sm:$0xff]
    %v86 = vld [vmem:[%s0 + $0xd0] sm:$0xff]
    %v87 = vld [vmem:[%s0 + $0xd8] sm:$0xf]
    %v88 = vld [vmem:[%s0 + $0xdc] sm:$0xff]
    %v89 = vld [vmem:[%s0 + $0xe4] sm:$0xff]
    %v90 = vld [vmem:[%s0 + $0xec] sm:$0xf]
    %v91 = vld [vmem:[%s0 + $0xf0] sm:$0xff]
    %v92 = vld [vmem:[%s0 + $0xf8] sm:$0xff]
    %v93 = vld [vmem:[%s0 + $0x100] sm:$0xf]
    %v94 = vld [vmem:[%s0 + $0x104] sm:$0xff]
    %v95 = vld [vmem:[%s0 + $0x10c] sm:$0xff]
    %v96 = vld [vmem:[%s0 + $0x114] sm:$0xf]
    %v97 = vld [vmem:[%s0 + $0x118] sm:$0xff]
    %v98 = vld [vmem:[%s0 + $0x120] sm:$0xff]
    %v99 = vld [vmem:[%s0 + $0x128] sm:$0xf]
    %v100 = vld [vmem:[%s0 + $0x12c] sm:$0xff]
    %v101 = vld [vmem:[%s0 + $0x134] sm:$0xff]
    %v102 = vld [vmem:[%s0 + $0x13c] sm:$0xf]
    %v103 = vld [vmem:[%s1] sm:$0xf]
    %v104 = vld [vmem:[%s1 + $0x4] sm:$0xf]
    %v105 = vld [vmem:[%s1 + $0x8] sm:$0xf]
    %v106 = vld [vmem:[%s1 + $0xc] sm:$0xf]
    %v107 = vld [vmem:[%s1 + $0x10] sm:$0xf]
    %v108 = vld [vmem:[%s1 + $0x14] sm:$0xf]
    %v109 = vld [vmem:[%s1 + $0x18] sm:$0xf]
    %v110 = vld [vmem:[%s1 + $0x1c] sm:$0xf]
    %v111 = vld [vmem:[%s1 + $0x20] sm:$0xf]
    %v112 = vld [vmem:[%s1 + $0x24] sm:$0xf]
    %v113 = vld [vmem:[%s1 + $0x28] sm:$0xf]
    %v114 = vld [vmem:[%s1 + $0x2c] sm:$0xf]
    %v115 = vld [vmem:[%s1 + $0x30] sm:$0xf]
    %v116 = vld [vmem:[%s1 + $0x34] sm:$0xf]
    %v117 = vld [vmem:[%s1 + $0x38] sm:$0xf]
    %v118 = vld [vmem:[%s1 + $0x3c] sm:$0xf]
    %v119 = vld [vmem:[%s1 + $0x40] sm:$0xf]
    %v120 = vld [vmem:[%s1 + $0x44] sm:$0xf]
    %v121 = vld [vmem:[%s1 + $0x48] sm:$0xf]
    %v122 = vld [vmem:[%s1 + $0x4c] sm:$0xf]
    %v123 = vld [vmem:[%s1 + $0x50] sm:$0xf]
    %v124 = vld [vmem:[%s1 + $0x54] sm:$0xf]
    %v125 = vld [vmem:[%s1 + $0x58] sm:$0xf]
    %v126 = vld [vmem:[%s1 + $0x5c] sm:$0xf]
    %v127 = vld [vmem:[%s1 + $0x60] sm:$0xf]
    %v128 = vld [vmem:[%s1 + $0x64] sm:$0xf]
    %v129 = vld [vmem:[%s1 + $0x68] sm:$0xf]
    %v130 = vld [vmem:[%s1 + $0x6c] sm:$0xf]
    %v131 = vld [vmem:[%s1 + $0x70] sm:$0xf]
    %v132 = vld [vmem:[%s1 + $0x74] sm:$0xf]
    %v133 = vld [vmem:[%s1 + $0x78] sm:$0xf]
    %v134 = vld [vmem:[%s1 + $0x7c] sm:$0xf]
    %v135 = vld [vmem:[%s1 + $0x80] sm:$0xf]
    %v136 = vld [vmem:[%s1 + $0x84] sm:$0xf]
    %v137 = vld [vmem:[%s1 + $0x88] sm:$0xf]
    %v138 = vld [vmem:[%s1 + $0x8c] sm:$0xf]
    %v139 = vld [vmem:[%s1 + $0x90] sm:$0xf]
    %v140 = vld [vmem:[%s1 + $0x94] sm:$0xf]
    %v141 = vld [vmem:[%s1 + $0x98] sm:$0xf]
    %v142 = vld [vmem:[%s1 + $0x9c] sm:$0xf]
    %v143 = vld [vmem:[%s1 + $0xa0] sm:$0xf]
    %v144 = vld [vmem:[%s1 + $0xa4] sm:$0xf]
    %v145 = vld [vmem:[%s1 + $0xa8] sm:$0xf]
    %v146 = vld [vmem:[%s1 + $0xac] sm:$0xf]
    %v147 = vld [vmem:[%s1 + $0xb0] sm:$0xf]
    %v148 = vld [vmem:[%s1 + $0xb4] sm:$0xf]
    %v149 = vld [vmem:[%s1 + $0xb8] sm:$0xf]
    %v150 = vld [vmem:[%s1 + $0xbc] sm:$0xf]
    %v151 = vld [vmem:[%s1 + $0xc0] sm:$0xf]
    %v152 = vld [vmem:[%s1 + $0xc4] sm:$0xf]
    %v153 = vld [vmem:[%s1 + $0xc8] sm:$0xf]
    %v154 = vld [vmem:[%s1 + $0xcc] sm:$0xf]
    %v155 = vld [vmem:[%s1 + $0xd0] sm:$0xf]
    %v156 = vld [vmem:[%s1 + $0xd4] sm:$0xf]
    %v157 = vld [vmem:[%s1 + $0xd8] sm:$0xf]
    %v158 = vld [vmem:[%s1 + $0xdc] sm:$0xf]
    %v159 = vld [vmem:[%s1 + $0xe0] sm:$0xf]
    %v160 = vld [vmem:[%s1 + $0xe4] sm:$0xf]
    %v161 = vld [vmem:[%s1 + $0xe8] sm:$0xf]
    %v162 = vld [vmem:[%s1 + $0xec] sm:$0xf]
    %v163 = vld [vmem:[%s1 + $0xf0] sm:$0xf]
    %v164 = vld [vmem:[%s1 + $0xf4] sm:$0xf]
    %v165 = vld [vmem:[%s1 + $0xf8] sm:$0xf]
    %v166 = vld [vmem:[%s1 + $0xfc] sm:$0xf]
    %v167 = vld [vmem:[%s1 + $0x100] sm:$0xf]
    %v168 = vld [vmem:[%s1 + $0x104] sm:$0xf]
    %v169 = vld [vmem:[%s1 + $0x108] sm:$0xf]
    %v170 = vld [vmem:[%s1 + $0x10c] sm:$0xf]
    %v171 = vld [vmem:[%s1 + $0x110] sm:$0xf]
    %v172 = vld [vmem:[%s1 + $0x114] sm:$0xf]
    %v173 = vld [vmem:[%s1 + $0x118] sm:$0xf]
    %v174 = vld [vmem:[%s1 + $0x11c] sm:$0xf]
    %v175 = vld [vmem:[%s1 + $0x120] sm:$0xf]
    %v176 = vld [vmem:[%s1 + $0x124] sm:$0xf]
    %v177 = vld [vmem:[%s1 + $0x128] sm:$0xf]
    %v178 = vld [vmem:[%s1 + $0x12c] sm:$0xf]
    %v179 = vld [vmem:[%s1 + $0x130] sm:$0xf]
    %v180 = vld [vmem:[%s1 + $0x134] sm:$0xf]
    %v181 = vld [vmem:[%s1 + $0x138] sm:$0xf]
    %v182 = vld [vmem:[%s1 + $0x13c] sm:$0xf]
    %v231 = vunpack.c.l.b16 %v55
    %v232 = vunpack.c.h.b16 %v55
    %v233 = vunpack.c.l.b16 %v56
    %v234 = vunpack.c.h.b16 %v56
    %v235 = vunpack.c.l.b16 %v57
    %v236 = vunpack.c.l.b16 %v58
    %v237 = vunpack.c.h.b16 %v58
    %v238 = vunpack.c.l.b16 %v59
    %v239 = vunpack.c.h.b16 %v59
    %v240 = vunpack.c.l.b16 %v60
    %v241 = vunpack.c.l.b16 %v61
    %v242 = vunpack.c.h.b16 %v61
    %v243 = vunpack.c.l.b16 %v62
    %v244 = vunpack.c.h.b16 %v62
    %v245 = vunpack.c.l.b16 %v63
    %v246 = vunpack.c.l.b16 %v64
    %v247 = vunpack.c.h.b16 %v64
    %v248 = vunpack.c.l.b16 %v65
    %v249 = vunpack.c.h.b16 %v65
    %v250 = vunpack.c.l.b16 %v66
    %v251 = vunpack.c.l.b16 %v67
    %v252 = vunpack.c.h.b16 %v67
    %v253 = vunpack.c.l.b16 %v68
    %v254 = vunpack.c.h.b16 %v68
    %v255 = vunpack.c.l.b16 %v69
    %v256 = vunpack.c.l.b16 %v70
    %v257 = vunpack.c.h.b16 %v70
    %v258 = vunpack.c.l.b16 %v71
    %v259 = vunpack.c.h.b16 %v71
    %v260 = vunpack.c.l.b16 %v72
    %v261 = vunpack.c.l.b16 %v73
    %v262 = vunpack.c.h.b16 %v73
    %v263 = vunpack.c.l.b16 %v74
    %v264 = vunpack.c.h.b16 %v74
    %v265 = vunpack.c.l.b16 %v75
    %v266 = vunpack.c.l.b16 %v76
    %v267 = vunpack.c.h.b16 %v76
    %v268 = vunpack.c.l.b16 %v77
    %v269 = vunpack.c.h.b16 %v77
    %v270 = vunpack.c.l.b16 %v78
    %v271 = vunpack.c.l.b16 %v79
    %v272 = vunpack.c.h.b16 %v79
    %v273 = vunpack.c.l.b16 %v80
    %v274 = vunpack.c.h.b16 %v80
    %v275 = vunpack.c.l.b16 %v81
    %v276 = vunpack.c.l.b16 %v82
    %v277 = vunpack.c.h.b16 %v82
    %v278 = vunpack.c.l.b16 %v83
    %v279 = vunpack.c.h.b16 %v83
    %v280 = vunpack.c.l.b16 %v84
    %v281 = vunpack.c.l.b16 %v85
    %v282 = vunpack.c.h.b16 %v85
    %v283 = vunpack.c.l.b16 %v86
    %v284 = vunpack.c.h.b16 %v86
    %v285 = vunpack.c.l.b16 %v87
    %v286 = vunpack.c.l.b16 %v88
    %v287 = vunpack.c.h.b16 %v88
    %v288 = vunpack.c.l.b16 %v89
    %v289 = vunpack.c.h.b16 %v89
    %v290 = vunpack.c.l.b16 %v90
    %v291 = vunpack.c.l.b16 %v91
    %v292 = vunpack.c.h.b16 %v91
    %v293 = vunpack.c.l.b16 %v92
    %v294 = vunpack.c.h.b16 %v92
    %v295 = vunpack.c.l.b16 %v93
    %v296 = vunpack.c.l.b16 %v94
    %v297 = vunpack.c.h.b16 %v94
    %v298 = vunpack.c.l.b16 %v95
    %v299 = vunpack.c.h.b16 %v95
    %v300 = vunpack.c.l.b16 %v96
    %v301 = vunpack.c.l.b16 %v97
    %v302 = vunpack.c.h.b16 %v97
    %v303 = vunpack.c.l.b16 %v98
    %v304 = vunpack.c.h.b16 %v98
    %v305 = vunpack.c.l.b16 %v99
    %v306 = vunpack.c.l.b16 %v100
    %v307 = vunpack.c.h.b16 %v100
    %v308 = vunpack.c.l.b16 %v101
    %v309 = vunpack.c.h.b16 %v101
    %v310 = vunpack.c.l.b16 %v102
    %v311 = vpack.c.b16 %v236, %v231
    %v312 = vpack.c.b16 %v237, %v232
    %v313 = vpack.c.b16 %v238, %v233
    %v314 = vpack.c.b16 %v239, %v234
    %v315 = vpack.c.b16 %v240, %v235
    %v316 = vpack.c.b16 %v246, %v241
    %v317 = vpack.c.b16 %v247, %v242
    %v318 = vpack.c.b16 %v248, %v243
    %v319 = vpack.c.b16 %v249, %v244
    %v320 = vpack.c.b16 %v250, %v245
    %v321 = vpack.c.b16 %v256, %v251
    %v322 = vpack.c.b16 %v257, %v252
    %v323 = vpack.c.b16 %v258, %v253
    %v324 = vpack.c.b16 %v259, %v254
    %v325 = vpack.c.b16 %v260, %v255
    %v326 = vpack.c.b16 %v266, %v261
    %v327 = vpack.c.b16 %v267, %v262
    %v328 = vpack.c.b16 %v268, %v263
    %v329 = vpack.c.b16 %v269, %v264
    %v330 = vpack.c.b16 %v270, %v265
    %v331 = vpack.c.b16 %v276, %v271
    %v332 = vpack.c.b16 %v277, %v272
    %v333 = vpack.c.b16 %v278, %v273
    %v334 = vpack.c.b16 %v279, %v274
    %v335 = vpack.c.b16 %v280, %v275
    %v336 = vpack.c.b16 %v286, %v281
    %v337 = vpack.c.b16 %v287, %v282
    %v338 = vpack.c.b16 %v288, %v283
    %v339 = vpack.c.b16 %v289, %v284
    %v340 = vpack.c.b16 %v290, %v285
    %v341 = vpack.c.b16 %v296, %v291
    %v342 = vpack.c.b16 %v297, %v292
    %v343 = vpack.c.b16 %v298, %v293
    %v344 = vpack.c.b16 %v299, %v294
    %v345 = vpack.c.b16 %v300, %v295
    %v346 = vpack.c.b16 %v306, %v301
    %v347 = vpack.c.b16 %v307, %v302
    %v348 = vpack.c.b16 %v308, %v303
    %v349 = vpack.c.b16 %v309, %v304
    %v350 = vpack.c.b16 %v310, %v305
    %v471 = vunpack.c.l.b16 %v103
    %v472 = vunpack.c.l.b16 %v104
    %v473 = vunpack.c.l.b16 %v105
    %v474 = vunpack.c.l.b16 %v106
    %v475 = vunpack.c.l.b16 %v107
    %v476 = vunpack.c.l.b16 %v108
    %v477 = vunpack.c.l.b16 %v109
    %v478 = vunpack.c.l.b16 %v110
    %v479 = vunpack.c.l.b16 %v111
    %v480 = vunpack.c.l.b16 %v112
    %v481 = vunpack.c.l.b16 %v113
    %v482 = vunpack.c.l.b16 %v114
    %v483 = vunpack.c.l.b16 %v115
    %v484 = vunpack.c.l.b16 %v116
    %v485 = vunpack.c.l.b16 %v117
    %v486 = vunpack.c.l.b16 %v118
    %v487 = vunpack.c.l.b16 %v119
    %v488 = vunpack.c.l.b16 %v120
    %v489 = vunpack.c.l.b16 %v121
    %v490 = vunpack.c.l.b16 %v122
    %v491 = vunpack.c.l.b16 %v123
    %v492 = vunpack.c.l.b16 %v124
    %v493 = vunpack.c.l.b16 %v125
    %v494 = vunpack.c.l.b16 %v126
    %v495 = vunpack.c.l.b16 %v127
    %v496 = vunpack.c.l.b16 %v128
    %v497 = vunpack.c.l.b16 %v129
    %v498 = vunpack.c.l.b16 %v130
    %v499 = vunpack.c.l.b16 %v131
    %v500 = vunpack.c.l.b16 %v132
    %v501 = vunpack.c.l.b16 %v133
    %v502 = vunpack.c.l.b16 %v134
    %v503 = vunpack.c.l.b16 %v135
    %v504 = vunpack.c.l.b16 %v136
    %v505 = vunpack.c.l.b16 %v137
    %v506 = vunpack.c.l.b16 %v138
    %v507 = vunpack.c.l.b16 %v139
    %v508 = vunpack.c.l.b16 %v140
    %v509 = vunpack.c.l.b16 %v141
    %v510 = vunpack.c.l.b16 %v142
    %v511 = vunpack.c.l.b16 %v143
    %v512 = vunpack.c.l.b16 %v144
    %v513 = vunpack.c.l.b16 %v145
    %v514 = vunpack.c.l.b16 %v146
    %v515 = vunpack.c.l.b16 %v147
    %v516 = vunpack.c.l.b16 %v148
    %v517 = vunpack.c.l.b16 %v149
    %v518 = vunpack.c.l.b16 %v150
    %v519 = vunpack.c.l.b16 %v151
    %v520 = vunpack.c.l.b16 %v152
    %v521 = vunpack.c.l.b16 %v153
    %v522 = vunpack.c.l.b16 %v154
    %v523 = vunpack.c.l.b16 %v155
    %v524 = vunpack.c.l.b16 %v156
    %v525 = vunpack.c.l.b16 %v157
    %v526 = vunpack.c.l.b16 %v158
    %v527 = vunpack.c.l.b16 %v159
    %v528 = vunpack.c.l.b16 %v160
    %v529 = vunpack.c.l.b16 %v161
    %v530 = vunpack.c.l.b16 %v162
    %v531 = vunpack.c.l.b16 %v163
    %v532 = vunpack.c.l.b16 %v164
    %v533 = vunpack.c.l.b16 %v165
    %v534 = vunpack.c.l.b16 %v166
    %v535 = vunpack.c.l.b16 %v167
    %v536 = vunpack.c.l.b16 %v168
    %v537 = vunpack.c.l.b16 %v169
    %v538 = vunpack.c.l.b16 %v170
    %v539 = vunpack.c.l.b16 %v171
    %v540 = vunpack.c.l.b16 %v172
    %v541 = vunpack.c.l.b16 %v173
    %v542 = vunpack.c.l.b16 %v174
    %v543 = vunpack.c.l.b16 %v175
    %v544 = vunpack.c.l.b16 %v176
    %v545 = vunpack.c.l.b16 %v177
    %v546 = vunpack.c.l.b16 %v178
    %v547 = vunpack.c.l.b16 %v179
    %v548 = vunpack.c.l.b16 %v180
    %v549 = vunpack.c.l.b16 %v181
    %v550 = vunpack.c.l.b16 %v182
    %v551 = vpack.c.b16 %v472, %v471
    %v552 = vpack.c.b16 %v474, %v473
    %v553 = vpack.c.b16 %v476, %v475
    %v554 = vpack.c.b16 %v478, %v477
    %v555 = vpack.c.b16 %v480, %v479
    %v556 = vpack.c.b16 %v482, %v481
    %v557 = vpack.c.b16 %v484, %v483
    %v558 = vpack.c.b16 %v486, %v485
    %v559 = vpack.c.b16 %v488, %v487
    %v560 = vpack.c.b16 %v490, %v489
    %v561 = vpack.c.b16 %v492, %v491
    %v562 = vpack.c.b16 %v494, %v493
    %v563 = vpack.c.b16 %v496, %v495
    %v564 = vpack.c.b16 %v498, %v497
    %v565 = vpack.c.b16 %v500, %v499
    %v566 = vpack.c.b16 %v502, %v501
    %v567 = vpack.c.b16 %v504, %v503
    %v568 = vpack.c.b16 %v506, %v505
    %v569 = vpack.c.b16 %v508, %v507
    %v570 = vpack.c.b16 %v510, %v509
    %v571 = vpack.c.b16 %v512, %v511
    %v572 = vpack.c.b16 %v514, %v513
    %v573 = vpack.c.b16 %v516, %v515
    %v574 = vpack.c.b16 %v518, %v517
    %v575 = vpack.c.b16 %v520, %v519
    %v576 = vpack.c.b16 %v522, %v521
    %v577 = vpack.c.b16 %v524, %v523
    %v578 = vpack.c.b16 %v526, %v525
    %v579 = vpack.c.b16 %v528, %v527
    %v580 = vpack.c.b16 %v530, %v529
    %v581 = vpack.c.b16 %v532, %v531
    %v582 = vpack.c.b16 %v534, %v533
    %v583 = vpack.c.b16 %v536, %v535
    %v584 = vpack.c.b16 %v538, %v537
    %v585 = vpack.c.b16 %v540, %v539
    %v586 = vpack.c.b16 %v542, %v541
    %v587 = vpack.c.b16 %v544, %v543
    %v588 = vpack.c.b16 %v546, %v545
    %v589 = vpack.c.b16 %v548, %v547
    %v590 = vpack.c.b16 %v550, %v549
    %631 = vmatprep.subr.bf16.mxu0 0
    %632 = vmatpush1.bf16.msra.mxu0 %v558
    %633 = vmatprep.subr.bf16.mxu0 0
    %634 = vmatpush1.bf16.msra.mxu0 %v557
    %635 = vmatprep.subr.bf16.mxu0 0
    %636 = vmatpush1.bf16.msra.mxu0 %v556
    %637 = vmatprep.subr.bf16.mxu0 0
    %638 = vmatpush1.bf16.msra.mxu0 %v555
    %639 = vmatprep.subr.bf16.mxu0 0
    %640 = vmatpush1.bf16.msra.mxu0 %v554
    %641 = vmatprep.subr.bf16.mxu0 0
    %642 = vmatpush1.bf16.msra.mxu0 %v553
    %643 = vmatprep.subr.bf16.mxu0 0
    %644 = vmatpush1.bf16.msra.mxu0 %v552
    %645 = vmatprep.subr.bf16.mxu0 0
    %646 = vmatpush1.bf16.msra.mxu0 %v551
    %647 = vmatprep.subr.bf16.mxu0 0
    %648 = vmatpush2.bf16.msra.mxu0 %v566
    %649 = vmatprep.subr.bf16.mxu0 0
    %650 = vmatpush2.bf16.msra.mxu0 %v565
    %651 = vmatprep.subr.bf16.mxu0 0
    %652 = vmatpush2.bf16.msra.mxu0 %v564
    %653 = vmatprep.subr.bf16.mxu0 0
    %654 = vmatpush2.bf16.msra.mxu0 %v563
    %655 = vmatprep.subr.bf16.mxu0 0
    %656 = vmatpush2.bf16.msra.mxu0 %v562
    %657 = vmatprep.subr.bf16.mxu0 0
    %658 = vmatpush2.bf16.msra.mxu0 %v561
    %659 = vmatprep.subr.bf16.mxu0 0
    %660 = vmatpush2.bf16.msra.mxu0 %v560
    %661 = vmatprep.subr.bf16.mxu0 0
    %662 = vmatpush2.bf16.msra.mxu0 %v559
    %663 = vmatprep.mubr.bf16.mxu0 %v312
    %664 = vmatmul.mubr.bf16.gmra.mxu0 %v311
    %v665 = vpop.f32.mrf.mxu0
    %v666 = vadd.f32 0.0, %v665
    %v667 = vpop.f32.mrf.mxu0
    %v668 = vpop.f32.mrf.mxu0
    %v669 = vadd.f32 0.0, %v668
    %v670 = vpop.f32.mrf.mxu0
    %671 = vmatprep.mubr.bf16.mxu0 %v317
    %672 = vmatmul.mubr.bf16.gmra.mxu0 %v316
    %v673 = vpop.f32.mrf.mxu0
    %v674 = vadd.f32 0.0, %v673
    %v675 = vpop.f32.mrf.mxu0
    %v676 = vpop.f32.mrf.mxu0
    %v677 = vadd.f32 0.0, %v676
    %v678 = vpop.f32.mrf.mxu0
    %679 = vmatprep.mubr.bf16.mxu0 %v322
    %680 = vmatmul.mubr.bf16.gmra.mxu0 %v321
    %v681 = vpop.f32.mrf.mxu0
    %v682 = vadd.f32 0.0, %v681
    %v683 = vpop.f32.mrf.mxu0
    %v684 = vpop.f32.mrf.mxu0
    %v685 = vadd.f32 0.0, %v684
    %v686 = vpop.f32.mrf.mxu0
    %687 = vmatprep.mubr.bf16.mxu0 %v327
    %688 = vmatmul.mubr.bf16.gmra.mxu0 %v326
    %v689 = vpop.f32.mrf.mxu0
    %v690 = vadd.f32 0.0, %v689
    %v691 = vpop.f32.mrf.mxu0
    %v692 = vpop.f32.mrf.mxu0
    %v693 = vadd.f32 0.0, %v692
    %v694 = vpop.f32.mrf.mxu0
    %695 = vmatprep.mubr.bf16.mxu0 %v332
    %696 = vmatmul.mubr.bf16.gmra.mxu0 %v331
    %v697 = vpop.f32.mrf.mxu0
    %v698 = vadd.f32 0.0, %v697
    %v699 = vpop.f32.mrf.mxu0
    %v700 = vpop.f32.mrf.mxu0
    %v701 = vadd.f32 0.0, %v700
    %v702 = vpop.f32.mrf.mxu0
    %703 = vmatprep.mubr.bf16.mxu0 %v337
    %704 = vmatmul.mubr.bf16.gmra.mxu0 %v336
    %v705 = vpop.f32.mrf.mxu0
    %v706 = vadd.f32 0.0, %v705
    %v707 = vpop.f32.mrf.mxu0
    %v708 = vpop.f32.mrf.mxu0
    %v709 = vadd.f32 0.0, %v708
    %v710 = vpop.f32.mrf.mxu0
    %711 = vmatprep.mubr.bf16.mxu0 %v342
    %712 = vmatmul.mubr.bf16.gmra.mxu0 %v341
    %v713 = vpop.f32.mrf.mxu0
    %v714 = vadd.f32 0.0, %v713
    %v715 = vpop.f32.mrf.mxu0
    %v716 = vpop.f32.mrf.mxu0
    %v717 = vadd.f32 0.0, %v716
    %v718 = vpop.f32.mrf.mxu0
    %719 = vmatprep.mubr.bf16.mxu0 %v347
    %720 = vmatmul.mubr.bf16.gmra.mxu0 %v346
    %v721 = vpop.f32.mrf.mxu0
    %v722 = vadd.f32 0.0, %v721
    %v723 = vpop.f32.mrf.mxu0
    %v724 = vpop.f32.mrf.mxu0
    %v725 = vadd.f32 0.0, %v724
    %v726 = vpop.f32.mrf.mxu0
    %727 = vdwg.mxu0
    %728 = vmatprep.subr.bf16.mxu0 0
    %729 = vmatpush1.bf16.msra.mxu0 %v574
    %730 = vmatprep.subr.bf16.mxu0 0
    %731 = vmatpush1.bf16.msra.mxu0 %v573
    %732 = vmatprep.subr.bf16.mxu0 0
    %733 = vmatpush1.bf16.msra.mxu0 %v572
    %734 = vmatprep.subr.bf16.mxu0 0
    %735 = vmatpush1.bf16.msra.mxu0 %v571
    %736 = vmatprep.subr.bf16.mxu0 0
    %737 = vmatpush1.bf16.msra.mxu0 %v570
    %738 = vmatprep.subr.bf16.mxu0 0
    %739 = vmatpush1.bf16.msra.mxu0 %v569
    %740 = vmatprep.subr.bf16.mxu0 0
    %741 = vmatpush1.bf16.msra.mxu0 %v568
    %742 = vmatprep.subr.bf16.mxu0 0
    %743 = vmatpush1.bf16.msra.mxu0 %v567
    %744 = vmatprep.subr.bf16.mxu0 0
    %745 = vmatpush2.bf16.msra.mxu0 %v582
    %746 = vmatprep.subr.bf16.mxu0 0
    %747 = vmatpush2.bf16.msra.mxu0 %v581
    %748 = vmatprep.subr.bf16.mxu0 0
    %749 = vmatpush2.bf16.msra.mxu0 %v580
    %750 = vmatprep.subr.bf16.mxu0 0
    %751 = vmatpush2.bf16.msra.mxu0 %v579
    %752 = vmatprep.subr.bf16.mxu0 0
    %753 = vmatpush2.bf16.msra.mxu0 %v578
    %754 = vmatprep.subr.bf16.mxu0 0
    %755 = vmatpush2.bf16.msra.mxu0 %v577
    %756 = vmatprep.subr.bf16.mxu0 0
    %757 = vmatpush2.bf16.msra.mxu0 %v576
    %758 = vmatprep.subr.bf16.mxu0 0
    %759 = vmatpush2.bf16.msra.mxu0 %v575
    %760 = vmatprep.mubr.bf16.mxu0 %v314
    %761 = vmatmul.mubr.bf16.gmra.mxu0 %v313
    %v762 = vpop.f32.mrf.mxu0
    %v763 = vadd.f32 %v666, %v762
    %v764 = vpop.f32.mrf.mxu0
    %v765 = vpop.f32.mrf.mxu0
    %v766 = vadd.f32 %v669, %v765
    %v767 = vpop.f32.mrf.mxu0
    %768 = vmatprep.mubr.bf16.mxu0 %v319
    %769 = vmatmul.mubr.bf16.gmra.mxu0 %v318
    %v770 = vpop.f32.mrf.mxu0
    %v771 = vadd.f32 %v674, %v770
    %v772 = vpop.f32.mrf.mxu0
    %v773 = vpop.f32.mrf.mxu0
    %v774 = vadd.f32 %v677, %v773
    %v775 = vpop.f32.mrf.mxu0
    %776 = vmatprep.mubr.bf16.mxu0 %v324
    %777 = vmatmul.mubr.bf16.gmra.mxu0 %v323
    %v778 = vpop.f32.mrf.mxu0
    %v779 = vadd.f32 %v682, %v778
    %v780 = vpop.f32.mrf.mxu0
    %v781 = vpop.f32.mrf.mxu0
    %v782 = vadd.f32 %v685, %v781
    %v783 = vpop.f32.mrf.mxu0
    %784 = vmatprep.mubr.bf16.mxu0 %v329
    %785 = vmatmul.mubr.bf16.gmra.mxu0 %v328
    %v786 = vpop.f32.mrf.mxu0
    %v787 = vadd.f32 %v690, %v786
    %v788 = vpop.f32.mrf.mxu0
    %v789 = vpop.f32.mrf.mxu0
    %v790 = vadd.f32 %v693, %v789
    %v791 = vpop.f32.mrf.mxu0
    %792 = vmatprep.mubr.bf16.mxu0 %v334
    %793 = vmatmul.mubr.bf16.gmra.mxu0 %v333
    %v794 = vpop.f32.mrf.mxu0
    %v795 = vadd.f32 %v698, %v794
    %v796 = vpop.f32.mrf.mxu0
    %v797 = vpop.f32.mrf.mxu0
    %v798 = vadd.f32 %v701, %v797
    %v799 = vpop.f32.mrf.mxu0
    %800 = vmatprep.mubr.bf16.mxu0 %v339
    %801 = vmatmul.mubr.bf16.gmra.mxu0 %v338
    %v802 = vpop.f32.mrf.mxu0
    %v803 = vadd.f32 %v706, %v802
    %v804 = vpop.f32.mrf.mxu0
    %v805 = vpop.f32.mrf.mxu0
    %v806 = vadd.f32 %v709, %v805
    %v807 = vpop.f32.mrf.mxu0
    %808 = vmatprep.mubr.bf16.mxu0 %v344
    %809 = vmatmul.mubr.bf16.gmra.mxu0 %v343
    %v810 = vpop.f32.mrf.mxu0
    %v811 = vadd.f32 %v714, %v810
    %v812 = vpop.f32.mrf.mxu0
    %v813 = vpop.f32.mrf.mxu0
    %v814 = vadd.f32 %v717, %v813
    %v815 = vpop.f32.mrf.mxu0
    %816 = vmatprep.mubr.bf16.mxu0 %v349
    %817 = vmatmul.mubr.bf16.gmra.mxu0 %v348
    %v818 = vpop.f32.mrf.mxu0
    %v819 = vadd.f32 %v722, %v818
    %v820 = vpop.f32.mrf.mxu0
    %v821 = vpop.f32.mrf.mxu0
    %v822 = vadd.f32 %v725, %v821
    %v823 = vpop.f32.mrf.mxu0
    %824 = vdwg.mxu0
    %825 = vmatprep.subr.bf16.mxu0 0
    %826 = vmatpush1.bf16.msra.mxu0 %v590
    %827 = vmatprep.subr.bf16.mxu0 0
    %828 = vmatpush1.bf16.msra.mxu0 %v589
    %829 = vmatprep.subr.bf16.mxu0 0
    %830 = vmatpush1.bf16.msra.mxu0 %v588
    %831 = vmatprep.subr.bf16.mxu0 0
    %832 = vmatpush1.bf16.msra.mxu0 %v587
    %833 = vmatprep.subr.bf16.mxu0 0
    %834 = vmatpush1.bf16.msra.mxu0 %v586
    %835 = vmatprep.subr.bf16.mxu0 0
    %836 = vmatpush1.bf16.msra.mxu0 %v585
    %837 = vmatprep.subr.bf16.mxu0 0
    %838 = vmatpush1.bf16.msra.mxu0 %v584
    %839 = vmatprep.subr.bf16.mxu0 0
    %840 = vmatpush1.bf16.msra.mxu0 %v583
    %841 = vmatprep.subr.bf16.mxu0 0
    %842 = vmatpush2.bf16.msra.mxu0 0
    %843 = vmatprep.subr.bf16.mxu0 0
    %844 = vmatpush2.bf16.msra.mxu0 0
    %845 = vmatprep.subr.bf16.mxu0 0
    %846 = vmatpush2.bf16.msra.mxu0 0
    %847 = vmatprep.subr.bf16.mxu0 0
    %848 = vmatpush2.bf16.msra.mxu0 0
    %849 = vmatprep.subr.bf16.mxu0 0
    %850 = vmatpush2.bf16.msra.mxu0 0
    %851 = vmatprep.subr.bf16.mxu0 0
    %852 = vmatpush2.bf16.msra.mxu0 0
    %853 = vmatprep.subr.bf16.mxu0 0
    %854 = vmatpush2.bf16.msra.mxu0 0
    %855 = vmatprep.subr.bf16.mxu0 0
    %856 = vmatpush2.bf16.msra.mxu0 0
    %857 = vmatprep.mubr.bf16.mxu0 0
    %858 = vmatmul.mubr.bf16.gmra.mxu0 %v315
    %v859 = vpop.f32.mrf.mxu0
    %v860 = vadd.f32 %v763, %v859
    %v861 = vpop.f32.mrf.mxu0
    %v862 = vpop.f32.mrf.mxu0
    %v863 = vadd.f32 %v766, %v862
    %v864 = vpop.f32.mrf.mxu0
    %865 = vmatprep.mubr.bf16.mxu0 0
    %866 = vmatmul.mubr.bf16.gmra.mxu0 %v320
    %v867 = vpop.f32.mrf.mxu0
    %v868 = vadd.f32 %v771, %v867
    %v869 = vpop.f32.mrf.mxu0
    %v870 = vpop.f32.mrf.mxu0
    %v871 = vadd.f32 %v774, %v870
    %v872 = vpop.f32.mrf.mxu0
    %873 = vmatprep.mubr.bf16.mxu0 0
    %874 = vmatmul.mubr.bf16.gmra.mxu0 %v325
    %v875 = vpop.f32.mrf.mxu0
    %v876 = vadd.f32 %v779, %v875
    %v877 = vpop.f32.mrf.mxu0
    %v878 = vpop.f32.mrf.mxu0
    %v879 = vadd.f32 %v782, %v878
    %v880 = vpop.f32.mrf.mxu0
    %881 = vmatprep.mubr.bf16.mxu0 0
    %882 = vmatmul.mubr.bf16.gmra.mxu0 %v330
    %v883 = vpop.f32.mrf.mxu0
    %v884 = vadd.f32 %v787, %v883
    %v885 = vpop.f32.mrf.mxu0
    %v886 = vpop.f32.mrf.mxu0
    %v887 = vadd.f32 %v790, %v886
    %v888 = vpop.f32.mrf.mxu0
    %889 = vmatprep.mubr.bf16.mxu0 0
    %890 = vmatmul.mubr.bf16.gmra.mxu0 %v335
    %v891 = vpop.f32.mrf.mxu0
    %v892 = vadd.f32 %v795, %v891
    %v893 = vpop.f32.mrf.mxu0
    %v894 = vpop.f32.mrf.mxu0
    %v895 = vadd.f32 %v798, %v894
    %v896 = vpop.f32.mrf.mxu0
    %897 = vmatprep.mubr.bf16.mxu0 0
    %898 = vmatmul.mubr.bf16.gmra.mxu0 %v340
    %v899 = vpop.f32.mrf.mxu0
    %v900 = vadd.f32 %v803, %v899
    %v901 = vpop.f32.mrf.mxu0
    %v902 = vpop.f32.mrf.mxu0
    %v903 = vadd.f32 %v806, %v902
    %v904 = vpop.f32.mrf.mxu0
    %905 = vmatprep.mubr.bf16.mxu0 0
    %906 = vmatmul.mubr.bf16.gmra.mxu0 %v345
    %v907 = vpop.f32.mrf.mxu0
    %v908 = vadd.f32 %v811, %v907
    %v909 = vpop.f32.mrf.mxu0
    %v910 = vpop.f32.mrf.mxu0
    %v911 = vadd.f32 %v814, %v910
    %v912 = vpop.f32.mrf.mxu0
    %913 = vmatprep.mubr.bf16.mxu0 0
    %914 = vmatmul.mubr.bf16.gmra.mxu0 %v350
    %v915 = vpop.f32.mrf.mxu0
    %v916 = vadd.f32 %v819, %v915
    %v917 = vpop.f32.mrf.mxu0
    %v918 = vpop.f32.mrf.mxu0
    %v919 = vadd.f32 %v822, %v918
    %v920 = vpop.f32.mrf.mxu0
    %921 = vdwg.mxu0
    %v922 = vadd.f32 %v39, %v860
    %v923 = vadd.f32 %v40, %v863
    %v924 = vadd.f32 %v41, %v868
    %v925 = vadd.f32 %v42, %v871
    %v926 = vadd.f32 %v43, %v876
    %v927 = vadd.f32 %v44, %v879
    %v928 = vadd.f32 %v45, %v884
    %v929 = vadd.f32 %v46, %v887
    %v930 = vadd.f32 %v47, %v892
    %v931 = vadd.f32 %v48, %v895
    %v932 = vadd.f32 %v49, %v900
    %v933 = vadd.f32 %v50, %v903
    %v934 = vadd.f32 %v51, %v908
    %v935 = vadd.f32 %v52, %v911
    %v936 = vadd.f32 %v53, %v916
    %v937 = vadd.f32 %v54, %v919
    %938 = vst [vmem:[#allocation2] sm:$0xff] %v922
    %939 = vst [vmem:[#allocation2 + $0x8] sm:$0xff] %v923
    %940 = vst [vmem:[#allocation2 + $0x10] sm:$0xff] %v924
    %941 = vst [vmem:[#allocation2 + $0x18] sm:$0xff] %v925
    %942 = vst [vmem:[#allocation2 + $0x20] sm:$0xff] %v926
    %943 = vst [vmem:[#allocation2 + $0x28] sm:$0xff] %v927
    %944 = vst [vmem:[#allocation2 + $0x30] sm:$0xff] %v928
    %945 = vst [vmem:[#allocation2 + $0x38] sm:$0xff] %v929
    %946 = vst [vmem:[#allocation2 + $0x40] sm:$0xff] %v930
    %947 = vst [vmem:[#allocation2 + $0x48] sm:$0xff] %v931
    %948 = vst [vmem:[#allocation2 + $0x50] sm:$0xff] %v932
    %949 = vst [vmem:[#allocation2 + $0x58] sm:$0xff] %v933
    %950 = vst [vmem:[#allocation2 + $0x60] sm:$0xff] %v934
    %951 = vst [vmem:[#allocation2 + $0x68] sm:$0xff] %v935
    %952 = vst [vmem:[#allocation2 + $0x70] sm:$0xff] %v936
    %953 = vst [vmem:[#allocation2 + $0x78] sm:$0xff] %v937
    // Predicated region
    $region22: #{_lambda_.9} parent=1 // pred_check
      %p954 = pneg %p19
    $region23: #{_lambda_.9} parent=1 // pred_check_branch
      %956 = sbr.rel (%p954) target = $region25
    $region24: #{_lambda_.9} parent=1 // pred_region
      %v957 = vld [vmem:[#allocation2] sm:$0xff]
      %v958 = vld [vmem:[#allocation2 + $0x8] sm:$0xff]
      %v959 = vld [vmem:[#allocation2 + $0x10] sm:$0xff]
      %v960 = vld [vmem:[#allocation2 + $0x18] sm:$0xff]
      %v961 = vld [vmem:[#allocation2 + $0x20] sm:$0xff]
      %v962 = vld [vmem:[#allocation2 + $0x28] sm:$0xff]
      %v963 = vld [vmem:[#allocation2 + $0x30] sm:$0xff]
      %v964 = vld [vmem:[#allocation2 + $0x38] sm:$0xff]
      %v965 = vld [vmem:[#allocation2 + $0x40] sm:$0xff]
      %v966 = vld [vmem:[#allocation2 + $0x48] sm:$0xff]
      %v967 = vld [vmem:[#allocation2 + $0x50] sm:$0xff]
      %v968 = vld [vmem:[#allocation2 + $0x58] sm:$0xff]
      %v969 = vld [vmem:[#allocation2 + $0x60] sm:$0xff]
      %v970 = vld [vmem:[#allocation2 + $0x68] sm:$0xff]
      %v971 = vld [vmem:[#allocation2 + $0x70] sm:$0xff]
      %v972 = vld [vmem:[#allocation2 + $0x78] sm:$0xff]
      %v973 = vld [vmem:[%s2] sm:$0x1]
      %v975 = vlaneseq
      %v976 = vshrl.u32 %v975, 7
      %v977 = vsub.s32 0, %v976
      %v978 = vrot.slane %v973, %v977
      %v980 = vadd.f32 %v957, %v978
      %v981 = vadd.f32 %v958, %v978
      %v982 = vadd.f32 %v959, %v978
      %v983 = vadd.f32 %v960, %v978
      %v984 = vadd.f32 %v961, %v978
      %v985 = vadd.f32 %v962, %v978
      %v986 = vadd.f32 %v963, %v978
      %v987 = vadd.f32 %v964, %v978
      %v988 = vadd.f32 %v965, %v978
      %v989 = vadd.f32 %v966, %v978
      %v990 = vadd.f32 %v967, %v978
      %v991 = vadd.f32 %v968, %v978
      %v992 = vadd.f32 %v969, %v978
      %v993 = vadd.f32 %v970, %v978
      %v994 = vadd.f32 %v971, %v978
      %v995 = vadd.f32 %v972, %v978
      %v996 = vld [vmem:[%s3] sm:$0xff]
      %v997 = vld [vmem:[%s3 + $0x8] sm:$0xff]
      %v998 = vld [vmem:[%s3 + $0x10] sm:$0xff]
      %v999 = vld [vmem:[%s3 + $0x18] sm:$0xff]
      %v1000 = vld [vmem:[%s3 + $0x20] sm:$0xff]
      %v1001 = vld [vmem:[%s3 + $0x28] sm:$0xff]
      %v1002 = vld [vmem:[%s3 + $0x30] sm:$0xff]
      %v1003 = vld [vmem:[%s3 + $0x38] sm:$0xff]
      %v1004 = vld [vmem:[%s3 + $0x40] sm:$0xff]
      %v1005 = vld [vmem:[%s3 + $0x48] sm:$0xff]
      %v1006 = vld [vmem:[%s3 + $0x50] sm:$0xff]
      %v1007 = vld [vmem:[%s3 + $0x58] sm:$0xff]
      %v1008 = vld [vmem:[%s3 + $0x60] sm:$0xff]
      %v1009 = vld [vmem:[%s3 + $0x68] sm:$0xff]
      %v1010 = vld [vmem:[%s3 + $0x70] sm:$0xff]
      %v1011 = vld [vmem:[%s3 + $0x78] sm:$0xff]
      %v1012 = vadd.f32 %v980, %v996
      %v1013 = vadd.f32 %v981, %v997
      %v1014 = vadd.f32 %v982, %v998
      %v1015 = vadd.f32 %v983, %v999
      %v1016 = vadd.f32 %v984, %v1000
      %v1017 = vadd.f32 %v985, %v1001
      %v1018 = vadd.f32 %v986, %v1002
      %v1019 = vadd.f32 %v987, %v1003
      %v1020 = vadd.f32 %v988, %v1004
      %v1021 = vadd.f32 %v989, %v1005
      %v1022 = vadd.f32 %v990, %v1006
      %v1023 = vadd.f32 %v991, %v1007
      %v1024 = vadd.f32 %v992, %v1008
      %v1025 = vadd.f32 %v993, %v1009
      %v1026 = vadd.f32 %v994, %v1010
      %v1027 = vadd.f32 %v995, %v1011
      %v1028 = vmul.f32 %v1012, 0.70710677
      %v1029 = vmul.f32 %v1013, 0.70710677
      %v1030 = vmul.f32 %v1014, 0.70710677
      %v1031 = vmul.f32 %v1015, 0.70710677
      %v1032 = vmul.f32 %v1016, 0.70710677
      %v1033 = vmul.f32 %v1017, 0.70710677
      %v1034 = vmul.f32 %v1018, 0.70710677
      %v1035 = vmul.f32 %v1019, 0.70710677
      %v1036 = vmul.f32 %v1020, 0.70710677
      %v1037 = vmul.f32 %v1021, 0.70710677
      %v1038 = vmul.f32 %v1022, 0.70710677
      %v1039 = vmul.f32 %v1023, 0.70710677
      %v1040 = vmul.f32 %v1024, 0.70710677
      %v1041 = vmul.f32 %v1025, 0.70710677
      %v1042 = vmul.f32 %v1026, 0.70710677
      %v1043 = vmul.f32 %v1027, 0.70710677
      %1044 = vst [vmem:[#allocation3] sm:$0xff] %v1028
      %1045 = vst [vmem:[#allocation3 + $0x8] sm:$0xff] %v1029
      %1046 = vst [vmem:[#allocation3 + $0x10] sm:$0xff] %v1030
      %1047 = vst [vmem:[#allocation3 + $0x18] sm:$0xff] %v1031
      %1048 = vst [vmem:[#allocation3 + $0x20] sm:$0xff] %v1032
      %1049 = vst [vmem:[#allocation3 + $0x28] sm:$0xff] %v1033
      %1050 = vst [vmem:[#allocation3 + $0x30] sm:$0xff] %v1034
      %1051 = vst [vmem:[#allocation3 + $0x38] sm:$0xff] %v1035
      %1052 = vst [vmem:[#allocation3 + $0x40] sm:$0xff] %v1036
      %1053 = vst [vmem:[#allocation3 + $0x48] sm:$0xff] %v1037
      %1054 = vst [vmem:[#allocation3 + $0x50] sm:$0xff] %v1038
      %1055 = vst [vmem:[#allocation3 + $0x58] sm:$0xff] %v1039
      %1056 = vst [vmem:[#allocation3 + $0x60] sm:$0xff] %v1040
      %1057 = vst [vmem:[#allocation3 + $0x68] sm:$0xff] %v1041
      %1058 = vst [vmem:[#allocation3 + $0x70] sm:$0xff] %v1042
      %1059 = vst [vmem:[#allocation3 + $0x78] sm:$0xff] %v1043
    $region25: #{_lambda_.9} parent=1 // pred_fallthru
      _
    // Predicated region
    $region26: #{_lambda_.9} parent=1 // pred_check
      _
    $region27: #{_lambda_.9} parent=1 // pred_check_branch
      %1061 = sbr.rel (0) target = $region29
    $region28: #{_lambda_.9} parent=1 // pred_region
      %s1063 = ssub.s32 2048, 2048
      %1064 = vsyncadd [#allocation4], %s1063
      %s1065 = sshll.u32 [#allocation3], 4
      %s1066 = int_to_ptr.vmem [resolvable:$true] %s1065
      %1071 = dma.vmem_to_hbm [thread:$0]  %s1066, 2048, %s4, [#allocation4], 128, 128, 8
    $region29: #{_lambda_.9} parent=1 // pred_fallthru
      _
    // Predicated region
    $region30: #{_lambda_.9} parent=1 // pred_check
      _
    $region31: #{_lambda_.9} parent=1 // pred_check_branch
      %1073 = sbr.rel (0) target = $region33
    $region32: #{_lambda_.9} parent=1 // pred_region
      %1074 = dma.done [#allocation4], 2048
    $region33: #{_lambda_.9} parent=1 // pred_fallthru
      _
    %1075 = vsyncpa [#allocation4], 1

</llo_original>
